<compile_context>
chip_gen: v6e
topology: v6e:2x2x1
jax: 0.10.0
libtpu: 0.0.40
codegen_flags: <defaults>
</compile_context>

<pallas_src>
import functools
import math

import jax
import jax.numpy as jnp
from jax.experimental import pallas as pl
from jax.experimental.pallas import tpu as pltpu

BN_EPS = 1e-5


# ----------------------------------------------------------------------------
# helpers
# ----------------------------------------------------------------------------
def _round_up(x, m):
    return (x + m - 1) // m * m


def _pick_tile(dim, prefs):
    for t in prefs:
        if dim % t == 0:
            return t
    return dim


def _choose_m_tile(m):
    # Prefer big tiles (DMA efficiency improves sharply up to ~512), but keep
    # >= 2 grid steps along M when possible so v7x's second TensorCore gets work
    # even when N fits a single tile.  Never fall back below a sublane multiple.
    for t in (512, 256, 128):
        if m >= 2 * t:
            return t
    return _round_up(max(m, 8), 8)


# ----------------------------------------------------------------------------
# Fused GEMM:  out = act((A @ B) * scale + shift)      (A, B streamed as bf16)
# ----------------------------------------------------------------------------
def _gemm_epilogue(y, scale, shift, act):
    y = y * scale + shift
    if act == "silu":
        y = y * jax.nn.sigmoid(y)
    elif act == "relu":
        y = jnp.maximum(y, 0.0)
    return y


def _gemm_kernel_1k(a_ref, b_ref, scale_ref, shift_ref, o_ref, *, act):
    # Single K step: no accumulator scratch, write straight through.
    y = jnp.dot(a_ref[...], b_ref[...], preferred_element_type=jnp.float32)
    o_ref[...] = _gemm_epilogue(y, scale_ref[...], shift_ref[...], act).astype(o_ref.dtype)


def _gemm_kernel_nk(a_ref, b_ref, scale_ref, shift_ref, o_ref, acc_ref, *, act):
    @pl.when(pl.program_id(2) == 0)
    def _():
        acc_ref[...] = jnp.zeros_like(acc_ref)

    acc_ref[...] += jnp.dot(a_ref[...], b_ref[...], preferred_element_type=jnp.float32)

    @pl.when(pl.program_id(2) == pl.num_programs(2) - 1)
    def _():
        o_ref[...] = _gemm_epilogue(acc_ref[...], scale_ref[...], shift_ref[...],
                                    act).astype(o_ref.dtype)


def matmul_fused(a, b, scale, shift, act="none"):
    """act((a @ b) * scale + shift); scale/shift broadcast over rows (per column).

    A and B are fed to the MXU in bfloat16 (halves HBM bytes for this
    memory-bound GEMM); accumulation and the epilogue stay float32.
    """
    m0, k0 = a.shape
    _, n0 = b.shape

    a = a.astype(jnp.bfloat16)
    b = b.astype(jnp.bfloat16)
    scale = scale.astype(jnp.float32)
    shift = shift.astype(jnp.float32)

    # Pad K and N to multiples of 128 (zero padding is exact for the GEMM):
    # full-lane loads for A/B and unmasked lane-dense stores for the output.
    k = _round_up(k0, 128)
    n = _round_up(n0, 128)
    if k != k0:
        a = jnp.pad(a, ((0, 0), (0, k - k0)))
        b = jnp.pad(b, ((0, k - k0), (0, 0)))
    if n != n0:
        b = jnp.pad(b, ((0, 0), (0, n - n0)))
        scale = jnp.pad(scale, (0, n - n0))
        shift = jnp.pad(shift, (0, n - n0))

    tm = _choose_m_tile(m0)
    m = _round_up(m0, tm)
    if m != m0:
        # TODO(synk): fold M padding into the NCHW->NHWC transpose copy instead of
        # a separate pad pass (only hit when B*H*W is not tile-aligned).
        a = jnp.pad(a, ((0, m - m0), (0, 0)))

    tn = _pick_tile(n, (256, 512, 128))
    tk = _pick_tile(k, (512, 256, 128))
    while tk > 128 and tk * tn * 2 > (1 << 20):   # cap streamed B block at ~1 MiB
        tk //= 2
    nk = k // tk

    scale2d = scale.reshape(1, n)
    shift2d = shift.reshape(1, n)

    # VMEM budget from actual (double-buffered) block bytes, capped for v7x (64 MiB).
    blk_bytes = 2 * (tm * tk * 2 + tk * tn * 2 + 2 * tn * 4) + 2 * tm * tn * 4
    if nk > 1:
        blk_bytes += tm * tn * 4
    vmem_limit = int(min(48 * 1024 * 1024, max(16 * 1024 * 1024, 2 * blk_bytes)))

    if nk == 1:
        out = pl.pallas_call(
            functools.partial(_gemm_kernel_1k, act=act),
            out_shape=jax.ShapeDtypeStruct((m, n), jnp.float32),
            grid_spec=pltpu.PrefetchScalarGridSpec(
                num_scalar_prefetch=0,
                grid=(m // tm, n // tn),
                in_specs=[
                    pl.BlockSpec((tm, tk), lambda i, j: (i, 0)),
                    pl.BlockSpec((tk, tn), lambda i, j: (0, j)),
                    pl.BlockSpec((1, tn), lambda i, j: (0, j)),
                    pl.BlockSpec((1, tn), lambda i, j: (0, j)),
                ],
                out_specs=pl.BlockSpec((tm, tn), lambda i, j: (i, j)),
            ),
            compiler_params=pltpu.CompilerParams(
                dimension_semantics=("parallel", "parallel"),
                vmem_limit_bytes=vmem_limit,
            ),
        )(a, b, scale2d, shift2d)
    else:
        out = pl.pallas_call(
            functools.partial(_gemm_kernel_nk, act=act),
            out_shape=jax.ShapeDtypeStruct((m, n), jnp.float32),
            grid_spec=pltpu.PrefetchScalarGridSpec(
                num_scalar_prefetch=0,
                grid=(m // tm, n // tn, nk),
                in_specs=[
                    pl.BlockSpec((tm, tk), lambda i, j, kk: (i, kk)),
                    pl.BlockSpec((tk, tn), lambda i, j, kk: (kk, j)),
                    pl.BlockSpec((1, tn), lambda i, j, kk: (0, j)),
                    pl.BlockSpec((1, tn), lambda i, j, kk: (0, j)),
                ],
                out_specs=pl.BlockSpec((tm, tn), lambda i, j, kk: (i, j)),
                scratch_shapes=[pltpu.VMEM((tm, tn), jnp.float32)],
            ),
            compiler_params=pltpu.CompilerParams(
                dimension_semantics=("parallel", "parallel", "arbitrary"),
                vmem_limit_bytes=vmem_limit,
            ),
        )(a, b, scale2d, shift2d)

    if m != m0 or n != n0:
        out = out[:m0, :n0]
    return out


# ----------------------------------------------------------------------------
# Depthwise 5x5 (pad=2, stride=1, groups=C) + BN + act, fused with the concat:
# writes [y, act(bn(dwconv(y)))] into one (B, 2, H, W, C) buffer.
# ----------------------------------------------------------------------------
def _dw5x5_concat_kernel(yp_ref, w_ref, scale_ref, shift_ref, o_ref, *, H, W, act):
    # yp_ref:      (1, H+4, W+4, tc)  spatially zero-padded y block (channel-last)
    # w_ref:       (25, tc)           tap index = ki*5 + kj
    # scale/shift: (1, tc)
    # o_ref:       (1, 2, H, W, tc)   [:,0]=y (identity copy), [:,1]=conv result
    tc = w_ref.shape[-1]
    scale = scale_ref[0, :].reshape(1, 1, tc)
    shift = shift_ref[0, :].reshape(1, 1, tc)

    # First ghost half: y itself = interior of the padded block (exact f32 copy,
    # data already in VMEM -> no separate concat pass over HBM).
    o_ref[0, 0, :, :, :] = yp_ref[0, 2:2 + H, 2:2 + W, :].astype(o_ref.dtype)

    # Second half: 25-tap depthwise MAC, accumulated in 8-row strips so the
    # accumulator stays in vregs.  kj offsets are sublane shifts (XLU, which is
    # idle in this VPU-heavy loop); ki / strip offsets are on untiled dims.
    TH = 8
    for r0 in range(0, H, TH):
        rows = min(TH, H - r0)
        acc = jnp.zeros((rows, W, tc), jnp.float32)
        for ki in range(5):
            for kj in range(5):
                tap = w_ref[ki * 5 + kj, :].reshape(1, 1, tc)
                acc = acc + yp_ref[0, r0 + ki:r0 + ki + rows, kj:kj + W, :] * tap
        y2 = acc * scale + shift
        if act == "silu":
            y2 = y2 * jax.nn.sigmoid(y2)
        elif act == "relu":
            y2 = jnp.maximum(y2, 0.0)
        o_ref[0, 1, r0:r0 + rows, :, :] = y2.astype(o_ref.dtype)


def depthwise5x5_bn_act_concat(y, w, scale, shift, act="silu"):
    """y: (B,H,W,C) f32; w: (C,1,5,5).  Returns (B, 2, H, W, Cp) with
    [:,0]=y and [:,1]=act(bn(dwconv5x5(y))); Cp = C rounded up to 128."""
    B, H, W, C = y.shape
    Cp = _round_up(C, 128)
    tc = 128

    wt = w.reshape(C, 25).T.astype(jnp.float32)                 # (25, C)
    scale = scale.astype(jnp.float32).reshape(1, C)
    shift = shift.astype(jnp.float32).reshape(1, C)
    if Cp != C:
        # Lane-dense channel padding; padded channels stay exact zeros end-to-end.
        y = jnp.pad(y, ((0, 0), (0, 0), (0, 0), (0, Cp - C)))
        wt = jnp.pad(wt, ((0, 0), (0, Cp - C)))
        scale = jnp.pad(scale, ((0, 0), (0, Cp - C)))
        shift = jnp.pad(shift, ((0, 0), (0, Cp - C)))

    # 'same' padding for the 5x5 depthwise conv.
    # TODO(synk): fold this spatial pad into the kernel (VMEM halo scratch) and
    # add an H grid axis to keep very large feature maps under v7x's 64 MiB VMEM.
    yp = jnp.pad(y, ((0, 0), (2, 2), (2, 2), (0, 0)))            # (B, H+4, W+4, Cp)

    grid = (B, Cp // tc)

    in_blk = (H + 4) * (W + 4) * tc * 4
    out_blk = 2 * H * W * tc * 4
    vmem_limit = int(min(48 * 1024 * 1024,
                         max(16 * 1024 * 1024, 2 * (in_blk + out_blk) + (1 << 20))))

    out = pl.pallas_call(
        functools.partial(_dw5x5_concat_kernel, H=H, W=W, act=act),
        out_shape=jax.ShapeDtypeStruct((B, 2, H, W, Cp), jnp.float32),
        grid_spec=pltpu.PrefetchScalarGridSpec(
            num_scalar_prefetch=0,
            grid=grid,
            in_specs=[
                pl.BlockSpec((1, H + 4, W + 4, tc), lambda b, c: (b, 0, 0, c)),
                pl.BlockSpec((25, tc), lambda b, c: (0, c)),
                pl.BlockSpec((1, tc), lambda b, c: (0, c)),
                pl.BlockSpec((1, tc), lambda b, c: (0, c)),
            ],
            out_specs=pl.BlockSpec((1, 2, H, W, tc), lambda b, c: (b, 0, 0, 0, c)),
        ),
        compiler_params=pltpu.CompilerParams(
            dimension_semantics=("parallel", "parallel"),
            vmem_limit_bytes=vmem_limit,
        ),
    )(yp, wt, scale, shift)
    return out


# ----------------------------------------------------------------------------
# GhostConv forward (k=1, s=1, g=1, act=SiLU — the module defaults)
# ----------------------------------------------------------------------------
def ghostconv_forward(x, P):
    """x: NCHW float32 -> NCHW float32 with 2*c_ channels."""
    B, C1, H, W = x.shape
    c_, c1w, kh, kw = P["cv1_w"].shape
    assert c1w == C1 and (kh, kw) == (1, 1)
    # TODO(synk): general k>1 / stride>1 / groups>1 for cv1 would need an im2col
    # (tap-grid) GEMM path; the GhostConv defaults (k=1, s=1, g=1) need none.

    # Single NCHW->NHWC transpose at the boundary; XLA fuses the bf16 cast done
    # inside matmul_fused into this same copy.
    x_nhwc = jnp.transpose(x, (0, 2, 3, 1))                     # (B, H, W, C1)
    a = x_nhwc.reshape(B * H * W, C1)

    # cv1: 1x1 conv == GEMM over channels, BN + SiLU fused in the epilogue.
    wm = jnp.transpose(P["cv1_w"].reshape(c_, C1), (1, 0))      # (C1, c_)
    scale1 = P["cv1_bn_gamma"] * jax.lax.rsqrt(P["cv1_bn_var"] + BN_EPS)
    shift1 = P["cv1_bn_beta"] - P["cv1_bn_mean"] * scale1
    y = matmul_fused(a, wm, scale1, shift1, act="silu").reshape(B, H, W, c_)

    # cv2: depthwise 5x5 (pad=2) + BN + SiLU, fused with the channel concat.
    scale2 = P["cv2_bn_gamma"] * jax.lax.rsqrt(P["cv2_bn_var"] + BN_EPS)
    shift2 = P["cv2_bn_beta"] - P["cv2_bn_mean"] * scale2
    out5 = depthwise5x5_bn_act_concat(y, P["cv2_w"], scale2, shift2, act="silu")
    out5 = out5[..., :c_]                                       # drop channel pad (no-op if aligned)

    # (B, 2, H, W, c_) -> (B, 2, c_, H, W) -> (B, 2*c_, H, W): the concat is a
    # free contiguous reshape; only one transpose pass back to NCHW.
    return jnp.transpose(out5, (0, 1, 4, 2, 3)).reshape(B, 2 * c_, H, W)


# ----------------------------------------------------------------------------
# Pure-JAX reference (for a correctness check in __main__)
# ----------------------------------------------------------------------------
def _reference(x, P):
    def bn(z, g, b, m, v):
        s = g * jax.lax.rsqrt(v + BN_EPS)
        return z * s.reshape(1, -1, 1, 1) + (b - m * s).reshape(1, -1, 1, 1)

    def silu(z):
        return z * jax.nn.sigmoid(z)

    y = jax.lax.conv_general_dilated(
        x, P["cv1_w"], (1, 1), "VALID",
        dimension_numbers=("NCHW", "OIHW", "NCHW"))
    y = silu(bn(y, P["cv1_bn_gamma"], P["cv1_bn_beta"],
                P["cv1_bn_mean"], P["cv1_bn_var"]))
    y2 = jax.lax.conv_general_dilated(
        y, P["cv2_w"], (1, 1), ((2, 2), (2, 2)),
        dimension_numbers=("NCHW", "OIHW", "NCHW"),
        feature_group_count=y.shape[1])
    y2 = silu(bn(y2, P["cv2_bn_gamma"], P["cv2_bn_beta"],
                 P["cv2_bn_mean"], P["cv2_bn_var"]))
    return jnp.concatenate([y, y2], axis=1)


# ----------------------------------------------------------------------------
# Deterministic parameters
# ----------------------------------------------------------------------------
def build_params(key, c1, c2):
    c_ = c2 // 2
    ks = jax.random.split(key, 6)
    return {
        "cv1_w": jax.random.normal(ks[0], (c_, c1, 1, 1), jnp.float32) / math.sqrt(c1),
        "cv1_bn_gamma": 1.0 + 0.05 * jax.random.normal(ks[1], (c_,), jnp.float32),
        "cv1_bn_beta": 0.05 * jax.random.normal(ks[2], (c_,), jnp.float32),
        "cv1_bn_mean": jnp.zeros((c_,), jnp.float32),
        "cv1_bn_var": jnp.ones((c_,), jnp.float32),
        "cv2_w": jax.random.normal(ks[3], (c_, 1, 5, 5), jnp.float32) / 5.0,
        "cv2_bn_gamma": 1.0 + 0.05 * jax.random.normal(ks[4], (c_,), jnp.float32),
        "cv2_bn_beta": 0.05 * jax.random.normal(ks[5], (c_,), jnp.float32),
        "cv2_bn_mean": jnp.zeros((c_,), jnp.float32),
        "cv2_bn_var": jnp.ones((c_,), jnp.float32),
    }


if __name__ == "__main__":
    B, C1, C2, H, W = 2, 128, 256, 16, 16
    root = jax.random.PRNGKey(0)
    kx, kp = jax.random.split(root)
    P = build_params(kp, C1, C2)
    x = jax.random.normal(kx, (B, C1, H, W), jnp.float32)

    fwd = jax.jit(ghostconv_forward)
    y = jax.block_until_ready(fwd(x, P))

    assert y.shape == (B, C2, H, W), y.shape
    assert bool(jnp.all(jnp.isfinite(y)))

    ref = jax.block_until_ready(_reference(x, P))
    err = float(jnp.max(jnp.abs(y - ref)))
    # bf16 MXU inputs (f32 accumulation) introduce ~1e-2-scale absolute error
    # vs. the all-f32 reference; tolerance loosened accordingly.
    assert err < 6e-2, f"max abs error vs reference: {err}"

    print("KERNEL_OK")
</pallas_src>

<mosaic_0001>
module attributes {stable_mosaic.version = 11 : i64} {
  func.func @_gemm_kernel_1k(%arg0: i32, %arg1: i32, %arg2: memref<256x128xbf16, #tpu.memory_space<vmem>>, %arg3: memref<128x128xbf16, #tpu.memory_space<vmem>>, %arg4: memref<1x128xf32, #tpu.memory_space<vmem>>, %arg5: memref<1x128xf32, #tpu.memory_space<vmem>>, %arg6: memref<256x128xf32, #tpu.memory_space<vmem>>) attributes {dimension_semantics = [#tpu.dimension_semantics<parallel>, #tpu.dimension_semantics<parallel>], iteration_bounds = array<i64: 2, 1>, scalar_prefetch = 0 : i64, scratch_operands = 0 : i64, tpu.core_type = #tpu.core_type<tc>, window_params = [{transform_indices = @transform_0, window_bounds = array<i64: 256, 128>}, {transform_indices = @transform_1, window_bounds = array<i64: 128, 128>}, {transform_indices = @transform_2, window_bounds = array<i64: 1, 128>}, {transform_indices = @transform_3, window_bounds = array<i64: 1, 128>}, {transform_indices = @transform_4, window_bounds = array<i64: 256, 128>}]} {
    %c0 = arith.constant 0 : index
    %c0_0 = arith.constant 0 : index
    %0 = vector.load %arg2[%c0, %c0_0] : memref<256x128xbf16, #tpu.memory_space<vmem>>, vector<256x128xbf16>
    %c0_1 = arith.constant 0 : index
    %c0_2 = arith.constant 0 : index
    %1 = vector.load %arg3[%c0_1, %c0_2] : memref<128x128xbf16, #tpu.memory_space<vmem>>, vector<128x128xbf16>
    %cst = arith.constant dense<0.000000e+00> : vector<256x128xf32>
    %2 = tpu.matmul %0, %1, %cst {dimension_numbers = #tpu.dot_dimension_numbers<[1], [0], [0], [1], [0, 0, 1, 1], [], []>} : vector<256x128xbf16>, vector<128x128xbf16>, vector<256x128xf32> -> vector<256x128xf32>
    %c0_3 = arith.constant 0 : index
    %c0_4 = arith.constant 0 : index
    %3 = vector.load %arg4[%c0_3, %c0_4] : memref<1x128xf32, #tpu.memory_space<vmem>>, vector<1x128xf32>
    %c0_5 = arith.constant 0 : index
    %c0_6 = arith.constant 0 : index
    %4 = vector.load %arg5[%c0_5, %c0_6] : memref<1x128xf32, #tpu.memory_space<vmem>>, vector<1x128xf32>
    %5 = vector.broadcast %3 : vector<1x128xf32> to vector<256x128xf32>
    %6 = arith.mulf %2, %5 : vector<256x128xf32>
    %7 = vector.broadcast %4 : vector<1x128xf32> to vector<256x128xf32>
    %8 = arith.addf %6, %7 : vector<256x128xf32>
    %9 = arith.negf %8 : vector<256x128xf32>
    %10 = math.exp %9 : vector<256x128xf32>
    %cst_7 = arith.constant 1.000000e+00 : f32
    %11 = vector.broadcast %cst_7 : f32 to vector<256x128xf32>
    %12 = arith.addf %11, %10 : vector<256x128xf32>
    %13 = arith.divf %11, %12 : vector<256x128xf32>
    %14 = arith.mulf %8, %13 : vector<256x128xf32>
    %c0_8 = arith.constant 0 : index
    %c0_9 = arith.constant 0 : index
    %15 = vector.load %arg6[%c0_8, %c0_9] : memref<256x128xf32, #tpu.memory_space<vmem>>, vector<256x128xf32>
    tpu.vector_store %arg6[%c0_8, %c0_9], %14 {strides = array<i32>} : memref<256x128xf32, #tpu.memory_space<vmem>>, vector<256x128xf32>,
    return
  }
  func.func @transform_0(%arg0: i32, %arg1: i32) -> (i32, i32) {
    %c0_i32 = arith.constant 0 : i32
    %c0_i32_0 = arith.constant 0 : i32
    return %arg0, %c0_i32 : i32, i32
  }
  func.func @transform_1(%arg0: i32, %arg1: i32) -> (i32, i32) {
    %c0_i32 = arith.constant 0 : i32
    %c0_i32_0 = arith.constant 0 : i32
    return %c0_i32, %arg1 : i32, i32
  }
  func.func @transform_2(%arg0: i32, %arg1: i32) -> (i32, i32) {
    %c0_i32 = arith.constant 0 : i32
    %c0_i32_0 = arith.constant 0 : i32
    return %c0_i32, %arg1 : i32, i32
  }
  func.func @transform_3(%arg0: i32, %arg1: i32) -> (i32, i32) {
    %c0_i32 = arith.constant 0 : i32
    %c0_i32_0 = arith.constant 0 : i32
    return %c0_i32, %arg1 : i32, i32
  }
  func.func @transform_4(%arg0: i32, %arg1: i32) -> (i32, i32) {
    %c0_i32 = arith.constant 0 : i32
    return %arg0, %arg1 : i32, i32
  }
}

module attributes {stable_mosaic.version = 11 : i64} {
  func.func @_dw5x5_concat_kernel(%arg0: i32, %arg1: i32, %arg2: memref<1x20x20x128xf32, #tpu.memory_space<vmem>>, %arg3: memref<25x128xf32, #tpu.memory_space<vmem>>, %arg4: memref<1x128xf32, #tpu.memory_space<vmem>>, %arg5: memref<1x128xf32, #tpu.memory_space<vmem>>, %arg6: memref<1x2x16x16x128xf32, #tpu.memory_space<vmem>>) attributes {dimension_semantics = [#tpu.dimension_semantics<parallel>, #tpu.dimension_semantics<parallel>], iteration_bounds = array<i64: 2, 1>, scalar_prefetch = 0 : i64, scratch_operands = 0 : i64, tpu.core_type = #tpu.core_type<tc>, window_params = [{transform_indices = @transform_0, window_bounds = array<i64: 1, 20, 20, 128>}, {transform_indices = @transform_1, window_bounds = array<i64: 25, 128>}, {transform_indices = @transform_2, window_bounds = array<i64: 1, 128>}, {transform_indices = @transform_3, window_bounds = array<i64: 1, 128>}, {transform_indices = @transform_4, window_bounds = array<i64: 1, 2, 16, 16, 128>}]} {
    %c0 = arith.constant 0 : index
    %c0_0 = arith.constant 0 : index
    %0 = vector.load %arg4[%c0, %c0_0] : memref<1x128xf32, #tpu.memory_space<vmem>>, vector<1x128xf32>
    %1 = vector.shape_cast %0 : vector<1x128xf32> to vector<128xf32>
    %2 = vector.shape_cast %1 : vector<128xf32> to vector<1x1x128xf32>
    %c0_1 = arith.constant 0 : index
    %c0_2 = arith.constant 0 : index
    %3 = vector.load %arg5[%c0_1, %c0_2] : memref<1x128xf32, #tpu.memory_space<vmem>>, vector<1x128xf32>
    %4 = vector.shape_cast %3 : vector<1x128xf32> to vector<128xf32>
    %5 = vector.shape_cast %4 : vector<128xf32> to vector<1x1x128xf32>
    %c0_3 = arith.constant 0 : index
    %c2 = arith.constant 2 : index
    %c2_4 = arith.constant 2 : index
    %c0_5 = arith.constant 0 : index
    %6 = vector.load %arg2[%c0_3, %c2, %c2_4, %c0_5] : memref<1x20x20x128xf32, #tpu.memory_space<vmem>>, vector<1x16x16x128xf32>
    %7 = vector.shape_cast %6 : vector<1x16x16x128xf32> to vector<16x16x128xf32>
    %c0_6 = arith.constant 0 : index
    %c0_7 = arith.constant 0 : index
    %c0_8 = arith.constant 0 : index
    %c0_9 = arith.constant 0 : index
    %c0_10 = arith.constant 0 : index
    %8 = vector.load %arg6[%c0_6, %c0_7, %c0_8, %c0_9, %c0_10] : memref<1x2x16x16x128xf32, #tpu.memory_space<vmem>>, vector<1x1x16x16x128xf32>
    %9 = vector.shape_cast %8 : vector<1x1x16x16x128xf32> to vector<16x16x128xf32>
    %10 = vector.shape_cast %7 : vector<16x16x128xf32> to vector<1x1x16x16x128xf32>
    tpu.vector_store %arg6[%c0_6, %c0_7, %c0_8, %c0_9, %c0_10], %10 {strides = array<i32>} : memref<1x2x16x16x128xf32, #tpu.memory_space<vmem>>, vector<1x1x16x16x128xf32>,
    %cst = arith.constant 0.000000e+00 : f32
    %11 = vector.broadcast %cst : f32 to vector<8x16x128xf32>
    %c0_11 = arith.constant 0 : index
    %c0_12 = arith.constant 0 : index
    %12 = vector.load %arg3[%c0_11, %c0_12] : memref<25x128xf32, #tpu.memory_space<vmem>>, vector<1x128xf32>
    %13 = vector.shape_cast %12 : vector<1x128xf32> to vector<128xf32>
    %14 = vector.shape_cast %13 : vector<128xf32> to vector<1x1x128xf32>
    %c0_13 = arith.constant 0 : index
    %c0_14 = arith.constant 0 : index
    %c0_15 = arith.constant 0 : index
    %c0_16 = arith.constant 0 : index
    %15 = vector.load %arg2[%c0_13, %c0_14, %c0_15, %c0_16] : memref<1x20x20x128xf32, #tpu.memory_space<vmem>>, vector<1x8x16x128xf32>
    %16 = vector.shape_cast %15 : vector<1x8x16x128xf32> to vector<8x16x128xf32>
    %17 = vector.broadcast %14 : vector<1x1x128xf32> to vector<8x16x128xf32>
    %18 = arith.mulf %16, %17 : vector<8x16x128xf32>
    %19 = arith.addf %11, %18 : vector<8x16x128xf32>
    %c1 = arith.constant 1 : index
    %c0_17 = arith.constant 0 : index
    %20 = vector.load %arg3[%c1, %c0_17] : memref<25x128xf32, #tpu.memory_space<vmem>>, vector<1x128xf32>
    %21 = vector.shape_cast %20 : vector<1x128xf32> to vector<128xf32>
    %22 = vector.shape_cast %21 : vector<128xf32> to vector<1x1x128xf32>
    %c0_18 = arith.constant 0 : index
    %c0_19 = arith.constant 0 : index
    %c1_20 = arith.constant 1 : index
    %c0_21 = arith.constant 0 : index
    %23 = vector.load %arg2[%c0_18, %c0_19, %c1_20, %c0_21] : memref<1x20x20x128xf32, #tpu.memory_space<vmem>>, vector<1x8x16x128xf32>
    %24 = vector.shape_cast %23 : vector<1x8x16x128xf32> to vector<8x16x128xf32>
    %25 = vector.broadcast %22 : vector<1x1x128xf32> to vector<8x16x128xf32>
    %26 = arith.mulf %24, %25 : vector<8x16x128xf32>
    %27 = arith.addf %19, %26 : vector<8x16x128xf32>
    %c2_22 = arith.constant 2 : index
    %c0_23 = arith.constant 0 : index
    %28 = vector.load %arg3[%c2_22, %c0_23] : memref<25x128xf32, #tpu.memory_space<vmem>>, vector<1x128xf32>
    %29 = vector.shape_cast %28 : vector<1x128xf32> to vector<128xf32>
    %30 = vector.shape_cast %29 : vector<128xf32> to vector<1x1x128xf32>
    %c0_24 = arith.constant 0 : index
    %c0_25 = arith.constant 0 : index
    %c2_26 = arith.constant 2 : index
    %c0_27 = arith.constant 0 : index
    %31 = vector.load %arg2[%c0_24, %c0_25, %c2_26, %c0_27] : memref<1x20x20x128xf32, #tpu.memory_space<vmem>>, vector<1x8x16x128xf32>
    %32 = vector.shape_cast %31 : vector<1x8x16x128xf32> to vector<8x16x128xf32>
    %33 = vector.broadcast %30 : vector<1x1x128xf32> to vector<8x16x128xf32>
    %34 = arith.mulf %32, %33 : vector<8x16x128xf32>
    %35 = arith.addf %27, %34 : vector<8x16x128xf32>
    %c3 = arith.constant 3 : index
    %c0_28 = arith.constant 0 : index
    %36 = vector.load %arg3[%c3, %c0_28] : memref<25x128xf32, #tpu.memory_space<vmem>>, vector<1x128xf32>
    %37 = vector.shape_cast %36 : vector<1x128xf32> to vector<128xf32>
    %38 = vector.shape_cast %37 : vector<128xf32> to vector<1x1x128xf32>
    %c0_29 = arith.constant 0 : index
    %c0_30 = arith.constant 0 : index
    %c3_31 = arith.constant 3 : index
    %c0_32 = arith.constant 0 : index
    %39 = vector.load %arg2[%c0_29, %c0_30, %c3_31, %c0_32] : memref<1x20x20x128xf32, #tpu.memory_space<vmem>>, vector<1x8x16x128xf32>
    %40 = vector.shape_cast %39 : vector<1x8x16x128xf32> to vector<8x16x128xf32>
    %41 = vector.broadcast %38 : vector<1x1x128xf32> to vector<8x16x128xf32>
    %42 = arith.mulf %40, %41 : vector<8x16x128xf32>
    %43 = arith.addf %35, %42 : vector<8x16x128xf32>
    %c4 = arith.constant 4 : index
    %c0_33 = arith.constant 0 : index
    %44 = vector.load %arg3[%c4, %c0_33] : memref<25x128xf32, #tpu.memory_space<vmem>>, vector<1x128xf32>
    %45 = vector.shape_cast %44 : vector<1x128xf32> to vector<128xf32>
    %46 = vector.shape_cast %45 : vector<128xf32> to vector<1x1x128xf32>
    %c0_34 = arith.constant 0 : index
    %c0_35 = arith.constant 0 : index
    %c4_36 = arith.constant 4 : index
    %c0_37 = arith.constant 0 : index
    %47 = vector.load %arg2[%c0_34, %c0_35, %c4_36, %c0_37] : memref<1x20x20x128xf32, #tpu.memory_space<vmem>>, vector<1x8x16x128xf32>
    %48 = vector.shape_cast %47 : vector<1x8x16x128xf32> to vector<8x16x128xf32>
    %49 = vector.broadcast %46 : vector<1x1x128xf32> to vector<8x16x128xf32>
    %50 = arith.mulf %48, %49 : vector<8x16x128xf32>
    %51 = arith.addf %43, %50 : vector<8x16x128xf32>
    %c5 = arith.constant 5 : index
    %c0_38 = arith.constant 0 : index
    %52 = vector.load %arg3[%c5, %c0_38] : memref<25x128xf32, #tpu.memory_space<vmem>>, vector<1x128xf32>
    %53 = vector.shape_cast %52 : vector<1x128xf32> to vector<128xf32>
    %54 = vector.shape_cast %53 : vector<128xf32> to vector<1x1x128xf32>
    %c0_39 = arith.constant 0 : index
    %c1_40 = arith.constant 1 : index
    %c0_41 = arith.constant 0 : index
    %c0_42 = arith.constant 0 : index
    %55 = vector.load %arg2[%c0_39, %c1_40, %c0_41, %c0_42] : memref<1x20x20x128xf32, #tpu.memory_space<vmem>>, vector<1x8x16x128xf32>
    %56 = vector.shape_cast %55 : vector<1x8x16x128xf32> to vector<8x16x128xf32>
    %57 = vector.broadcast %54 : vector<1x1x128xf32> to vector<8x16x128xf32>
    %58 = arith.mulf %56, %57 : vector<8x16x128xf32>
    %59 = arith.addf %51, %58 : vector<8x16x128xf32>
    %c6 = arith.constant 6 : index
    %c0_43 = arith.constant 0 : index
    %60 = vector.load %arg3[%c6, %c0_43] : memref<25x128xf32, #tpu.memory_space<vmem>>, vector<1x128xf32>
    %61 = vector.shape_cast %60 : vector<1x128xf32> to vector<128xf32>
    %62 = vector.shape_cast %61 : vector<128xf32> to vector<1x1x128xf32>
    %c0_44 = arith.constant 0 : index
    %c1_45 = arith.constant 1 : index
    %c1_46 = arith.constant 1 : index
    %c0_47 = arith.constant 0 : index
    %63 = vector.load %arg2[%c0_44, %c1_45, %c1_46, %c0_47] : memref<1x20x20x128xf32, #tpu.memory_space<vmem>>, vector<1x8x16x128xf32>
    %64 = vector.shape_cast %63 : vector<1x8x16x128xf32> to vector<8x16x128xf32>
    %65 = vector.broadcast %62 : vector<1x1x128xf32> to vector<8x16x128xf32>
    %66 = arith.mulf %64, %65 : vector<8x16x128xf32>
    %67 = arith.addf %59, %66 : vector<8x16x128xf32>
    %c7 = arith.constant 7 : index
    %c0_48 = arith.constant 0 : index
    %68 = vector.load %arg3[%c7, %c0_48] : memref<25x128xf32, #tpu.memory_space<vmem>>, vector<1x128xf32>
    %69 = vector.shape_cast %68 : vector<1x128xf32> to vector<128xf32>
    %70 = vector.shape_cast %69 : vector<128xf32> to vector<1x1x128xf32>
    %c0_49 = arith.constant 0 : index
    %c1_50 = arith.constant 1 : index
    %c2_51 = arith.constant 2 : index
    %c0_52 = arith.constant 0 : index
    %71 = vector.load %arg2[%c0_49, %c1_50, %c2_51, %c0_52] : memref<1x20x20x128xf32, #tpu.memory_space<vmem>>, vector<1x8x16x128xf32>
    %72 = vector.shape_cast %71 : vector<1x8x16x128xf32> to vector<8x16x128xf32>
    %73 = vector.broadcast %70 : vector<1x1x128xf32> to vector<8x16x128xf32>
    %74 = arith.mulf %72, %73 : vector<8x16x128xf32>
    %75 = arith.addf %67, %74 : vector<8x16x128xf32>
    %c8 = arith.constant 8 : index
    %c0_53 = arith.constant 0 : index
    %76 = vector.load %arg3[%c8, %c0_53] : memref<25x128xf32, #tpu.memory_space<vmem>>, vector<1x128xf32>
    %77 = vector.shape_cast %76 : vector<1x128xf32> to vector<128xf32>
    %78 = vector.shape_cast %77 : vector<128xf32> to vector<1x1x128xf32>
    %c0_54 = arith.constant 0 : index
    %c1_55 = arith.constant 1 : index
    %c3_56 = arith.constant 3 : index
    %c0_57 = arith.constant 0 : index
    %79 = vector.load %arg2[%c0_54, %c1_55, %c3_56, %c0_57] : memref<1x20x20x128xf32, #tpu.memory_space<vmem>>, vector<1x8x16x128xf32>
    %80 = vector.shape_cast %79 : vector<1x8x16x128xf32> to vector<8x16x128xf32>
    %81 = vector.broadcast %78 : vector<1x1x128xf32> to vector<8x16x128xf32>
    %82 = arith.mulf %80, %81 : vector<8x16x128xf32>
    %83 = arith.addf %75, %82 : vector<8x16x128xf32>
    %c9 = arith.constant 9 : index
    %c0_58 = arith.constant 0 : index
    %84 = vector.load %arg3[%c9, %c0_58] : memref<25x128xf32, #tpu.memory_space<vmem>>, vector<1x128xf32>
    %85 = vector.shape_cast %84 : vector<1x128xf32> to vector<128xf32>
    %86 = vector.shape_cast %85 : vector<128xf32> to vector<1x1x128xf32>
    %c0_59 = arith.constant 0 : index
    %c1_60 = arith.constant 1 : index
    %c4_61 = arith.constant 4 : index
    %c0_62 = arith.constant 0 : index
    %87 = vector.load %arg2[%c0_59, %c1_60, %c4_61, %c0_62] : memref<1x20x20x128xf32, #tpu.memory_space<vmem>>, vector<1x8x16x128xf32>
    %88 = vector.shape_cast %87 : vector<1x8x16x128xf32> to vector<8x16x128xf32>
    %89 = vector.broadcast %86 : vector<1x1x128xf32> to vector<8x16x128xf32>
    %90 = arith.mulf %88, %89 : vector<8x16x128xf32>
    %91 = arith.addf %83, %90 : vector<8x16x128xf32>
    %c10 = arith.constant 10 : index
    %c0_63 = arith.constant 0 : index
    %92 = vector.load %arg3[%c10, %c0_63] : memref<25x128xf32, #tpu.memory_space<vmem>>, vector<1x128xf32>
    %93 = vector.shape_cast %92 : vector<1x128xf32> to vector<128xf32>
    %94 = vector.shape_cast %93 : vector<128xf32> to vector<1x1x128xf32>
    %c0_64 = arith.constant 0 : index
    %c2_65 = arith.constant 2 : index
    %c0_66 = arith.constant 0 : index
    %c0_67 = arith.constant 0 : index
    %95 = vector.load %arg2[%c0_64, %c2_65, %c0_66, %c0_67] : memref<1x20x20x128xf32, #tpu.memory_space<vmem>>, vector<1x8x16x128xf32>
    %96 = vector.shape_cast %95 : vector<1x8x16x128xf32> to vector<8x16x128xf32>
    %97 = vector.broadcast %94 : vector<1x1x128xf32> to vector<8x16x128xf32>
    %98 = arith.mulf %96, %97 : vector<8x16x128xf32>
    %99 = arith.addf %91, %98 : vector<8x16x128xf32>
    %c11 = arith.constant 11 : index
    %c0_68 = arith.constant 0 : index
    %100 = vector.load %arg3[%c11, %c0_68] : memref<25x128xf32, #tpu.memory_space<vmem>>, vector<1x128xf32>
    %101 = vector.shape_cast %100 : vector<1x128xf32> to vector<128xf32>
    %102 = vector.shape_cast %101 : vector<128xf32> to vector<1x1x128xf32>
    %c0_69 = arith.constant 0 : index
    %c2_70 = arith.constant 2 : index
    %c1_71 = arith.constant 1 : index
    %c0_72 = arith.constant 0 : index
    %103 = vector.load %arg2[%c0_69, %c2_70, %c1_71, %c0_72] : memref<1x20x20x128xf32, #tpu.memory_space<vmem>>, vector<1x8x16x128xf32>
    %104 = vector.shape_cast %103 : vector<1x8x16x128xf32> to vector<8x16x128xf32>
    %105 = vector.broadcast %102 : vector<1x1x128xf32> to vector<8x16x128xf32>
    %106 = arith.mulf %104, %105 : vector<8x16x128xf32>
    %107 = arith.addf %99, %106 : vector<8x16x128xf32>
    %c12 = arith.constant 12 : index
    %c0_73 = arith.constant 0 : index
    %108 = vector.load %arg3[%c12, %c0_73] : memref<25x128xf32, #tpu.memory_space<vmem>>, vector<1x128xf32>
    %109 = vector.shape_cast %108 : vector<1x128xf32> to vector<128xf32>
    %110 = vector.shape_cast %109 : vector<128xf32> to vector<1x1x128xf32>
    %c0_74 = arith.constant 0 : index
    %c2_75 = arith.constant 2 : index
    %c2_76 = arith.constant 2 : index
    %c0_77 = arith.constant 0 : index
    %111 = vector.load %arg2[%c0_74, %c2_75, %c2_76, %c0_77] : memref<1x20x20x128xf32, #tpu.memory_space<vmem>>, vector<1x8x16x128xf32>
    %112 = vector.shape_cast %111 : vector<1x8x16x128xf32> to vector<8x16x128xf32>
    %113 = vector.broadcast %110 : vector<1x1x128xf32> to vector<8x16x128xf32>
    %114 = arith.mulf %112, %113 : vector<8x16x128xf32>
    %115 = arith.addf %107, %114 : vector<8x16x128xf32>
    %c13 = arith.constant 13 : index
    %c0_78 = arith.constant 0 : index
    %116 = vector.load %arg3[%c13, %c0_78] : memref<25x128xf32, #tpu.memory_space<vmem>>, vector<1x128xf32>
    %117 = vector.shape_cast %116 : vector<1x128xf32> to vector<128xf32>
    %118 = vector.shape_cast %117 : vector<128xf32> to vector<1x1x128xf32>
    %c0_79 = arith.constant 0 : index
    %c2_80 = arith.constant 2 : index
    %c3_81 = arith.constant 3 : index
    %c0_82 = arith.constant 0 : index
    %119 = vector.load %arg2[%c0_79, %c2_80, %c3_81, %c0_82] : memref<1x20x20x128xf32, #tpu.memory_space<vmem>>, vector<1x8x16x128xf32>
    %120 = vector.shape_cast %119 : vector<1x8x16x128xf32> to vector<8x16x128xf32>
    %121 = vector.broadcast %118 : vector<1x1x128xf32> to vector<8x16x128xf32>
    %122 = arith.mulf %120, %121 : vector<8x16x128xf32>
    %123 = arith.addf %115, %122 : vector<8x16x128xf32>
    %c14 = arith.constant 14 : index
    %c0_83 = arith.constant 0 : index
    %124 = vector.load %arg3[%c14, %c0_83] : memref<25x128xf32, #tpu.memory_space<vmem>>, vector<1x128xf32>
    %125 = vector.shape_cast %124 : vector<1x128xf32> to vector<128xf32>
    %126 = vector.shape_cast %125 : vector<128xf32> to vector<1x1x128xf32>
    %c0_84 = arith.constant 0 : index
    %c2_85 = arith.constant 2 : index
    %c4_86 = arith.constant 4 : index
    %c0_87 = arith.constant 0 : index
    %127 = vector.load %arg2[%c0_84, %c2_85, %c4_86, %c0_87] : memref<1x20x20x128xf32, #tpu.memory_space<vmem>>, vector<1x8x16x128xf32>
    %128 = vector.shape_cast %127 : vector<1x8x16x128xf32> to vector<8x16x128xf32>
    %129 = vector.broadcast %126 : vector<1x1x128xf32> to vector<8x16x128xf32>
    %130 = arith.mulf %128, %129 : vector<8x16x128xf32>
    %131 = arith.addf %123, %130 : vector<8x16x128xf32>
    %c15 = arith.constant 15 : index
    %c0_88 = arith.constant 0 : index
    %132 = vector.load %arg3[%c15, %c0_88] : memref<25x128xf32, #tpu.memory_space<vmem>>, vector<1x128xf32>
    %133 = vector.shape_cast %132 : vector<1x128xf32> to vector<128xf32>
    %134 = vector.shape_cast %133 : vector<128xf32> to vector<1x1x128xf32>
    %c0_89 = arith.constant 0 : index
    %c3_90 = arith.constant 3 : index
    %c0_91 = arith.constant 0 : index
    %c0_92 = arith.constant 0 : index
    %135 = vector.load %arg2[%c0_89, %c3_90, %c0_91, %c0_92] : memref<1x20x20x128xf32, #tpu.memory_space<vmem>>, vector<1x8x16x128xf32>
    %136 = vector.shape_cast %135 : vector<1x8x16x128xf32> to vector<8x16x128xf32>
    %137 = vector.broadcast %134 : vector<1x1x128xf32> to vector<8x16x128xf32>
    %138 = arith.mulf %136, %137 : vector<8x16x128xf32>
    %139 = arith.addf %131, %138 : vector<8x16x128xf32>
    %c16 = arith.constant 16 : index
    %c0_93 = arith.constant 0 : index
    %140 = vector.load %arg3[%c16, %c0_93] : memref<25x128xf32, #tpu.memory_space<vmem>>, vector<1x128xf32>
    %141 = vector.shape_cast %140 : vector<1x128xf32> to vector<128xf32>
    %142 = vector.shape_cast %141 : vector<128xf32> to vector<1x1x128xf32>
    %c0_94 = arith.constant 0 : index
    %c3_95 = arith.constant 3 : index
    %c1_96 = arith.constant 1 : index
    %c0_97 = arith.constant 0 : index
    %143 = vector.load %arg2[%c0_94, %c3_95, %c1_96, %c0_97] : memref<1x20x20x128xf32, #tpu.memory_space<vmem>>, vector<1x8x16x128xf32>
    %144 = vector.shape_cast %143 : vector<1x8x16x128xf32> to vector<8x16x128xf32>
    %145 = vector.broadcast %142 : vector<1x1x128xf32> to vector<8x16x128xf32>
    %146 = arith.mulf %144, %145 : vector<8x16x128xf32>
    %147 = arith.addf %139, %146 : vector<8x16x128xf32>
    %c17 = arith.constant 17 : index
    %c0_98 = arith.constant 0 : index
    %148 = vector.load %arg3[%c17, %c0_98] : memref<25x128xf32, #tpu.memory_space<vmem>>, vector<1x128xf32>
    %149 = vector.shape_cast %148 : vector<1x128xf32> to vector<128xf32>
    %150 = vector.shape_cast %149 : vector<128xf32> to vector<1x1x128xf32>
    %c0_99 = arith.constant 0 : index
    %c3_100 = arith.constant 3 : index
    %c2_101 = arith.constant 2 : index
    %c0_102 = arith.constant 0 : index
    %151 = vector.load %arg2[%c0_99, %c3_100, %c2_101, %c0_102] : memref<1x20x20x128xf32, #tpu.memory_space<vmem>>, vector<1x8x16x128xf32>
    %152 = vector.shape_cast %151 : vector<1x8x16x128xf32> to vector<8x16x128xf32>
    %153 = vector.broadcast %150 : vector<1x1x128xf32> to vector<8x16x128xf32>
    %154 = arith.mulf %152, %153 : vector<8x16x128xf32>
    %155 = arith.addf %147, %154 : vector<8x16x128xf32>
    %c18 = arith.constant 18 : index
    %c0_103 = arith.constant 0 : index
    %156 = vector.load %arg3[%c18, %c0_103] : memref<25x128xf32, #tpu.memory_space<vmem>>, vector<1x128xf32>
    %157 = vector.shape_cast %156 : vector<1x128xf32> to vector<128xf32>
    %158 = vector.shape_cast %157 : vector<128xf32> to vector<1x1x128xf32>
    %c0_104 = arith.constant 0 : index
    %c3_105 = arith.constant 3 : index
    %c3_106 = arith.constant 3 : index
    %c0_107 = arith.constant 0 : index
    %159 = vector.load %arg2[%c0_104, %c3_105, %c3_106, %c0_107] : memref<1x20x20x128xf32, #tpu.memory_space<vmem>>, vector<1x8x16x128xf32>
    %160 = vector.shape_cast %159 : vector<1x8x16x128xf32> to vector<8x16x128xf32>
    %161 = vector.broadcast %158 : vector<1x1x128xf32> to vector<8x16x128xf32>
    %162 = arith.mulf %160, %161 : vector<8x16x128xf32>
    %163 = arith.addf %155, %162 : vector<8x16x128xf32>
    %c19 = arith.constant 19 : index
    %c0_108 = arith.constant 0 : index
    %164 = vector.load %arg3[%c19, %c0_108] : memref<25x128xf32, #tpu.memory_space<vmem>>, vector<1x128xf32>
    %165 = vector.shape_cast %164 : vector<1x128xf32> to vector<128xf32>
    %166 = vector.shape_cast %165 : vector<128xf32> to vector<1x1x128xf32>
    %c0_109 = arith.constant 0 : index
    %c3_110 = arith.constant 3 : index
    %c4_111 = arith.constant 4 : index
    %c0_112 = arith.constant 0 : index
    %167 = vector.load %arg2[%c0_109, %c3_110, %c4_111, %c0_112] : memref<1x20x20x128xf32, #tpu.memory_space<vmem>>, vector<1x8x16x128xf32>
    %168 = vector.shape_cast %167 : vector<1x8x16x128xf32> to vector<8x16x128xf32>
    %169 = vector.broadcast %166 : vector<1x1x128xf32> to vector<8x16x128xf32>
    %170 = arith.mulf %168, %169 : vector<8x16x128xf32>
    %171 = arith.addf %163, %170 : vector<8x16x128xf32>
    %c20 = arith.constant 20 : index
    %c0_113 = arith.constant 0 : index
    %172 = vector.load %arg3[%c20, %c0_113] : memref<25x128xf32, #tpu.memory_space<vmem>>, vector<1x128xf32>
    %173 = vector.shape_cast %172 : vector<1x128xf32> to vector<128xf32>
    %174 = vector.shape_cast %173 : vector<128xf32> to vector<1x1x128xf32>
    %c0_114 = arith.constant 0 : index
    %c4_115 = arith.constant 4 : index
    %c0_116 = arith.constant 0 : index
    %c0_117 = arith.constant 0 : index
    %175 = vector.load %arg2[%c0_114, %c4_115, %c0_116, %c0_117] : memref<1x20x20x128xf32, #tpu.memory_space<vmem>>, vector<1x8x16x128xf32>
    %176 = vector.shape_cast %175 : vector<1x8x16x128xf32> to vector<8x16x128xf32>
    %177 = vector.broadcast %174 : vector<1x1x128xf32> to vector<8x16x128xf32>
    %178 = arith.mulf %176, %177 : vector<8x16x128xf32>
    %179 = arith.addf %171, %178 : vector<8x16x128xf32>
    %c21 = arith.constant 21 : index
    %c0_118 = arith.constant 0 : index
    %180 = vector.load %arg3[%c21, %c0_118] : memref<25x128xf32, #tpu.memory_space<vmem>>, vector<1x128xf32>
    %181 = vector.shape_cast %180 : vector<1x128xf32> to vector<128xf32>
    %182 = vector.shape_cast %181 : vector<128xf32> to vector<1x1x128xf32>
    %c0_119 = arith.constant 0 : index
    %c4_120 = arith.constant 4 : index
    %c1_121 = arith.constant 1 : index
    %c0_122 = arith.constant 0 : index
    %183 = vector.load %arg2[%c0_119, %c4_120, %c1_121, %c0_122] : memref<1x20x20x128xf32, #tpu.memory_space<vmem>>, vector<1x8x16x128xf32>
    %184 = vector.shape_cast %183 : vector<1x8x16x128xf32> to vector<8x16x128xf32>
    %185 = vector.broadcast %182 : vector<1x1x128xf32> to vector<8x16x128xf32>
    %186 = arith.mulf %184, %185 : vector<8x16x128xf32>
    %187 = arith.addf %179, %186 : vector<8x16x128xf32>
    %c22 = arith.constant 22 : index
    %c0_123 = arith.constant 0 : index
    %188 = vector.load %arg3[%c22, %c0_123] : memref<25x128xf32, #tpu.memory_space<vmem>>, vector<1x128xf32>
    %189 = vector.shape_cast %188 : vector<1x128xf32> to vector<128xf32>
    %190 = vector.shape_cast %189 : vector<128xf32> to vector<1x1x128xf32>
    %c0_124 = arith.constant 0 : index
    %c4_125 = arith.constant 4 : index
    %c2_126 = arith.constant 2 : index
    %c0_127 = arith.constant 0 : index
    %191 = vector.load %arg2[%c0_124, %c4_125, %c2_126, %c0_127] : memref<1x20x20x128xf32, #tpu.memory_space<vmem>>, vector<1x8x16x128xf32>
    %192 = vector.shape_cast %191 : vector<1x8x16x128xf32> to vector<8x16x128xf32>
    %193 = vector.broadcast %190 : vector<1x1x128xf32> to vector<8x16x128xf32>
    %194 = arith.mulf %192, %193 : vector<8x16x128xf32>
    %195 = arith.addf %187, %194 : vector<8x16x128xf32>
    %c23 = arith.constant 23 : index
    %c0_128 = arith.constant 0 : index
    %196 = vector.load %arg3[%c23, %c0_128] : memref<25x128xf32, #tpu.memory_space<vmem>>, vector<1x128xf32>
    %197 = vector.shape_cast %196 : vector<1x128xf32> to vector<128xf32>
    %198 = vector.shape_cast %197 : vector<128xf32> to vector<1x1x128xf32>
    %c0_129 = arith.constant 0 : index
    %c4_130 = arith.constant 4 : index
    %c3_131 = arith.constant 3 : index
    %c0_132 = arith.constant 0 : index
    %199 = vector.load %arg2[%c0_129, %c4_130, %c3_131, %c0_132] : memref<1x20x20x128xf32, #tpu.memory_space<vmem>>, vector<1x8x16x128xf32>
    %200 = vector.shape_cast %199 : vector<1x8x16x128xf32> to vector<8x16x128xf32>
    %201 = vector.broadcast %198 : vector<1x1x128xf32> to vector<8x16x128xf32>
    %202 = arith.mulf %200, %201 : vector<8x16x128xf32>
    %203 = arith.addf %195, %202 : vector<8x16x128xf32>
    %c24 = arith.constant 24 : index
    %c0_133 = arith.constant 0 : index
    %204 = vector.load %arg3[%c24, %c0_133] : memref<25x128xf32, #tpu.memory_space<vmem>>, vector<1x128xf32>
    %205 = vector.shape_cast %204 : vector<1x128xf32> to vector<128xf32>
    %206 = vector.shape_cast %205 : vector<128xf32> to vector<1x1x128xf32>
    %c0_134 = arith.constant 0 : index
    %c4_135 = arith.constant 4 : index
    %c4_136 = arith.constant 4 : index
    %c0_137 = arith.constant 0 : index
    %207 = vector.load %arg2[%c0_134, %c4_135, %c4_136, %c0_137] : memref<1x20x20x128xf32, #tpu.memory_space<vmem>>, vector<1x8x16x128xf32>
    %208 = vector.shape_cast %207 : vector<1x8x16x128xf32> to vector<8x16x128xf32>
    %209 = vector.broadcast %206 : vector<1x1x128xf32> to vector<8x16x128xf32>
    %210 = arith.mulf %208, %209 : vector<8x16x128xf32>
    %211 = arith.addf %203, %210 : vector<8x16x128xf32>
    %212 = vector.broadcast %2 : vector<1x1x128xf32> to vector<8x16x128xf32>
    %213 = arith.mulf %211, %212 : vector<8x16x128xf32>
    %214 = vector.broadcast %5 : vector<1x1x128xf32> to vector<8x16x128xf32>
    %215 = arith.addf %213, %214 : vector<8x16x128xf32>
    %216 = arith.negf %215 : vector<8x16x128xf32>
    %217 = math.exp %216 : vector<8x16x128xf32>
    %cst_138 = arith.constant 1.000000e+00 : f32
    %218 = vector.broadcast %cst_138 : f32 to vector<8x16x128xf32>
    %219 = arith.addf %218, %217 : vector<8x16x128xf32>
    %220 = arith.divf %218, %219 : vector<8x16x128xf32>
    %221 = arith.mulf %215, %220 : vector<8x16x128xf32>
    %c0_139 = arith.constant 0 : index
    %c1_140 = arith.constant 1 : index
    %c0_141 = arith.constant 0 : index
    %c0_142 = arith.constant 0 : index
    %c0_143 = arith.constant 0 : index
    %222 = vector.load %arg6[%c0_139, %c1_140, %c0_141, %c0_142, %c0_143] : memref<1x2x16x16x128xf32, #tpu.memory_space<vmem>>, vector<1x1x8x16x128xf32>
    %223 = vector.shape_cast %222 : vector<1x1x8x16x128xf32> to vector<8x16x128xf32>
    %224 = vector.shape_cast %221 : vector<8x16x128xf32> to vector<1x1x8x16x128xf32>
    tpu.vector_store %arg6[%c0_139, %c1_140, %c0_141, %c0_142, %c0_143], %224 {strides = array<i32>} : memref<1x2x16x16x128xf32, #tpu.memory_space<vmem>>, vector<1x1x8x16x128xf32>,
    %cst_144 = arith.constant 0.000000e+00 : f32
    %225 = vector.broadcast %cst_144 : f32 to vector<8x16x128xf32>
    %c0_145 = arith.constant 0 : index
    %c0_146 = arith.constant 0 : index
    %226 = vector.load %arg3[%c0_145, %c0_146] : memref<25x128xf32, #tpu.memory_space<vmem>>, vector<1x128xf32>
    %227 = vector.shape_cast %226 : vector<1x128xf32> to vector<128xf32>
    %228 = vector.shape_cast %227 : vector<128xf32> to vector<1x1x128xf32>
    %c0_147 = arith.constant 0 : index
    %c8_148 = arith.constant 8 : index
    %c0_149 = arith.constant 0 : index
    %c0_150 = arith.constant 0 : index
    %229 = vector.load %arg2[%c0_147, %c8_148, %c0_149, %c0_150] : memref<1x20x20x128xf32, #tpu.memory_space<vmem>>, vector<1x8x16x128xf32>
    %230 = vector.shape_cast %229 : vector<1x8x16x128xf32> to vector<8x16x128xf32>
    %231 = vector.broadcast %228 : vector<1x1x128xf32> to vector<8x16x128xf32>
    %232 = arith.mulf %230, %231 : vector<8x16x128xf32>
    %233 = arith.addf %225, %232 : vector<8x16x128xf32>
    %c1_151 = arith.constant 1 : index
    %c0_152 = arith.constant 0 : index
    %234 = vector.load %arg3[%c1_151, %c0_152] : memref<25x128xf32, #tpu.memory_space<vmem>>, vector<1x128xf32>
    %235 = vector.shape_cast %234 : vector<1x128xf32> to vector<128xf32>
    %236 = vector.shape_cast %235 : vector<128xf32> to vector<1x1x128xf32>
    %c0_153 = arith.constant 0 : index
    %c8_154 = arith.constant 8 : index
    %c1_155 = arith.constant 1 : index
    %c0_156 = arith.constant 0 : index
    %237 = vector.load %arg2[%c0_153, %c8_154, %c1_155, %c0_156] : memref<1x20x20x128xf32, #tpu.memory_space<vmem>>, vector<1x8x16x128xf32>
    %238 = vector.shape_cast %237 : vector<1x8x16x128xf32> to vector<8x16x128xf32>
    %239 = vector.broadcast %236 : vector<1x1x128xf32> to vector<8x16x128xf32>
    %240 = arith.mulf %238, %239 : vector<8x16x128xf32>
    %241 = arith.addf %233, %240 : vector<8x16x128xf32>
    %c2_157 = arith.constant 2 : index
    %c0_158 = arith.constant 0 : index
    %242 = vector.load %arg3[%c2_157, %c0_158] : memref<25x128xf32, #tpu.memory_space<vmem>>, vector<1x128xf32>
    %243 = vector.shape_cast %242 : vector<1x128xf32> to vector<128xf32>
    %244 = vector.shape_cast %243 : vector<128xf32> to vector<1x1x128xf32>
    %c0_159 = arith.constant 0 : index
    %c8_160 = arith.constant 8 : index
    %c2_161 = arith.constant 2 : index
    %c0_162 = arith.constant 0 : index
    %245 = vector.load %arg2[%c0_159, %c8_160, %c2_161, %c0_162] : memref<1x20x20x128xf32, #tpu.memory_space<vmem>>, vector<1x8x16x128xf32>
    %246 = vector.shape_cast %245 : vector<1x8x16x128xf32> to vector<8x16x128xf32>
    %247 = vector.broadcast %244 : vector<1x1x128xf32> to vector<8x16x128xf32>
    %248 = arith.mulf %246, %247 : vector<8x16x128xf32>
    %249 = arith.addf %241, %248 : vector<8x16x128xf32>
    %c3_163 = arith.constant 3 : index
    %c0_164 = arith.constant 0 : index
    %250 = vector.load %arg3[%c3_163, %c0_164] : memref<25x128xf32, #tpu.memory_space<vmem>>, vector<1x128xf32>
    %251 = vector.shape_cast %250 : vector<1x128xf32> to vector<128xf32>
    %252 = vector.shape_cast %251 : vector<128xf32> to vector<1x1x128xf32>
    %c0_165 = arith.constant 0 : index
    %c8_166 = arith.constant 8 : index
    %c3_167 = arith.constant 3 : index
    %c0_168 = arith.constant 0 : index
    %253 = vector.load %arg2[%c0_165, %c8_166, %c3_167, %c0_168] : memref<1x20x20x128xf32, #tpu.memory_space<vmem>>, vector<1x8x16x128xf32>
    %254 = vector.shape_cast %253 : vector<1x8x16x128xf32> to vector<8x16x128xf32>
    %255 = vector.broadcast %252 : vector<1x1x128xf32> to vector<8x16x128xf32>
    %256 = arith.mulf %254, %255 : vector<8x16x128xf32>
    %257 = arith.addf %249, %256 : vector<8x16x128xf32>
    %c4_169 = arith.constant 4 : index
    %c0_170 = arith.constant 0 : index
    %258 = vector.load %arg3[%c4_169, %c0_170] : memref<25x128xf32, #tpu.memory_space<vmem>>, vector<1x128xf32>
    %259 = vector.shape_cast %258 : vector<1x128xf32> to vector<128xf32>
    %260 = vector.shape_cast %259 : vector<128xf32> to vector<1x1x128xf32>
    %c0_171 = arith.constant 0 : index
    %c8_172 = arith.constant 8 : index
    %c4_173 = arith.constant 4 : index
    %c0_174 = arith.constant 0 : index
    %261 = vector.load %arg2[%c0_171, %c8_172, %c4_173, %c0_174] : memref<1x20x20x128xf32, #tpu.memory_space<vmem>>, vector<1x8x16x128xf32>
    %262 = vector.shape_cast %261 : vector<1x8x16x128xf32> to vector<8x16x128xf32>
    %263 = vector.broadcast %260 : vector<1x1x128xf32> to vector<8x16x128xf32>
    %264 = arith.mulf %262, %263 : vector<8x16x128xf32>
    %265 = arith.addf %257, %264 : vector<8x16x128xf32>
    %c5_175 = arith.constant 5 : index
    %c0_176 = arith.constant 0 : index
    %266 = vector.load %arg3[%c5_175, %c0_176] : memref<25x128xf32, #tpu.memory_space<vmem>>, vector<1x128xf32>
    %267 = vector.shape_cast %266 : vector<1x128xf32> to vector<128xf32>
    %268 = vector.shape_cast %267 : vector<128xf32> to vector<1x1x128xf32>
    %c0_177 = arith.constant 0 : index
    %c9_178 = arith.constant 9 : index
    %c0_179 = arith.constant 0 : index
    %c0_180 = arith.constant 0 : index
    %269 = vector.load %arg2[%c0_177, %c9_178, %c0_179, %c0_180] : memref<1x20x20x128xf32, #tpu.memory_space<vmem>>, vector<1x8x16x128xf32>
    %270 = vector.shape_cast %269 : vector<1x8x16x128xf32> to vector<8x16x128xf32>
    %271 = vector.broadcast %268 : vector<1x1x128xf32> to vector<8x16x128xf32>
    %272 = arith.mulf %270, %271 : vector<8x16x128xf32>
    %273 = arith.addf %265, %272 : vector<8x16x128xf32>
    %c6_181 = arith.constant 6 : index
    %c0_182 = arith.constant 0 : index
    %274 = vector.load %arg3[%c6_181, %c0_182] : memref<25x128xf32, #tpu.memory_space<vmem>>, vector<1x128xf32>
    %275 = vector.shape_cast %274 : vector<1x128xf32> to vector<128xf32>
    %276 = vector.shape_cast %275 : vector<128xf32> to vector<1x1x128xf32>
    %c0_183 = arith.constant 0 : index
    %c9_184 = arith.constant 9 : index
    %c1_185 = arith.constant 1 : index
    %c0_186 = arith.constant 0 : index
    %277 = vector.load %arg2[%c0_183, %c9_184, %c1_185, %c0_186] : memref<1x20x20x128xf32, #tpu.memory_space<vmem>>, vector<1x8x16x128xf32>
    %278 = vector.shape_cast %277 : vector<1x8x16x128xf32> to vector<8x16x128xf32>
    %279 = vector.broadcast %276 : vector<1x1x128xf32> to vector<8x16x128xf32>
    %280 = arith.mulf %278, %279 : vector<8x16x128xf32>
    %281 = arith.addf %273, %280 : vector<8x16x128xf32>
    %c7_187 = arith.constant 7 : index
    %c0_188 = arith.constant 0 : index
    %282 = vector.load %arg3[%c7_187, %c0_188] : memref<25x128xf32, #tpu.memory_space<vmem>>, vector<1x128xf32>
    %283 = vector.shape_cast %282 : vector<1x128xf32> to vector<128xf32>
    %284 = vector.shape_cast %283 : vector<128xf32> to vector<1x1x128xf32>
    %c0_189 = arith.constant 0 : index
    %c9_190 = arith.constant 9 : index
    %c2_191 = arith.constant 2 : index
    %c0_192 = arith.constant 0 : index
    %285 = vector.load %arg2[%c0_189, %c9_190, %c2_191, %c0_192] : memref<1x20x20x128xf32, #tpu.memory_space<vmem>>, vector<1x8x16x128xf32>
    %286 = vector.shape_cast %285 : vector<1x8x16x128xf32> to vector<8x16x128xf32>
    %287 = vector.broadcast %284 : vector<1x1x128xf32> to vector<8x16x128xf32>
    %288 = arith.mulf %286, %287 : vector<8x16x128xf32>
    %289 = arith.addf %281, %288 : vector<8x16x128xf32>
    %c8_193 = arith.constant 8 : index
    %c0_194 = arith.constant 0 : index
    %290 = vector.load %arg3[%c8_193, %c0_194] : memref<25x128xf32, #tpu.memory_space<vmem>>, vector<1x128xf32>
    %291 = vector.shape_cast %290 : vector<1x128xf32> to vector<128xf32>
    %292 = vector.shape_cast %291 : vector<128xf32> to vector<1x1x128xf32>
    %c0_195 = arith.constant 0 : index
    %c9_196 = arith.constant 9 : index
    %c3_197 = arith.constant 3 : index
    %c0_198 = arith.constant 0 : index
    %293 = vector.load %arg2[%c0_195, %c9_196, %c3_197, %c0_198] : memref<1x20x20x128xf32, #tpu.memory_space<vmem>>, vector<1x8x16x128xf32>
    %294 = vector.shape_cast %293 : vector<1x8x16x128xf32> to vector<8x16x128xf32>
    %295 = vector.broadcast %292 : vector<1x1x128xf32> to vector<8x16x128xf32>
    %296 = arith.mulf %294, %295 : vector<8x16x128xf32>
    %297 = arith.addf %289, %296 : vector<8x16x128xf32>
    %c9_199 = arith.constant 9 : index
    %c0_200 = arith.constant 0 : index
    %298 = vector.load %arg3[%c9_199, %c0_200] : memref<25x128xf32, #tpu.memory_space<vmem>>, vector<1x128xf32>
    %299 = vector.shape_cast %298 : vector<1x128xf32> to vector<128xf32>
    %300 = vector.shape_cast %299 : vector<128xf32> to vector<1x1x128xf32>
    %c0_201 = arith.constant 0 : index
    %c9_202 = arith.constant 9 : index
    %c4_203 = arith.constant 4 : index
    %c0_204 = arith.constant 0 : index
    %301 = vector.load %arg2[%c0_201, %c9_202, %c4_203, %c0_204] : memref<1x20x20x128xf32, #tpu.memory_space<vmem>>, vector<1x8x16x128xf32>
    %302 = vector.shape_cast %301 : vector<1x8x16x128xf32> to vector<8x16x128xf32>
    %303 = vector.broadcast %300 : vector<1x1x128xf32> to vector<8x16x128xf32>
    %304 = arith.mulf %302, %303 : vector<8x16x128xf32>
    %305 = arith.addf %297, %304 : vector<8x16x128xf32>
    %c10_205 = arith.constant 10 : index
    %c0_206 = arith.constant 0 : index
    %306 = vector.load %arg3[%c10_205, %c0_206] : memref<25x128xf32, #tpu.memory_space<vmem>>, vector<1x128xf32>
    %307 = vector.shape_cast %306 : vector<1x128xf32> to vector<128xf32>
    %308 = vector.shape_cast %307 : vector<128xf32> to vector<1x1x128xf32>
    %c0_207 = arith.constant 0 : index
    %c10_208 = arith.constant 10 : index
    %c0_209 = arith.constant 0 : index
    %c0_210 = arith.constant 0 : index
    %309 = vector.load %arg2[%c0_207, %c10_208, %c0_209, %c0_210] : memref<1x20x20x128xf32, #tpu.memory_space<vmem>>, vector<1x8x16x128xf32>
    %310 = vector.shape_cast %309 : vector<1x8x16x128xf32> to vector<8x16x128xf32>
    %311 = vector.broadcast %308 : vector<1x1x128xf32> to vector<8x16x128xf32>
    %312 = arith.mulf %310, %311 : vector<8x16x128xf32>
    %313 = arith.addf %305, %312 : vector<8x16x128xf32>
    %c11_211 = arith.constant 11 : index
    %c0_212 = arith.constant 0 : index
    %314 = vector.load %arg3[%c11_211, %c0_212] : memref<25x128xf32, #tpu.memory_space<vmem>>, vector<1x128xf32>
    %315 = vector.shape_cast %314 : vector<1x128xf32> to vector<128xf32>
    %316 = vector.shape_cast %315 : vector<128xf32> to vector<1x1x128xf32>
    %c0_213 = arith.constant 0 : index
    %c10_214 = arith.constant 10 : index
    %c1_215 = arith.constant 1 : index
    %c0_216 = arith.constant 0 : index
    %317 = vector.load %arg2[%c0_213, %c10_214, %c1_215, %c0_216] : memref<1x20x20x128xf32, #tpu.memory_space<vmem>>, vector<1x8x16x128xf32>
    %318 = vector.shape_cast %317 : vector<1x8x16x128xf32> to vector<8x16x128xf32>
    %319 = vector.broadcast %316 : vector<1x1x128xf32> to vector<8x16x128xf32>
    %320 = arith.mulf %318, %319 : vector<8x16x128xf32>
    %321 = arith.addf %313, %320 : vector<8x16x128xf32>
    %c12_217 = arith.constant 12 : index
    %c0_218 = arith.constant 0 : index
    %322 = vector.load %arg3[%c12_217, %c0_218] : memref<25x128xf32, #tpu.memory_space<vmem>>, vector<1x128xf32>
    %323 = vector.shape_cast %322 : vector<1x128xf32> to vector<128xf32>
    %324 = vector.shape_cast %323 : vector<128xf32> to vector<1x1x128xf32>
    %c0_219 = arith.constant 0 : index
    %c10_220 = arith.constant 10 : index
    %c2_221 = arith.constant 2 : index
    %c0_222 = arith.constant 0 : index
    %325 = vector.load %arg2[%c0_219, %c10_220, %c2_221, %c0_222] : memref<1x20x20x128xf32, #tpu.memory_space<vmem>>, vector<1x8x16x128xf32>
    %326 = vector.shape_cast %325 : vector<1x8x16x128xf32> to vector<8x16x128xf32>
    %327 = vector.broadcast %324 : vector<1x1x128xf32> to vector<8x16x128xf32>
    %328 = arith.mulf %326, %327 : vector<8x16x128xf32>
    %329 = arith.addf %321, %328 : vector<8x16x128xf32>
    %c13_223 = arith.constant 13 : index
    %c0_224 = arith.constant 0 : index
    %330 = vector.load %arg3[%c13_223, %c0_224] : memref<25x128xf32, #tpu.memory_space<vmem>>, vector<1x128xf32>
    %331 = vector.shape_cast %330 : vector<1x128xf32> to vector<128xf32>
    %332 = vector.shape_cast %331 : vector<128xf32> to vector<1x1x128xf32>
    %c0_225 = arith.constant 0 : index
    %c10_226 = arith.constant 10 : index
    %c3_227 = arith.constant 3 : index
    %c0_228 = arith.constant 0 : index
    %333 = vector.load %arg2[%c0_225, %c10_226, %c3_227, %c0_228] : memref<1x20x20x128xf32, #tpu.memory_space<vmem>>, vector<1x8x16x128xf32>
    %334 = vector.shape_cast %333 : vector<1x8x16x128xf32> to vector<8x16x128xf32>
    %335 = vector.broadcast %332 : vector<1x1x128xf32> to vector<8x16x128xf32>
    %336 = arith.mulf %334, %335 : vector<8x16x128xf32>
    %337 = arith.addf %329, %336 : vector<8x16x128xf32>
    %c14_229 = arith.constant 14 : index
    %c0_230 = arith.constant 0 : index
    %338 = vector.load %arg3[%c14_229, %c0_230] : memref<25x128xf32, #tpu.memory_space<vmem>>, vector<1x128xf32>
    %339 = vector.shape_cast %338 : vector<1x128xf32> to vector<128xf32>
    %340 = vector.shape_cast %339 : vector<128xf32> to vector<1x1x128xf32>
    %c0_231 = arith.constant 0 : index
    %c10_232 = arith.constant 10 : index
    %c4_233 = arith.constant 4 : index
    %c0_234 = arith.constant 0 : index
    %341 = vector.load %arg2[%c0_231, %c10_232, %c4_233, %c0_234] : memref<1x20x20x128xf32, #tpu.memory_space<vmem>>, vector<1x8x16x128xf32>
    %342 = vector.shape_cast %341 : vector<1x8x16x128xf32> to vector<8x16x128xf32>
    %343 = vector.broadcast %340 : vector<1x1x128xf32> to vector<8x16x128xf32>
    %344 = arith.mulf %342, %343 : vector<8x16x128xf32>
    %345 = arith.addf %337, %344 : vector<8x16x128xf32>
    %c15_235 = arith.constant 15 : index
    %c0_236 = arith.constant 0 : index
    %346 = vector.load %arg3[%c15_235, %c0_236] : memref<25x128xf32, #tpu.memory_space<vmem>>, vector<1x128xf32>
    %347 = vector.shape_cast %346 : vector<1x128xf32> to vector<128xf32>
    %348 = vector.shape_cast %347 : vector<128xf32> to vector<1x1x128xf32>
    %c0_237 = arith.constant 0 : index
    %c11_238 = arith.constant 11 : index
    %c0_239 = arith.constant 0 : index
    %c0_240 = arith.constant 0 : index
    %349 = vector.load %arg2[%c0_237, %c11_238, %c0_239, %c0_240] : memref<1x20x20x128xf32, #tpu.memory_space<vmem>>, vector<1x8x16x128xf32>
    %350 = vector.shape_cast %349 : vector<1x8x16x128xf32> to vector<8x16x128xf32>
    %351 = vector.broadcast %348 : vector<1x1x128xf32> to vector<8x16x128xf32>
    %352 = arith.mulf %350, %351 : vector<8x16x128xf32>
    %353 = arith.addf %345, %352 : vector<8x16x128xf32>
    %c16_241 = arith.constant 16 : index
    %c0_242 = arith.constant 0 : index
    %354 = vector.load %arg3[%c16_241, %c0_242] : memref<25x128xf32, #tpu.memory_space<vmem>>, vector<1x128xf32>
    %355 = vector.shape_cast %354 : vector<1x128xf32> to vector<128xf32>
    %356 = vector.shape_cast %355 : vector<128xf32> to vector<1x1x128xf32>
    %c0_243 = arith.constant 0 : index
    %c11_244 = arith.constant 11 : index
    %c1_245 = arith.constant 1 : index
    %c0_246 = arith.constant 0 : index
    %357 = vector.load %arg2[%c0_243, %c11_244, %c1_245, %c0_246] : memref<1x20x20x128xf32, #tpu.memory_space<vmem>>, vector<1x8x16x128xf32>
    %358 = vector.shape_cast %357 : vector<1x8x16x128xf32> to vector<8x16x128xf32>
    %359 = vector.broadcast %356 : vector<1x1x128xf32> to vector<8x16x128xf32>
    %360 = arith.mulf %358, %359 : vector<8x16x128xf32>
    %361 = arith.addf %353, %360 : vector<8x16x128xf32>
    %c17_247 = arith.constant 17 : index
    %c0_248 = arith.constant 0 : index
    %362 = vector.load %arg3[%c17_247, %c0_248] : memref<25x128xf32, #tpu.memory_space<vmem>>, vector<1x128xf32>
    %363 = vector.shape_cast %362 : vector<1x128xf32> to vector<128xf32>
    %364 = vector.shape_cast %363 : vector<128xf32> to vector<1x1x128xf32>
    %c0_249 = arith.constant 0 : index
    %c11_250 = arith.constant 11 : index
    %c2_251 = arith.constant 2 : index
    %c0_252 = arith.constant 0 : index
    %365 = vector.load %arg2[%c0_249, %c11_250, %c2_251, %c0_252] : memref<1x20x20x128xf32, #tpu.memory_space<vmem>>, vector<1x8x16x128xf32>
    %366 = vector.shape_cast %365 : vector<1x8x16x128xf32> to vector<8x16x128xf32>
    %367 = vector.broadcast %364 : vector<1x1x128xf32> to vector<8x16x128xf32>
    %368 = arith.mulf %366, %367 : vector<8x16x128xf32>
    %369 = arith.addf %361, %368 : vector<8x16x128xf32>
    %c18_253 = arith.constant 18 : index
    %c0_254 = arith.constant 0 : index
    %370 = vector.load %arg3[%c18_253, %c0_254] : memref<25x128xf32, #tpu.memory_space<vmem>>, vector<1x128xf32>
    %371 = vector.shape_cast %370 : vector<1x128xf32> to vector<128xf32>
    %372 = vector.shape_cast %371 : vector<128xf32> to vector<1x1x128xf32>
    %c0_255 = arith.constant 0 : index
    %c11_256 = arith.constant 11 : index
    %c3_257 = arith.constant 3 : index
    %c0_258 = arith.constant 0 : index
    %373 = vector.load %arg2[%c0_255, %c11_256, %c3_257, %c0_258] : memref<1x20x20x128xf32, #tpu.memory_space<vmem>>, vector<1x8x16x128xf32>
    %374 = vector.shape_cast %373 : vector<1x8x16x128xf32> to vector<8x16x128xf32>
    %375 = vector.broadcast %372 : vector<1x1x128xf32> to vector<8x16x128xf32>
    %376 = arith.mulf %374, %375 : vector<8x16x128xf32>
    %377 = arith.addf %369, %376 : vector<8x16x128xf32>
    %c19_259 = arith.constant 19 : index
    %c0_260 = arith.constant 0 : index
    %378 = vector.load %arg3[%c19_259, %c0_260] : memref<25x128xf32, #tpu.memory_space<vmem>>, vector<1x128xf32>
    %379 = vector.shape_cast %378 : vector<1x128xf32> to vector<128xf32>
    %380 = vector.shape_cast %379 : vector<128xf32> to vector<1x1x128xf32>
    %c0_261 = arith.constant 0 : index
    %c11_262 = arith.constant 11 : index
    %c4_263 = arith.constant 4 : index
    %c0_264 = arith.constant 0 : index
    %381 = vector.load %arg2[%c0_261, %c11_262, %c4_263, %c0_264] : memref<1x20x20x128xf32, #tpu.memory_space<vmem>>, vector<1x8x16x128xf32>
    %382 = vector.shape_cast %381 : vector<1x8x16x128xf32> to vector<8x16x128xf32>
    %383 = vector.broadcast %380 : vector<1x1x128xf32> to vector<8x16x128xf32>
    %384 = arith.mulf %382, %383 : vector<8x16x128xf32>
    %385 = arith.addf %377, %384 : vector<8x16x128xf32>
    %c20_265 = arith.constant 20 : index
    %c0_266 = arith.constant 0 : index
    %386 = vector.load %arg3[%c20_265, %c0_266] : memref<25x128xf32, #tpu.memory_space<vmem>>, vector<1x128xf32>
    %387 = vector.shape_cast %386 : vector<1x128xf32> to vector<128xf32>
    %388 = vector.shape_cast %387 : vector<128xf32> to vector<1x1x128xf32>
    %c0_267 = arith.constant 0 : index
    %c12_268 = arith.constant 12 : index
    %c0_269 = arith.constant 0 : index
    %c0_270 = arith.constant 0 : index
    %389 = vector.load %arg2[%c0_267, %c12_268, %c0_269, %c0_270] : memref<1x20x20x128xf32, #tpu.memory_space<vmem>>, vector<1x8x16x128xf32>
    %390 = vector.shape_cast %389 : vector<1x8x16x128xf32> to vector<8x16x128xf32>
    %391 = vector.broadcast %388 : vector<1x1x128xf32> to vector<8x16x128xf32>
    %392 = arith.mulf %390, %391 : vector<8x16x128xf32>
    %393 = arith.addf %385, %392 : vector<8x16x128xf32>
    %c21_271 = arith.constant 21 : index
    %c0_272 = arith.constant 0 : index
    %394 = vector.load %arg3[%c21_271, %c0_272] : memref<25x128xf32, #tpu.memory_space<vmem>>, vector<1x128xf32>
    %395 = vector.shape_cast %394 : vector<1x128xf32> to vector<128xf32>
    %396 = vector.shape_cast %395 : vector<128xf32> to vector<1x1x128xf32>
    %c0_273 = arith.constant 0 : index
    %c12_274 = arith.constant 12 : index
    %c1_275 = arith.constant 1 : index
    %c0_276 = arith.constant 0 : index
    %397 = vector.load %arg2[%c0_273, %c12_274, %c1_275, %c0_276] : memref<1x20x20x128xf32, #tpu.memory_space<vmem>>, vector<1x8x16x128xf32>
    %398 = vector.shape_cast %397 : vector<1x8x16x128xf32> to vector<8x16x128xf32>
    %399 = vector.broadcast %396 : vector<1x1x128xf32> to vector<8x16x128xf32>
    %400 = arith.mulf %398, %399 : vector<8x16x128xf32>
    %401 = arith.addf %393, %400 : vector<8x16x128xf32>
    %c22_277 = arith.constant 22 : index
    %c0_278 = arith.constant 0 : index
    %402 = vector.load %arg3[%c22_277, %c0_278] : memref<25x128xf32, #tpu.memory_space<vmem>>, vector<1x128xf32>
    %403 = vector.shape_cast %402 : vector<1x128xf32> to vector<128xf32>
    %404 = vector.shape_cast %403 : vector<128xf32> to vector<1x1x128xf32>
    %c0_279 = arith.constant 0 : index
    %c12_280 = arith.constant 12 : index
    %c2_281 = arith.constant 2 : index
    %c0_282 = arith.constant 0 : index
    %405 = vector.load %arg2[%c0_279, %c12_280, %c2_281, %c0_282] : memref<1x20x20x128xf32, #tpu.memory_space<vmem>>, vector<1x8x16x128xf32>
    %406 = vector.shape_cast %405 : vector<1x8x16x128xf32> to vector<8x16x128xf32>
    %407 = vector.broadcast %404 : vector<1x1x128xf32> to vector<8x16x128xf32>
    %408 = arith.mulf %406, %407 : vector<8x16x128xf32>
    %409 = arith.addf %401, %408 : vector<8x16x128xf32>
    %c23_283 = arith.constant 23 : index
    %c0_284 = arith.constant 0 : index
    %410 = vector.load %arg3[%c23_283, %c0_284] : memref<25x128xf32, #tpu.memory_space<vmem>>, vector<1x128xf32>
    %411 = vector.shape_cast %410 : vector<1x128xf32> to vector<128xf32>
    %412 = vector.shape_cast %411 : vector<128xf32> to vector<1x1x128xf32>
    %c0_285 = arith.constant 0 : index
    %c12_286 = arith.constant 12 : index
    %c3_287 = arith.constant 3 : index
    %c0_288 = arith.constant 0 : index
    %413 = vector.load %arg2[%c0_285, %c12_286, %c3_287, %c0_288] : memref<1x20x20x128xf32, #tpu.memory_space<vmem>>, vector<1x8x16x128xf32>
    %414 = vector.shape_cast %413 : vector<1x8x16x128xf32> to vector<8x16x128xf32>
    %415 = vector.broadcast %412 : vector<1x1x128xf32> to vector<8x16x128xf32>
    %416 = arith.mulf %414, %415 : vector<8x16x128xf32>
    %417 = arith.addf %409, %416 : vector<8x16x128xf32>
    %c24_289 = arith.constant 24 : index
    %c0_290 = arith.constant 0 : index
    %418 = vector.load %arg3[%c24_289, %c0_290] : memref<25x128xf32, #tpu.memory_space<vmem>>, vector<1x128xf32>
    %419 = vector.shape_cast %418 : vector<1x128xf32> to vector<128xf32>
    %420 = vector.shape_cast %419 : vector<128xf32> to vector<1x1x128xf32>
    %c0_291 = arith.constant 0 : index
    %c12_292 = arith.constant 12 : index
    %c4_293 = arith.constant 4 : index
    %c0_294 = arith.constant 0 : index
    %421 = vector.load %arg2[%c0_291, %c12_292, %c4_293, %c0_294] : memref<1x20x20x128xf32, #tpu.memory_space<vmem>>, vector<1x8x16x128xf32>
    %422 = vector.shape_cast %421 : vector<1x8x16x128xf32> to vector<8x16x128xf32>
    %423 = vector.broadcast %420 : vector<1x1x128xf32> to vector<8x16x128xf32>
    %424 = arith.mulf %422, %423 : vector<8x16x128xf32>
    %425 = arith.addf %417, %424 : vector<8x16x128xf32>
    %426 = vector.broadcast %2 : vector<1x1x128xf32> to vector<8x16x128xf32>
    %427 = arith.mulf %425, %426 : vector<8x16x128xf32>
    %428 = vector.broadcast %5 : vector<1x1x128xf32> to vector<8x16x128xf32>
    %429 = arith.addf %427, %428 : vector<8x16x128xf32>
    %430 = arith.negf %429 : vector<8x16x128xf32>
    %431 = math.exp %430 : vector<8x16x128xf32>
    %cst_295 = arith.constant 1.000000e+00 : f32
    %432 = vector.broadcast %cst_295 : f32 to vector<8x16x128xf32>
    %433 = arith.addf %432, %431 : vector<8x16x128xf32>
    %434 = arith.divf %432, %433 : vector<8x16x128xf32>
    %435 = arith.mulf %429, %434 : vector<8x16x128xf32>
    %c0_296 = arith.constant 0 : index
    %c1_297 = arith.constant 1 : index
    %c8_298 = arith.constant 8 : index
    %c0_299 = arith.constant 0 : index
    %c0_300 = arith.constant 0 : index
    %436 = vector.load %arg6[%c0_296, %c1_297, %c8_298, %c0_299, %c0_300] : memref<1x2x16x16x128xf32, #tpu.memory_space<vmem>>, vector<1x1x8x16x128xf32>
    %437 = vector.shape_cast %436 : vector<1x1x8x16x128xf32> to vector<8x16x128xf32>
    %438 = vector.shape_cast %435 : vector<8x16x128xf32> to vector<1x1x8x16x128xf32>
    tpu.vector_store %arg6[%c0_296, %c1_297, %c8_298, %c0_299, %c0_300], %438 {strides = array<i32>} : memref<1x2x16x16x128xf32, #tpu.memory_space<vmem>>, vector<1x1x8x16x128xf32>,
    return
  }
  func.func @transform_0(%arg0: i32, %arg1: i32) -> (i32, i32, i32, i32) {
    %c0_i32 = arith.constant 0 : i32
    %c0_i32_0 = arith.constant 0 : i32
    %c0_i32_1 = arith.constant 0 : i32
    return %arg0, %c0_i32, %c0_i32_0, %arg1 : i32, i32, i32, i32
  }
  func.func @transform_1(%arg0: i32, %arg1: i32) -> (i32, i32) {
    %c0_i32 = arith.constant 0 : i32
    %c0_i32_0 = arith.constant 0 : i32
    return %c0_i32, %arg1 : i32, i32
  }
  func.func @transform_2(%arg0: i32, %arg1: i32) -> (i32, i32) {
    %c0_i32 = arith.constant 0 : i32
    %c0_i32_0 = arith.constant 0 : i32
    return %c0_i32, %arg1 : i32, i32
  }
  func.func @transform_3(%arg0: i32, %arg1: i32) -> (i32, i32) {
    %c0_i32 = arith.constant 0 : i32
    %c0_i32_0 = arith.constant 0 : i32
    return %c0_i32, %arg1 : i32, i32
  }
  func.func @transform_4(%arg0: i32, %arg1: i32) -> (i32, i32, i32, i32, i32) {
    %c0_i32 = arith.constant 0 : i32
    %c0_i32_0 = arith.constant 0 : i32
    %c0_i32_1 = arith.constant 0 : i32
    %c0_i32_2 = arith.constant 0 : i32
    return %arg0, %c0_i32, %c0_i32_0, %c0_i32_1, %arg1 : i32, i32, i32, i32, i32
  }
}

</mosaic_0001>

<llo_original>
// kernel: ghostconv_forward.2
$region0: #{ghostconv_forward.2}
  #allocation0 [shape = 'u32[]', space=smem, size = 0x4, offset = 0x4, fixed_abs, tag = 'smem constant byte address 0x4 - core index']
  #allocation1 [shape = 'u32[144,128]{1,0:T(1,128)}', space=vmem, size = 0x12000, scoped, tag = 'internal scratch']
  %s0 = inlined_call_operand.vmem [shape: bf16[512,128], index: 0, kind: input, shape index: {}]
  %s1 = inlined_call_operand.vmem [shape: bf16[128,128], index: 1, kind: input, shape index: {}]
  %s2 = inlined_call_operand.vmem [shape: f32[1,128], index: 2, kind: input, shape index: {}]
  %s3 = inlined_call_operand.vmem [shape: f32[1,128], index: 3, kind: input, shape index: {}]
  %s4 = inlined_call_operand.vmem [shape: f32[512,128], index: 4, kind: output, shape index: {}]
  %s5 = sld [smem:[#allocation0]]
  $region49: #{ghostconv_forward.2} parent=0
    _
  %s7 = ssub.s32 1, %s5
  %s8 = scalar_select 0, %s7, %s5
  loop: start=0, step=1, limit=4
  $region2: #{ghostconv_forward.2} parent=0 // loop_pre_header
    _
  $region3: #{ghostconv_forward.2} parent=0 // loop_header
    %s10 = sphi 0, %s14
    %p11 = scmp.ge.s32.totalorder %s10, 4
    %s17 = sphi 0, %s29
    %s18 = sphi 0, %s25
    %s19 = sphi 0, %s17
    %s20 = sphi 0, %s18
    %s21 = sphi 0, %s19
    %s22 = sphi 0, %s20
    %s32 = sphi 0, %s34
    %s35 = sphi 0, %s32
    %s36 = sphi 0, %s35
    %s52 = sphi 0, %s36
    %s58 = sphi 0, %s60
    %s61 = sphi 0, %s58
    %s62 = sphi 0, %s61
    %s78 = sphi 0, %s62
    %s84 = sphi 0, %s86
    %s87 = sphi 0, %s84
    %s88 = sphi 0, %s87
    %s104 = sphi 0, %s88
    %s110 = sphi 0, %s112
    %s113 = sphi 0, %s110
    %s114 = sphi 0, %s113
    %s130 = sphi 0, %s114
    %s138 = sphi 0, %s140
    %s141 = sphi 0, %s138
    %s142 = sphi 0, %s141
    %s158 = sphi 0, %s142
  $region4: #{ghostconv_forward.2} parent=0 // loop_header_branch
    %13 = sbr.rel (%p11) target = $region8
  $region5: #{ghostconv_forward.2} parent=0 // loop_body
    %s15 = ssub.s32 %s10, 1
    %s16 = ssub.s32 %s10, 2
    %s23 = sadd.s32 1, %s18
    %p24 = scmp.ge.s32.totalorder %s23, 1
    %s25 = scalar_select %p24, 0, %s23
    %s26 = sadd.s32 1, %s17
    %s27 = scalar_select %p24, %s26, %s17
    %p28 = scmp.ge.s32.totalorder %s27, 2
    %s29 = scalar_select %p28, 0, %s27
    %s30 = ssub.s32 %s17, %s29
    %p31 = scmp.eq.s32.totalorder %s30, 0
    %s33 = sadd.s32 %s32, 1
    %s34 = scalar_select %p31, %s32, %s33
    %p37 = pneg %p31
    %p38 = scmp.eq.s32.totalorder %s10, 1
    %p39 = por %p37, %p38
    %p40 = scmp.ne.s32.totalorder %s32, %s35
    %p41 = scmp.eq.s32.totalorder %s10, 0
    %p42 = por %p40, %p41
    %p43 = scmp.ne.s32.totalorder %s32, %s35
    %p44 = scmp.eq.s32.totalorder %s15, 1
    %p45 = por %p43, %p44
    %p46 = scmp.ne.s32.totalorder %s35, %s36
    %p47 = scmp.eq.s32.totalorder %s15, 0
    %p48 = por %p46, %p47
    %p49 = scmp.ne.s32.totalorder %s35, %s36
    %p50 = scmp.eq.s32.totalorder %s16, 1
    %p51 = por %p49, %p50
    %p53 = scmp.ne.s32.totalorder %s36, %s52
    %p54 = scmp.eq.s32.totalorder %s16, 0
    %p55 = por %p53, %p54
    %s56 = ssub.s32 %s18, %s25
    %p57 = scmp.eq.s32.totalorder %s56, 0
    %s59 = sadd.s32 %s58, 1
    %s60 = scalar_select %p57, %s58, %s59
    %p63 = pneg %p57
    %p64 = scmp.eq.s32.totalorder %s10, 1
    %p65 = por %p63, %p64
    %p66 = scmp.ne.s32.totalorder %s58, %s61
    %p67 = scmp.eq.s32.totalorder %s10, 0
    %p68 = por %p66, %p67
    %p69 = scmp.ne.s32.totalorder %s58, %s61
    %p70 = scmp.eq.s32.totalorder %s15, 1
    %p71 = por %p69, %p70
    %p72 = scmp.ne.s32.totalorder %s61, %s62
    %p73 = scmp.eq.s32.totalorder %s15, 0
    %p74 = por %p72, %p73
    %p75 = scmp.ne.s32.totalorder %s61, %s62
    %p76 = scmp.eq.s32.totalorder %s16, 1
    %p77 = por %p75, %p76
    %p79 = scmp.ne.s32.totalorder %s62, %s78
    %p80 = scmp.eq.s32.totalorder %s16, 0
    %p81 = por %p79, %p80
    %s82 = ssub.s32 %s18, %s25
    %p83 = scmp.eq.s32.totalorder %s82, 0
    %s85 = sadd.s32 %s84, 1
    %s86 = scalar_select %p83, %s84, %s85
    %p89 = pneg %p83
    %p90 = scmp.eq.s32.totalorder %s10, 1
    %p91 = por %p89, %p90
    %p92 = scmp.ne.s32.totalorder %s84, %s87
    %p93 = scmp.eq.s32.totalorder %s10, 0
    %p94 = por %p92, %p93
    %p95 = scmp.ne.s32.totalorder %s84, %s87
    %p96 = scmp.eq.s32.totalorder %s15, 1
    %p97 = por %p95, %p96
    %p98 = scmp.ne.s32.totalorder %s87, %s88
    %p99 = scmp.eq.s32.totalorder %s15, 0
    %p100 = por %p98, %p99
    %p101 = scmp.ne.s32.totalorder %s87, %s88
    %p102 = scmp.eq.s32.totalorder %s16, 1
    %p103 = por %p101, %p102
    %p105 = scmp.ne.s32.totalorder %s88, %s104
    %p106 = scmp.eq.s32.totalorder %s16, 0
    %p107 = por %p105, %p106
    %s108 = ssub.s32 %s18, %s25
    %p109 = scmp.eq.s32.totalorder %s108, 0
    %s111 = sadd.s32 %s110, 1
    %s112 = scalar_select %p109, %s110, %s111
    %p115 = pneg %p109
    %p116 = scmp.eq.s32.totalorder %s10, 1
    %p117 = por %p115, %p116
    %p118 = scmp.ne.s32.totalorder %s110, %s113
    %p119 = scmp.eq.s32.totalorder %s10, 0
    %p120 = por %p118, %p119
    %p121 = scmp.ne.s32.totalorder %s110, %s113
    %p122 = scmp.eq.s32.totalorder %s15, 1
    %p123 = por %p121, %p122
    %p124 = scmp.ne.s32.totalorder %s113, %s114
    %p125 = scmp.eq.s32.totalorder %s15, 0
    %p126 = por %p124, %p125
    %p127 = scmp.ne.s32.totalorder %s113, %s114
    %p128 = scmp.eq.s32.totalorder %s16, 1
    %p129 = por %p127, %p128
    %p131 = scmp.ne.s32.totalorder %s114, %s130
    %p132 = scmp.eq.s32.totalorder %s16, 0
    %p133 = por %p131, %p132
    %s134 = ssub.s32 %s17, %s29
    %s135 = ssub.s32 %s18, %s25
    %s136 = sor.u32 %s134, %s135
    %p137 = scmp.eq.s32.totalorder %s136, 0
    %s139 = sadd.s32 %s138, 1
    %s140 = scalar_select %p137, %s138, %s139
    %p143 = pneg %p137
    %p144 = scmp.eq.s32.totalorder %s10, 1
    %p145 = por %p143, %p144
    %p146 = scmp.ne.s32.totalorder %s138, %s141
    %p147 = scmp.eq.s32.totalorder %s10, 0
    %p148 = por %p146, %p147
    %p149 = scmp.ne.s32.totalorder %s138, %s141
    %p150 = scmp.eq.s32.totalorder %s15, 1
    %p151 = por %p149, %p150
    %p152 = scmp.ne.s32.totalorder %s141, %s142
    %p153 = scmp.eq.s32.totalorder %s15, 0
    %p154 = por %p152, %p153
    %p155 = scmp.ne.s32.totalorder %s141, %s142
    %p156 = scmp.eq.s32.totalorder %s16, 1
    %p157 = por %p155, %p156
    %p159 = scmp.ne.s32.totalorder %s142, %s158
    %p160 = scmp.eq.s32.totalorder %s16, 0
    %p161 = por %p159, %p160
    %p162 = scmp.le.s32.totalorder 1, %s10
    %p163 = scmp.lt.s32.totalorder %s10, 3
    %p164 = pnand %p162, %p163
    %p165 = pneg %p164
    // Predicated region
    $region9: #{ghostconv_forward.2} parent=5 // pred_check
      _
    $region10: #{ghostconv_forward.2} parent=5 // pred_check_branch
      %167 = sbr.rel (%p164) target = $region12
    $region11: #{ghostconv_forward.2} parent=5 // pred_region
      %s168 = ssub.s32 %s10, 1
      // Predicated region
      $region13: #{ghostconv_forward.2} parent=11 // pred_check
        %p169 = pneg %p74
      $region14: #{ghostconv_forward.2} parent=11 // pred_check_branch
        %171 = sbr.rel (%p169) target = $region16
      $region15: #{ghostconv_forward.2} parent=11 // pred_region
        %p172 = scmp.lt.s32.totalorder %s20, 0
        %s173 = scalar_select %p172, %s20, 0
        %s174 = smul.addr %s173, 4
        %s175 = scalar_lea.vmem %s1, %s174
      $region16: #{ghostconv_forward.2} parent=11 // pred_fallthru
        _
      // Predicated region
      $region17: #{ghostconv_forward.2} parent=11 // pred_check
        %p176 = pneg %p100
      $region18: #{ghostconv_forward.2} parent=11 // pred_check_branch
        %178 = sbr.rel (%p176) target = $region20
      $region19: #{ghostconv_forward.2} parent=11 // pred_region
        %p179 = scmp.lt.s32.totalorder %s20, 0
        %s180 = scalar_select %p179, %s20, 0
        %s181 = scalar_lea.vmem %s2, %s180
      $region20: #{ghostconv_forward.2} parent=11 // pred_fallthru
        _
      // Predicated region
      $region21: #{ghostconv_forward.2} parent=11 // pred_check
        %p182 = pneg %p126
      $region22: #{ghostconv_forward.2} parent=11 // pred_check_branch
        %184 = sbr.rel (%p182) target = $region24
      $region23: #{ghostconv_forward.2} parent=11 // pred_region
        %p185 = scmp.lt.s32.totalorder %s20, 0
        %s186 = scalar_select %p185, %s20, 0
        %s187 = scalar_lea.vmem %s3, %s186
      $region24: #{ghostconv_forward.2} parent=11 // pred_fallthru
        _
    $region12: #{ghostconv_forward.2} parent=5 // pred_fallthru
      _
    %p188 = scmp.lt.s32.totalorder %s10, 2
    // Predicated region
    $region25: #{ghostconv_forward.2} parent=5 // pred_check
      %p189 = pneg %p188
    $region26: #{ghostconv_forward.2} parent=5 // pred_check_branch
      %191 = sbr.rel (%p189) target = $region28
    $region27: #{ghostconv_forward.2} parent=5 // pred_region
      // Predicated region
      $region29: #{ghostconv_forward.2} parent=27 // pred_check
        %p192 = pneg %p42
      $region30: #{ghostconv_forward.2} parent=27 // pred_check_branch
        %194 = sbr.rel (%p192) target = $region32
      $region31: #{ghostconv_forward.2} parent=27 // pred_region
        %s195 = smul.u32 32, %s17
        %p196 = scmp.lt.s32.totalorder %s195, 63
        %s197 = scalar_select %p196, %s195, 63
        %s198 = smul.addr %s197, 4
        %s199 = scalar_lea.vmem %s0, %s198
        %s200 = smul.u32 32, %s17
      $region32: #{ghostconv_forward.2} parent=27 // pred_fallthru
        _
    $region28: #{ghostconv_forward.2} parent=5 // pred_fallthru
      _
    %p201 = scmp.le.s32.totalorder 1, %s10
    %p202 = scmp.lt.s32.totalorder %s10, 3
    %p203 = pnand %p201, %p202
    %p204 = pneg %p203
    // Predicated region
    $region33: #{ghostconv_forward.2} parent=5 // pred_check
      _
    $region34: #{ghostconv_forward.2} parent=5 // pred_check_branch
      %206 = sbr.rel (%p203) target = $region36
    $region35: #{ghostconv_forward.2} parent=5 // pred_region
      %s207 = ssub.s32 %s10, 1
      %s208 = smul.u32 32, %s19
      %p209 = scmp.lt.s32.totalorder %s208, 63
      %s210 = scalar_select %p209, %s208, 63
      %s211 = smul.addr %s210, 4
      %s212 = scalar_lea.vmem %s0, %s211
      %p213 = pneg %p48
      %p214 = pneg %p45
      %p215 = scmp.lt.s32.totalorder %s20, 0
      %s216 = scalar_select %p215, %s20, 0
      %s217 = smul.addr %s216, 4
      %s218 = scalar_lea.vmem %s1, %s217
      %p219 = pneg %p74
      %p220 = pneg %p71
      %p221 = scmp.lt.s32.totalorder %s20, 0
      %s222 = scalar_select %p221, %s20, 0
      %s223 = scalar_lea.vmem %s2, %s222
      %p224 = pneg %p100
      %p225 = pneg %p97
      %p226 = scmp.lt.s32.totalorder %s20, 0
      %s227 = scalar_select %p226, %s20, 0
      %s228 = scalar_lea.vmem %s3, %s227
      %p229 = pneg %p126
      %p230 = pneg %p123
      %p231 = pneg %p154
      %p232 = pneg %p151
      %s233 = smul.u32 32, %s19
      %p234 = scmp.lt.s32.totalorder %s233, 63
      %s235 = scalar_select %p234, %s233, 63
      %p236 = scmp.lt.s32.totalorder %s20, 0
      %s237 = scalar_select %p236, %s20, 0
      %s238 = sadd.s32 %s237, %s235
      %s239 = smul.addr %s238, 8
      %s240 = scalar_lea.vmem %s4, %s239
      %s241 = smul.u32 32, %s19
      %p242 = scmp.lt.s32.totalorder %s241, 63
      %s243 = scalar_select %p242, %s241, 63
      %s244 = smul.addr %s243, 4
      %s245 = scalar_lea.vmem %s0, %s244
      %s246 = smul.u32 32, %s19
      %p247 = scmp.lt.s32.totalorder %s20, 0
      %s248 = scalar_select %p247, %s20, 0
      %s249 = smul.addr %s248, 4
      %s250 = scalar_lea.vmem %s1, %s249
      %p251 = scmp.lt.s32.totalorder %s20, 0
      %s252 = scalar_select %p251, %s20, 0
      %s253 = scalar_lea.vmem %s2, %s252
      %p254 = scmp.lt.s32.totalorder %s20, 0
      %s255 = scalar_select %p254, %s20, 0
      %s256 = scalar_lea.vmem %s3, %s255
      %s257 = smul.u32 32, %s19
      %p258 = scmp.lt.s32.totalorder %s257, 63
      %s259 = scalar_select %p258, %s257, 63
      %p260 = scmp.lt.s32.totalorder %s20, 0
      %s261 = scalar_select %p260, %s20, 0
      %s262 = sadd.s32 %s261, %s259
      %s263 = smul.addr %s262, 8
      %s264 = scalar_lea.vmem %s4, %s263
      %s265 = smul.u32 32, %s19
      %v267 = vld [vmem:[%s245] sm:$0xf]
      %v268 = vld [vmem:[%s245 + $0x4] sm:$0xf]
      %v269 = vld [vmem:[%s245 + $0x8] sm:$0xf]
      %v270 = vld [vmem:[%s245 + $0xc] sm:$0xf]
      %v271 = vld [vmem:[%s245 + $0x10] sm:$0xf]
      %v272 = vld [vmem:[%s245 + $0x14] sm:$0xf]
      %v273 = vld [vmem:[%s245 + $0x18] sm:$0xf]
      %v274 = vld [vmem:[%s245 + $0x1c] sm:$0xf]
      %v275 = vld [vmem:[%s245 + $0x20] sm:$0xf]
      %v276 = vld [vmem:[%s245 + $0x24] sm:$0xf]
      %v277 = vld [vmem:[%s245 + $0x28] sm:$0xf]
      %v278 = vld [vmem:[%s245 + $0x2c] sm:$0xf]
      %v279 = vld [vmem:[%s245 + $0x30] sm:$0xf]
      %v280 = vld [vmem:[%s245 + $0x34] sm:$0xf]
      %v281 = vld [vmem:[%s245 + $0x38] sm:$0xf]
      %v282 = vld [vmem:[%s245 + $0x3c] sm:$0xf]
      %v283 = vld [vmem:[%s245 + $0x40] sm:$0xf]
      %v284 = vld [vmem:[%s245 + $0x44] sm:$0xf]
      %v285 = vld [vmem:[%s245 + $0x48] sm:$0xf]
      %v286 = vld [vmem:[%s245 + $0x4c] sm:$0xf]
      %v287 = vld [vmem:[%s245 + $0x50] sm:$0xf]
      %v288 = vld [vmem:[%s245 + $0x54] sm:$0xf]
      %v289 = vld [vmem:[%s245 + $0x58] sm:$0xf]
      %v290 = vld [vmem:[%s245 + $0x5c] sm:$0xf]
      %v291 = vld [vmem:[%s245 + $0x60] sm:$0xf]
      %v292 = vld [vmem:[%s245 + $0x64] sm:$0xf]
      %v293 = vld [vmem:[%s245 + $0x68] sm:$0xf]
      %v294 = vld [vmem:[%s245 + $0x6c] sm:$0xf]
      %v295 = vld [vmem:[%s245 + $0x70] sm:$0xf]
      %v296 = vld [vmem:[%s245 + $0x74] sm:$0xf]
      %v297 = vld [vmem:[%s245 + $0x78] sm:$0xf]
      %v298 = vld [vmem:[%s245 + $0x7c] sm:$0xf]
      %v299 = vld [vmem:[%s250] sm:$0xf]
      %v300 = vld [vmem:[%s250 + $0x4] sm:$0xf]
      %v301 = vld [vmem:[%s250 + $0x8] sm:$0xf]
      %v302 = vld [vmem:[%s250 + $0xc] sm:$0xf]
      %v303 = vld [vmem:[%s250 + $0x10] sm:$0xf]
      %v304 = vld [vmem:[%s250 + $0x14] sm:$0xf]
      %v305 = vld [vmem:[%s250 + $0x18] sm:$0xf]
      %v306 = vld [vmem:[%s250 + $0x1c] sm:$0xf]
      %v307 = vld [vmem:[%s250 + $0x20] sm:$0xf]
      %v308 = vld [vmem:[%s250 + $0x24] sm:$0xf]
      %v309 = vld [vmem:[%s250 + $0x28] sm:$0xf]
      %v310 = vld [vmem:[%s250 + $0x2c] sm:$0xf]
      %v311 = vld [vmem:[%s250 + $0x30] sm:$0xf]
      %v312 = vld [vmem:[%s250 + $0x34] sm:$0xf]
      %v313 = vld [vmem:[%s250 + $0x38] sm:$0xf]
      %v314 = vld [vmem:[%s250 + $0x3c] sm:$0xf]
      %v347 = vunpack.c.l.b16 %v267
      %v348 = vunpack.c.l.b16 %v268
      %v349 = vunpack.c.l.b16 %v269
      %v350 = vunpack.c.l.b16 %v270
      %v351 = vunpack.c.l.b16 %v271
      %v352 = vunpack.c.l.b16 %v272
      %v353 = vunpack.c.l.b16 %v273
      %v354 = vunpack.c.l.b16 %v274
      %v355 = vunpack.c.l.b16 %v275
      %v356 = vunpack.c.l.b16 %v276
      %v357 = vunpack.c.l.b16 %v277
      %v358 = vunpack.c.l.b16 %v278
      %v359 = vunpack.c.l.b16 %v279
      %v360 = vunpack.c.l.b16 %v280
      %v361 = vunpack.c.l.b16 %v281
      %v362 = vunpack.c.l.b16 %v282
      %v363 = vunpack.c.l.b16 %v283
      %v364 = vunpack.c.l.b16 %v284
      %v365 = vunpack.c.l.b16 %v285
      %v366 = vunpack.c.l.b16 %v286
      %v367 = vunpack.c.l.b16 %v287
      %v368 = vunpack.c.l.b16 %v288
      %v369 = vunpack.c.l.b16 %v289
      %v370 = vunpack.c.l.b16 %v290
      %v371 = vunpack.c.l.b16 %v291
      %v372 = vunpack.c.l.b16 %v292
      %v373 = vunpack.c.l.b16 %v293
      %v374 = vunpack.c.l.b16 %v294
      %v375 = vunpack.c.l.b16 %v295
      %v376 = vunpack.c.l.b16 %v296
      %v377 = vunpack.c.l.b16 %v297
      %v378 = vunpack.c.l.b16 %v298
      %v379 = vpack.c.b16 %v348, %v347
      %v380 = vpack.c.b16 %v350, %v349
      %v381 = vpack.c.b16 %v352, %v351
      %v382 = vpack.c.b16 %v354, %v353
      %v383 = vpack.c.b16 %v356, %v355
      %v384 = vpack.c.b16 %v358, %v357
      %v385 = vpack.c.b16 %v360, %v359
      %v386 = vpack.c.b16 %v362, %v361
      %v387 = vpack.c.b16 %v364, %v363
      %v388 = vpack.c.b16 %v366, %v365
      %v389 = vpack.c.b16 %v368, %v367
      %v390 = vpack.c.b16 %v370, %v369
      %v391 = vpack.c.b16 %v372, %v371
      %v392 = vpack.c.b16 %v374, %v373
      %v393 = vpack.c.b16 %v376, %v375
      %v394 = vpack.c.b16 %v378, %v377
      %v427 = vunpack.c.l.b16 %v299
      %v428 = vunpack.c.l.b16 %v300
      %v429 = vunpack.c.l.b16 %v301
      %v430 = vunpack.c.l.b16 %v302
      %v431 = vunpack.c.l.b16 %v303
      %v432 = vunpack.c.l.b16 %v304
      %v433 = vunpack.c.l.b16 %v305
      %v434 = vunpack.c.l.b16 %v306
      %v435 = vunpack.c.l.b16 %v307
      %v436 = vunpack.c.l.b16 %v308
      %v437 = vunpack.c.l.b16 %v309
      %v438 = vunpack.c.l.b16 %v310
      %v439 = vunpack.c.l.b16 %v311
      %v440 = vunpack.c.l.b16 %v312
      %v441 = vunpack.c.l.b16 %v313
      %v442 = vunpack.c.l.b16 %v314
      %v443 = vpack.c.b16 %v428, %v427
      %v444 = vpack.c.b16 %v430, %v429
      %v445 = vpack.c.b16 %v432, %v431
      %v446 = vpack.c.b16 %v434, %v433
      %v447 = vpack.c.b16 %v436, %v435
      %v448 = vpack.c.b16 %v438, %v437
      %v449 = vpack.c.b16 %v440, %v439
      %v450 = vpack.c.b16 %v442, %v441
      %459 = vmatprep.subr.bf16.mxu0 0
      %460 = vmatpush1.bf16.msra.mxu0 %v450
      %461 = vmatprep.subr.bf16.mxu0 0
      %462 = vmatpush1.bf16.msra.mxu0 %v449
      %463 = vmatprep.subr.bf16.mxu0 0
      %464 = vmatpush1.bf16.msra.mxu0 %v448
      %465 = vmatprep.subr.bf16.mxu0 0
      %466 = vmatpush1.bf16.msra.mxu0 %v447
      %467 = vmatprep.subr.bf16.mxu0 0
      %468 = vmatpush1.bf16.msra.mxu0 %v446
      %469 = vmatprep.subr.bf16.mxu0 0
      %470 = vmatpush1.bf16.msra.mxu0 %v445
      %471 = vmatprep.subr.bf16.mxu0 0
      %472 = vmatpush1.bf16.msra.mxu0 %v444
      %473 = vmatprep.subr.bf16.mxu0 0
      %474 = vmatpush1.bf16.msra.mxu0 %v443
      %475 = vmatprep.subr.bf16.mxu0 0
      %476 = vmatpush2.bf16.msra.mxu0 0
      %477 = vmatprep.subr.bf16.mxu0 0
      %478 = vmatpush2.bf16.msra.mxu0 0
      %479 = vmatprep.subr.bf16.mxu0 0
      %480 = vmatpush2.bf16.msra.mxu0 0
      %481 = vmatprep.subr.bf16.mxu0 0
      %482 = vmatpush2.bf16.msra.mxu0 0
      %483 = vmatprep.subr.bf16.mxu0 0
      %484 = vmatpush2.bf16.msra.mxu0 0
      %485 = vmatprep.subr.bf16.mxu0 0
      %486 = vmatpush2.bf16.msra.mxu0 0
      %487 = vmatprep.subr.bf16.mxu0 0
      %488 = vmatpush2.bf16.msra.mxu0 0
      %489 = vmatprep.subr.bf16.mxu0 0
      %490 = vmatpush2.bf16.msra.mxu0 0
      %491 = vmatprep.mubr.bf16.mxu0 0
      %492 = vmatmul.mubr.bf16.gmra.mxu0 %v379
      %v493 = vpop.f32.mrf.mxu0
      %v494 = vadd.f32 0.0, %v493
      %v495 = vpop.f32.mrf.mxu0
      %v496 = vpop.f32.mrf.mxu0
      %v497 = vadd.f32 0.0, %v496
      %v498 = vpop.f32.mrf.mxu0
      %499 = vmatprep.mubr.bf16.mxu0 0
      %500 = vmatmul.mubr.bf16.gmra.mxu0 %v380
      %v501 = vpop.f32.mrf.mxu0
      %v502 = vadd.f32 0.0, %v501
      %v503 = vpop.f32.mrf.mxu0
      %v504 = vpop.f32.mrf.mxu0
      %v505 = vadd.f32 0.0, %v504
      %v506 = vpop.f32.mrf.mxu0
      %507 = vmatprep.mubr.bf16.mxu0 0
      %508 = vmatmul.mubr.bf16.gmra.mxu0 %v381
      %v509 = vpop.f32.mrf.mxu0
      %v510 = vadd.f32 0.0, %v509
      %v511 = vpop.f32.mrf.mxu0
      %v512 = vpop.f32.mrf.mxu0
      %v513 = vadd.f32 0.0, %v512
      %v514 = vpop.f32.mrf.mxu0
      %515 = vmatprep.mubr.bf16.mxu0 0
      %516 = vmatmul.mubr.bf16.gmra.mxu0 %v382
      %v517 = vpop.f32.mrf.mxu0
      %v518 = vadd.f32 0.0, %v517
      %v519 = vpop.f32.mrf.mxu0
      %v520 = vpop.f32.mrf.mxu0
      %v521 = vadd.f32 0.0, %v520
      %v522 = vpop.f32.mrf.mxu0
      %523 = vmatprep.mubr.bf16.mxu0 0
      %524 = vmatmul.mubr.bf16.gmra.mxu0 %v383
      %v525 = vpop.f32.mrf.mxu0
      %v526 = vadd.f32 0.0, %v525
      %v527 = vpop.f32.mrf.mxu0
      %v528 = vpop.f32.mrf.mxu0
      %v529 = vadd.f32 0.0, %v528
      %v530 = vpop.f32.mrf.mxu0
      %531 = vmatprep.mubr.bf16.mxu0 0
      %532 = vmatmul.mubr.bf16.gmra.mxu0 %v384
      %v533 = vpop.f32.mrf.mxu0
      %v534 = vadd.f32 0.0, %v533
      %v535 = vpop.f32.mrf.mxu0
      %v536 = vpop.f32.mrf.mxu0
      %v537 = vadd.f32 0.0, %v536
      %v538 = vpop.f32.mrf.mxu0
      %539 = vmatprep.mubr.bf16.mxu0 0
      %540 = vmatmul.mubr.bf16.gmra.mxu0 %v385
      %v541 = vpop.f32.mrf.mxu0
      %v542 = vadd.f32 0.0, %v541
      %v543 = vpop.f32.mrf.mxu0
      %v544 = vpop.f32.mrf.mxu0
      %v545 = vadd.f32 0.0, %v544
      %v546 = vpop.f32.mrf.mxu0
      %547 = vmatprep.mubr.bf16.mxu0 0
      %548 = vmatmul.mubr.bf16.gmra.mxu0 %v386
      %v549 = vpop.f32.mrf.mxu0
      %v550 = vadd.f32 0.0, %v549
      %v551 = vpop.f32.mrf.mxu0
      %v552 = vpop.f32.mrf.mxu0
      %v553 = vadd.f32 0.0, %v552
      %v554 = vpop.f32.mrf.mxu0
      %555 = vmatprep.mubr.bf16.mxu0 0
      %556 = vmatmul.mubr.bf16.gmra.mxu0 %v387
      %v557 = vpop.f32.mrf.mxu0
      %v558 = vadd.f32 0.0, %v557
      %v559 = vpop.f32.mrf.mxu0
      %v560 = vpop.f32.mrf.mxu0
      %v561 = vadd.f32 0.0, %v560
      %v562 = vpop.f32.mrf.mxu0
      %563 = vmatprep.mubr.bf16.mxu0 0
      %564 = vmatmul.mubr.bf16.gmra.mxu0 %v388
      %v565 = vpop.f32.mrf.mxu0
      %v566 = vadd.f32 0.0, %v565
      %v567 = vpop.f32.mrf.mxu0
      %v568 = vpop.f32.mrf.mxu0
      %v569 = vadd.f32 0.0, %v568
      %v570 = vpop.f32.mrf.mxu0
      %571 = vmatprep.mubr.bf16.mxu0 0
      %572 = vmatmul.mubr.bf16.gmra.mxu0 %v389
      %v573 = vpop.f32.mrf.mxu0
      %v574 = vadd.f32 0.0, %v573
      %v575 = vpop.f32.mrf.mxu0
      %v576 = vpop.f32.mrf.mxu0
      %v577 = vadd.f32 0.0, %v576
      %v578 = vpop.f32.mrf.mxu0
      %579 = vmatprep.mubr.bf16.mxu0 0
      %580 = vmatmul.mubr.bf16.gmra.mxu0 %v390
      %v581 = vpop.f32.mrf.mxu0
      %v582 = vadd.f32 0.0, %v581
      %v583 = vpop.f32.mrf.mxu0
      %v584 = vpop.f32.mrf.mxu0
      %v585 = vadd.f32 0.0, %v584
      %v586 = vpop.f32.mrf.mxu0
      %587 = vmatprep.mubr.bf16.mxu0 0
      %588 = vmatmul.mubr.bf16.gmra.mxu0 %v391
      %v589 = vpop.f32.mrf.mxu0
      %v590 = vadd.f32 0.0, %v589
      %v591 = vpop.f32.mrf.mxu0
      %v592 = vpop.f32.mrf.mxu0
      %v593 = vadd.f32 0.0, %v592
      %v594 = vpop.f32.mrf.mxu0
      %595 = vmatprep.mubr.bf16.mxu0 0
      %596 = vmatmul.mubr.bf16.gmra.mxu0 %v392
      %v597 = vpop.f32.mrf.mxu0
      %v598 = vadd.f32 0.0, %v597
      %v599 = vpop.f32.mrf.mxu0
      %v600 = vpop.f32.mrf.mxu0
      %v601 = vadd.f32 0.0, %v600
      %v602 = vpop.f32.mrf.mxu0
      %603 = vmatprep.mubr.bf16.mxu0 0
      %604 = vmatmul.mubr.bf16.gmra.mxu0 %v393
      %v605 = vpop.f32.mrf.mxu0
      %v606 = vadd.f32 0.0, %v605
      %v607 = vpop.f32.mrf.mxu0
      %v608 = vpop.f32.mrf.mxu0
      %v609 = vadd.f32 0.0, %v608
      %v610 = vpop.f32.mrf.mxu0
      %611 = vmatprep.mubr.bf16.mxu0 0
      %612 = vmatmul.mubr.bf16.gmra.mxu0 %v394
      %v613 = vpop.f32.mrf.mxu0
      %v614 = vadd.f32 0.0, %v613
      %v615 = vpop.f32.mrf.mxu0
      %v616 = vpop.f32.mrf.mxu0
      %v617 = vadd.f32 0.0, %v616
      %v618 = vpop.f32.mrf.mxu0
      %619 = vdwg.mxu0
      %v620 = vld [vmem:[%s253] sm:$0x1]
      %v621 = vld [vmem:[%s256] sm:$0x1]
      %v623 = vlaneseq
      %v624 = vshrl.u32 %v623, 7
      %v625 = vsub.s32 0, %v624
      %v626 = vrot.slane %v620, %v625
      %v628 = vmul.f32 %v494, %v626
      %v629 = vmul.f32 %v497, %v626
      %v630 = vmul.f32 %v502, %v626
      %v631 = vmul.f32 %v505, %v626
      %v632 = vmul.f32 %v510, %v626
      %v633 = vmul.f32 %v513, %v626
      %v634 = vmul.f32 %v518, %v626
      %v635 = vmul.f32 %v521, %v626
      %v636 = vmul.f32 %v526, %v626
      %v637 = vmul.f32 %v529, %v626
      %v638 = vmul.f32 %v534, %v626
      %v639 = vmul.f32 %v537, %v626
      %v640 = vmul.f32 %v542, %v626
      %v641 = vmul.f32 %v545, %v626
      %v642 = vmul.f32 %v550, %v626
      %v643 = vmul.f32 %v553, %v626
      %v644 = vmul.f32 %v558, %v626
      %v645 = vmul.f32 %v561, %v626
      %v646 = vmul.f32 %v566, %v626
      %v647 = vmul.f32 %v569, %v626
      %v648 = vmul.f32 %v574, %v626
      %v649 = vmul.f32 %v577, %v626
      %v650 = vmul.f32 %v582, %v626
      %v651 = vmul.f32 %v585, %v626
      %v652 = vmul.f32 %v590, %v626
      %v653 = vmul.f32 %v593, %v626
      %v654 = vmul.f32 %v598, %v626
      %v655 = vmul.f32 %v601, %v626
      %v656 = vmul.f32 %v606, %v626
      %v657 = vmul.f32 %v609, %v626
      %v658 = vmul.f32 %v614, %v626
      %v659 = vmul.f32 %v617, %v626
      %v661 = vlaneseq
      %v662 = vshrl.u32 %v661, 7
      %v663 = vsub.s32 0, %v662
      %v664 = vrot.slane %v621, %v663
      %v666 = vadd.f32 %v628, %v664
      %v667 = vadd.f32 %v629, %v664
      %v668 = vadd.f32 %v630, %v664
      %v669 = vadd.f32 %v631, %v664
      %v670 = vadd.f32 %v632, %v664
      %v671 = vadd.f32 %v633, %v664
      %v672 = vadd.f32 %v634, %v664
      %v673 = vadd.f32 %v635, %v664
      %v674 = vadd.f32 %v636, %v664
      %v675 = vadd.f32 %v637, %v664
      %v676 = vadd.f32 %v638, %v664
      %v677 = vadd.f32 %v639, %v664
      %v678 = vadd.f32 %v640, %v664
      %v679 = vadd.f32 %v641, %v664
      %v680 = vadd.f32 %v642, %v664
      %v681 = vadd.f32 %v643, %v664
      %v682 = vadd.f32 %v644, %v664
      %v683 = vadd.f32 %v645, %v664
      %v684 = vadd.f32 %v646, %v664
      %v685 = vadd.f32 %v647, %v664
      %v686 = vadd.f32 %v648, %v664
      %v687 = vadd.f32 %v649, %v664
      %v688 = vadd.f32 %v650, %v664
      %v689 = vadd.f32 %v651, %v664
      %v690 = vadd.f32 %v652, %v664
      %v691 = vadd.f32 %v653, %v664
      %v692 = vadd.f32 %v654, %v664
      %v693 = vadd.f32 %v655, %v664
      %v694 = vadd.f32 %v656, %v664
      %v695 = vadd.f32 %v657, %v664
      %v696 = vadd.f32 %v658, %v664
      %v697 = vadd.f32 %v659, %v664
      %v698 = vxor.u32 %v666, 2147483648
      %v699 = vxor.u32 %v667, 2147483648
      %v700 = vxor.u32 %v668, 2147483648
      %v701 = vxor.u32 %v669, 2147483648
      %v702 = vxor.u32 %v670, 2147483648
      %v703 = vxor.u32 %v671, 2147483648
      %v704 = vxor.u32 %v672, 2147483648
      %v705 = vxor.u32 %v673, 2147483648
      %v706 = vxor.u32 %v674, 2147483648
      %v707 = vxor.u32 %v675, 2147483648
      %v708 = vxor.u32 %v676, 2147483648
      %v709 = vxor.u32 %v677, 2147483648
      %v710 = vxor.u32 %v678, 2147483648
      %v711 = vxor.u32 %v679, 2147483648
      %v712 = vxor.u32 %v680, 2147483648
      %v713 = vxor.u32 %v681, 2147483648
      %v714 = vxor.u32 %v682, 2147483648
      %v715 = vxor.u32 %v683, 2147483648
      %v716 = vxor.u32 %v684, 2147483648
      %v717 = vxor.u32 %v685, 2147483648
      %v718 = vxor.u32 %v686, 2147483648
      %v719 = vxor.u32 %v687, 2147483648
      %v720 = vxor.u32 %v688, 2147483648
      %v721 = vxor.u32 %v689, 2147483648
      %v722 = vxor.u32 %v690, 2147483648
      %v723 = vxor.u32 %v691, 2147483648
      %v724 = vxor.u32 %v692, 2147483648
      %v725 = vxor.u32 %v693, 2147483648
      %v726 = vxor.u32 %v694, 2147483648
      %v727 = vxor.u32 %v695, 2147483648
      %v728 = vxor.u32 %v696, 2147483648
      %v729 = vxor.u32 %v697, 2147483648
      %v730 = vmul.f32 %v698, 1.442695
      %v731 = vpow.pop %v730
      %v732 = vmul.f32 %v699, 1.442695
      %v733 = vpow.pop %v732
      %v734 = vmul.f32 %v700, 1.442695
      %v735 = vpow.pop %v734
      %v736 = vmul.f32 %v701, 1.442695
      %v737 = vpow.pop %v736
      %v738 = vmul.f32 %v702, 1.442695
      %v739 = vpow.pop %v738
      %v740 = vmul.f32 %v703, 1.442695
      %v741 = vpow.pop %v740
      %v742 = vmul.f32 %v704, 1.442695
      %v743 = vpow.pop %v742
      %v744 = vmul.f32 %v705, 1.442695
      %v745 = vpow.pop %v744
      %v746 = vmul.f32 %v706, 1.442695
      %v747 = vpow.pop %v746
      %v748 = vmul.f32 %v707, 1.442695
      %v749 = vpow.pop %v748
      %v750 = vmul.f32 %v708, 1.442695
      %v751 = vpow.pop %v750
      %v752 = vmul.f32 %v709, 1.442695
      %v753 = vpow.pop %v752
      %v754 = vmul.f32 %v710, 1.442695
      %v755 = vpow.pop %v754
      %v756 = vmul.f32 %v711, 1.442695
      %v757 = vpow.pop %v756
      %v758 = vmul.f32 %v712, 1.442695
      %v759 = vpow.pop %v758
      %v760 = vmul.f32 %v713, 1.442695
      %v761 = vpow.pop %v760
      %v762 = vmul.f32 %v714, 1.442695
      %v763 = vpow.pop %v762
      %v764 = vmul.f32 %v715, 1.442695
      %v765 = vpow.pop %v764
      %v766 = vmul.f32 %v716, 1.442695
      %v767 = vpow.pop %v766
      %v768 = vmul.f32 %v717, 1.442695
      %v769 = vpow.pop %v768
      %v770 = vmul.f32 %v718, 1.442695
      %v771 = vpow.pop %v770
      %v772 = vmul.f32 %v719, 1.442695
      %v773 = vpow.pop %v772
      %v774 = vmul.f32 %v720, 1.442695
      %v775 = vpow.pop %v774
      %v776 = vmul.f32 %v721, 1.442695
      %v777 = vpow.pop %v776
      %v778 = vmul.f32 %v722, 1.442695
      %v779 = vpow.pop %v778
      %v780 = vmul.f32 %v723, 1.442695
      %v781 = vpow.pop %v780
      %v782 = vmul.f32 %v724, 1.442695
      %v783 = vpow.pop %v782
      %v784 = vmul.f32 %v725, 1.442695
      %v785 = vpow.pop %v784
      %v786 = vmul.f32 %v726, 1.442695
      %v787 = vpow.pop %v786
      %v788 = vmul.f32 %v727, 1.442695
      %v789 = vpow.pop %v788
      %v790 = vmul.f32 %v728, 1.442695
      %v791 = vpow.pop %v790
      %v792 = vmul.f32 %v729, 1.442695
      %v793 = vpow.pop %v792
      %v794 = vadd.f32 %v731, 1.0
      %v795 = vadd.f32 %v733, 1.0
      %v796 = vadd.f32 %v735, 1.0
      %v797 = vadd.f32 %v737, 1.0
      %v798 = vadd.f32 %v739, 1.0
      %v799 = vadd.f32 %v741, 1.0
      %v800 = vadd.f32 %v743, 1.0
      %v801 = vadd.f32 %v745, 1.0
      %v802 = vadd.f32 %v747, 1.0
      %v803 = vadd.f32 %v749, 1.0
      %v804 = vadd.f32 %v751, 1.0
      %v805 = vadd.f32 %v753, 1.0
      %v806 = vadd.f32 %v755, 1.0
      %v807 = vadd.f32 %v757, 1.0
      %v808 = vadd.f32 %v759, 1.0
      %v809 = vadd.f32 %v761, 1.0
      %v810 = vadd.f32 %v763, 1.0
      %v811 = vadd.f32 %v765, 1.0
      %v812 = vadd.f32 %v767, 1.0
      %v813 = vadd.f32 %v769, 1.0
      %v814 = vadd.f32 %v771, 1.0
      %v815 = vadd.f32 %v773, 1.0
      %v816 = vadd.f32 %v775, 1.0
      %v817 = vadd.f32 %v777, 1.0
      %v818 = vadd.f32 %v779, 1.0
      %v819 = vadd.f32 %v781, 1.0
      %v820 = vadd.f32 %v783, 1.0
      %v821 = vadd.f32 %v785, 1.0
      %v822 = vadd.f32 %v787, 1.0
      %v823 = vadd.f32 %v789, 1.0
      %v824 = vadd.f32 %v791, 1.0
      %v825 = vadd.f32 %v793, 1.0
      %v826 = vrcp.pop %v794
      %v827 = vmul.f32 1.0, %v826
      %v828 = vrcp.pop %v795
      %v829 = vmul.f32 1.0, %v828
      %v830 = vrcp.pop %v796
      %v831 = vmul.f32 1.0, %v830
      %v832 = vrcp.pop %v797
      %v833 = vmul.f32 1.0, %v832
      %v834 = vrcp.pop %v798
      %v835 = vmul.f32 1.0, %v834
      %v836 = vrcp.pop %v799
      %v837 = vmul.f32 1.0, %v836
      %v838 = vrcp.pop %v800
      %v839 = vmul.f32 1.0, %v838
      %v840 = vrcp.pop %v801
      %v841 = vmul.f32 1.0, %v840
      %v842 = vrcp.pop %v802
      %v843 = vmul.f32 1.0, %v842
      %v844 = vrcp.pop %v803
      %v845 = vmul.f32 1.0, %v844
      %v846 = vrcp.pop %v804
      %v847 = vmul.f32 1.0, %v846
      %v848 = vrcp.pop %v805
      %v849 = vmul.f32 1.0, %v848
      %v850 = vrcp.pop %v806
      %v851 = vmul.f32 1.0, %v850
      %v852 = vrcp.pop %v807
      %v853 = vmul.f32 1.0, %v852
      %v854 = vrcp.pop %v808
      %v855 = vmul.f32 1.0, %v854
      %v856 = vrcp.pop %v809
      %v857 = vmul.f32 1.0, %v856
      %v858 = vrcp.pop %v810
      %v859 = vmul.f32 1.0, %v858
      %v860 = vrcp.pop %v811
      %v861 = vmul.f32 1.0, %v860
      %v862 = vrcp.pop %v812
      %v863 = vmul.f32 1.0, %v862
      %v864 = vrcp.pop %v813
      %v865 = vmul.f32 1.0, %v864
      %v866 = vrcp.pop %v814
      %v867 = vmul.f32 1.0, %v866
      %v868 = vrcp.pop %v815
      %v869 = vmul.f32 1.0, %v868
      %v870 = vrcp.pop %v816
      %v871 = vmul.f32 1.0, %v870
      %v872 = vrcp.pop %v817
      %v873 = vmul.f32 1.0, %v872
      %v874 = vrcp.pop %v818
      %v875 = vmul.f32 1.0, %v874
      %v876 = vrcp.pop %v819
      %v877 = vmul.f32 1.0, %v876
      %v878 = vrcp.pop %v820
      %v879 = vmul.f32 1.0, %v878
      %v880 = vrcp.pop %v821
      %v881 = vmul.f32 1.0, %v880
      %v882 = vrcp.pop %v822
      %v883 = vmul.f32 1.0, %v882
      %v884 = vrcp.pop %v823
      %v885 = vmul.f32 1.0, %v884
      %v886 = vrcp.pop %v824
      %v887 = vmul.f32 1.0, %v886
      %v888 = vrcp.pop %v825
      %v889 = vmul.f32 1.0, %v888
      %v890 = vmul.f32 %v666, %v827
      %v891 = vmul.f32 %v667, %v829
      %v892 = vmul.f32 %v668, %v831
      %v893 = vmul.f32 %v669, %v833
      %v894 = vmul.f32 %v670, %v835
      %v895 = vmul.f32 %v671, %v837
      %v896 = vmul.f32 %v672, %v839
      %v897 = vmul.f32 %v673, %v841
      %v898 = vmul.f32 %v674, %v843
      %v899 = vmul.f32 %v675, %v845
      %v900 = vmul.f32 %v676, %v847
      %v901 = vmul.f32 %v677, %v849
      %v902 = vmul.f32 %v678, %v851
      %v903 = vmul.f32 %v679, %v853
      %v904 = vmul.f32 %v680, %v855
      %v905 = vmul.f32 %v681, %v857
      %v906 = vmul.f32 %v682, %v859
      %v907 = vmul.f32 %v683, %v861
      %v908 = vmul.f32 %v684, %v863
      %v909 = vmul.f32 %v685, %v865
      %v910 = vmul.f32 %v686, %v867
      %v911 = vmul.f32 %v687, %v869
      %v912 = vmul.f32 %v688, %v871
      %v913 = vmul.f32 %v689, %v873
      %v914 = vmul.f32 %v690, %v875
      %v915 = vmul.f32 %v691, %v877
      %v916 = vmul.f32 %v692, %v879
      %v917 = vmul.f32 %v693, %v881
      %v918 = vmul.f32 %v694, %v883
      %v919 = vmul.f32 %v695, %v885
      %v920 = vmul.f32 %v696, %v887
      %v921 = vmul.f32 %v697, %v889
      %922 = vst [vmem:[%s264] sm:$0xff] %v890
      %923 = vst [vmem:[%s264 + $0x8] sm:$0xff] %v891
      %924 = vst [vmem:[%s264 + $0x10] sm:$0xff] %v892
      %925 = vst [vmem:[%s264 + $0x18] sm:$0xff] %v893
      %926 = vst [vmem:[%s264 + $0x20] sm:$0xff] %v894
      %927 = vst [vmem:[%s264 + $0x28] sm:$0xff] %v895
      %928 = vst [vmem:[%s264 + $0x30] sm:$0xff] %v896
      %929 = vst [vmem:[%s264 + $0x38] sm:$0xff] %v897
      %930 = vst [vmem:[%s264 + $0x40] sm:$0xff] %v898
      %931 = vst [vmem:[%s264 + $0x48] sm:$0xff] %v899
      %932 = vst [vmem:[%s264 + $0x50] sm:$0xff] %v900
      %933 = vst [vmem:[%s264 + $0x58] sm:$0xff] %v901
      %934 = vst [vmem:[%s264 + $0x60] sm:$0xff] %v902
      %935 = vst [vmem:[%s264 + $0x68] sm:$0xff] %v903
      %936 = vst [vmem:[%s264 + $0x70] sm:$0xff] %v904
      %937 = vst [vmem:[%s264 + $0x78] sm:$0xff] %v905
      %938 = vst [vmem:[%s264 + $0x80] sm:$0xff] %v906
      %939 = vst [vmem:[%s264 + $0x88] sm:$0xff] %v907
      %940 = vst [vmem:[%s264 + $0x90] sm:$0xff] %v908
      %941 = vst [vmem:[%s264 + $0x98] sm:$0xff] %v909
      %942 = vst [vmem:[%s264 + $0xa0] sm:$0xff] %v910
      %943 = vst [vmem:[%s264 + $0xa8] sm:$0xff] %v911
      %944 = vst [vmem:[%s264 + $0xb0] sm:$0xff] %v912
      %945 = vst [vmem:[%s264 + $0xb8] sm:$0xff] %v913
      %946 = vst [vmem:[%s264 + $0xc0] sm:$0xff] %v914
      %947 = vst [vmem:[%s264 + $0xc8] sm:$0xff] %v915
      %948 = vst [vmem:[%s264 + $0xd0] sm:$0xff] %v916
      %949 = vst [vmem:[%s264 + $0xd8] sm:$0xff] %v917
      %950 = vst [vmem:[%s264 + $0xe0] sm:$0xff] %v918
      %951 = vst [vmem:[%s264 + $0xe8] sm:$0xff] %v919
      %952 = vst [vmem:[%s264 + $0xf0] sm:$0xff] %v920
      %953 = vst [vmem:[%s264 + $0xf8] sm:$0xff] %v921
      %s954 = smul.u32 32, %s19
      %p955 = scmp.lt.s32.totalorder %s954, 63
      %s956 = scalar_select %p955, %s954, 63
      %p957 = scmp.lt.s32.totalorder %s20, 0
      %s958 = scalar_select %p957, %s20, 0
      %s959 = sadd.s32 %s958, %s956
      %s960 = smul.addr %s959, 8
      %s961 = scalar_lea.vmem %s4, %s960
      // Predicated region
      $region37: #{ghostconv_forward.2} parent=35 // pred_check
        %p962 = pneg %p151
      $region38: #{ghostconv_forward.2} parent=35 // pred_check_branch
        %964 = sbr.rel (%p962) target = $region40
      $region39: #{ghostconv_forward.2} parent=35 // pred_region
        %s965 = smul.u32 32, %s19
      $region40: #{ghostconv_forward.2} parent=35 // pred_fallthru
        _
    $region36: #{ghostconv_forward.2} parent=5 // pred_fallthru
      _
    %p966 = scmp.le.s32.totalorder 2, %s10
    // Predicated region
    $region41: #{ghostconv_forward.2} parent=5 // pred_check
      %p967 = pneg %p966
    $region42: #{ghostconv_forward.2} parent=5 // pred_check_branch
      %969 = sbr.rel (%p967) target = $region44
    $region43: #{ghostconv_forward.2} parent=5 // pred_region
      %s970 = ssub.s32 %s10, 2
      // Predicated region
      $region45: #{ghostconv_forward.2} parent=43 // pred_check
        %p971 = pneg %p157
      $region46: #{ghostconv_forward.2} parent=43 // pred_check_branch
        %973 = sbr.rel (%p971) target = $region48
      $region47: #{ghostconv_forward.2} parent=43 // pred_region
        %s974 = smul.u32 32, %s21
        %p975 = scmp.lt.s32.totalorder %s974, 63
        %s976 = scalar_select %p975, %s974, 63
        %p977 = scmp.lt.s32.totalorder %s22, 0
        %s978 = scalar_select %p977, %s22, 0
        %s979 = sadd.s32 %s978, %s976
        %s980 = smul.addr %s979, 8
        %s981 = scalar_lea.vmem %s4, %s980
      $region48: #{ghostconv_forward.2} parent=43 // pred_fallthru
        _
    $region44: #{ghostconv_forward.2} parent=5 // pred_fallthru
      _
  $region6: #{ghostconv_forward.2} parent=0 // loop_footer
    %s14 = sadd.s32 1, %s10
  $region7: #{ghostconv_forward.2} parent=0 // loop_footer_branch
    %9 = sbr.rel target = $region3
  $region8: #{ghostconv_forward.2} parent=0 // loop_exit
    _

// kernel: ghostconv_forward.3
$region0: #{ghostconv_forward.3}
  #allocation0 [shape = 'u32[]', space=smem, size = 0x4, offset = 0x4, fixed_abs, tag = 'smem constant byte address 0x4 - core index']
  #allocation1 [shape = 'u32[144,128]{1,0:T(1,128)}', space=vmem, size = 0x12000, scoped, tag = 'internal scratch']
  %s0 = inlined_call_operand.vmem [shape: f32[2,20,20,128], index: 0, kind: input, shape index: {}]
  %s1 = inlined_call_operand.vmem [shape: f32[25,128], index: 1, kind: input, shape index: {}]
  %s2 = inlined_call_operand.vmem [shape: f32[1,128], index: 2, kind: input, shape index: {}]
  %s3 = inlined_call_operand.vmem [shape: f32[1,128], index: 3, kind: input, shape index: {}]
  %s4 = inlined_call_operand.vmem [shape: f32[2,2,16,16,128], index: 4, kind: output, shape index: {}]
  %s5 = sld [smem:[#allocation0]]
  $region49: #{ghostconv_forward.3} parent=0
    _
  %s7 = ssub.s32 1, %s5
  %s8 = scalar_select 0, %s7, %s5
  loop: start=0, step=1, limit=4
  $region2: #{ghostconv_forward.3} parent=0 // loop_pre_header
    _
  $region3: #{ghostconv_forward.3} parent=0 // loop_header
    %s10 = sphi 0, %s14
    %p11 = scmp.ge.s32.totalorder %s10, 4
    %s17 = sphi 0, %s29
    %s18 = sphi 0, %s25
    %s19 = sphi 0, %s17
    %s20 = sphi 0, %s18
    %s21 = sphi 0, %s19
    %s22 = sphi 0, %s20
    %s34 = sphi 0, %s36
    %s37 = sphi 0, %s34
    %s38 = sphi 0, %s37
    %s54 = sphi 0, %s38
    %s60 = sphi 0, %s62
    %s63 = sphi 0, %s60
    %s64 = sphi 0, %s63
    %s80 = sphi 0, %s64
    %s86 = sphi 0, %s88
    %s89 = sphi 0, %s86
    %s90 = sphi 0, %s89
    %s106 = sphi 0, %s90
    %s112 = sphi 0, %s114
    %s115 = sphi 0, %s112
    %s116 = sphi 0, %s115
    %s132 = sphi 0, %s116
    %s140 = sphi 0, %s142
    %s143 = sphi 0, %s140
    %s144 = sphi 0, %s143
    %s160 = sphi 0, %s144
  $region4: #{ghostconv_forward.3} parent=0 // loop_header_branch
    %13 = sbr.rel (%p11) target = $region8
  $region5: #{ghostconv_forward.3} parent=0 // loop_body
    %s15 = ssub.s32 %s10, 1
    %s16 = ssub.s32 %s10, 2
    %s23 = sadd.s32 1, %s18
    %p24 = scmp.ge.s32.totalorder %s23, 1
    %s25 = scalar_select %p24, 0, %s23
    %s26 = sadd.s32 1, %s17
    %s27 = scalar_select %p24, %s26, %s17
    %p28 = scmp.ge.s32.totalorder %s27, 2
    %s29 = scalar_select %p28, 0, %s27
    %s30 = ssub.s32 %s17, %s29
    %s31 = ssub.s32 %s18, %s25
    %s32 = sor.u32 %s30, %s31
    %p33 = scmp.eq.s32.totalorder %s32, 0
    %s35 = sadd.s32 %s34, 1
    %s36 = scalar_select %p33, %s34, %s35
    %p39 = pneg %p33
    %p40 = scmp.eq.s32.totalorder %s10, 1
    %p41 = por %p39, %p40
    %p42 = scmp.ne.s32.totalorder %s34, %s37
    %p43 = scmp.eq.s32.totalorder %s10, 0
    %p44 = por %p42, %p43
    %p45 = scmp.ne.s32.totalorder %s34, %s37
    %p46 = scmp.eq.s32.totalorder %s15, 1
    %p47 = por %p45, %p46
    %p48 = scmp.ne.s32.totalorder %s37, %s38
    %p49 = scmp.eq.s32.totalorder %s15, 0
    %p50 = por %p48, %p49
    %p51 = scmp.ne.s32.totalorder %s37, %s38
    %p52 = scmp.eq.s32.totalorder %s16, 1
    %p53 = por %p51, %p52
    %p55 = scmp.ne.s32.totalorder %s38, %s54
    %p56 = scmp.eq.s32.totalorder %s16, 0
    %p57 = por %p55, %p56
    %s58 = ssub.s32 %s18, %s25
    %p59 = scmp.eq.s32.totalorder %s58, 0
    %s61 = sadd.s32 %s60, 1
    %s62 = scalar_select %p59, %s60, %s61
    %p65 = pneg %p59
    %p66 = scmp.eq.s32.totalorder %s10, 1
    %p67 = por %p65, %p66
    %p68 = scmp.ne.s32.totalorder %s60, %s63
    %p69 = scmp.eq.s32.totalorder %s10, 0
    %p70 = por %p68, %p69
    %p71 = scmp.ne.s32.totalorder %s60, %s63
    %p72 = scmp.eq.s32.totalorder %s15, 1
    %p73 = por %p71, %p72
    %p74 = scmp.ne.s32.totalorder %s63, %s64
    %p75 = scmp.eq.s32.totalorder %s15, 0
    %p76 = por %p74, %p75
    %p77 = scmp.ne.s32.totalorder %s63, %s64
    %p78 = scmp.eq.s32.totalorder %s16, 1
    %p79 = por %p77, %p78
    %p81 = scmp.ne.s32.totalorder %s64, %s80
    %p82 = scmp.eq.s32.totalorder %s16, 0
    %p83 = por %p81, %p82
    %s84 = ssub.s32 %s18, %s25
    %p85 = scmp.eq.s32.totalorder %s84, 0
    %s87 = sadd.s32 %s86, 1
    %s88 = scalar_select %p85, %s86, %s87
    %p91 = pneg %p85
    %p92 = scmp.eq.s32.totalorder %s10, 1
    %p93 = por %p91, %p92
    %p94 = scmp.ne.s32.totalorder %s86, %s89
    %p95 = scmp.eq.s32.totalorder %s10, 0
    %p96 = por %p94, %p95
    %p97 = scmp.ne.s32.totalorder %s86, %s89
    %p98 = scmp.eq.s32.totalorder %s15, 1
    %p99 = por %p97, %p98
    %p100 = scmp.ne.s32.totalorder %s89, %s90
    %p101 = scmp.eq.s32.totalorder %s15, 0
    %p102 = por %p100, %p101
    %p103 = scmp.ne.s32.totalorder %s89, %s90
    %p104 = scmp.eq.s32.totalorder %s16, 1
    %p105 = por %p103, %p104
    %p107 = scmp.ne.s32.totalorder %s90, %s106
    %p108 = scmp.eq.s32.totalorder %s16, 0
    %p109 = por %p107, %p108
    %s110 = ssub.s32 %s18, %s25
    %p111 = scmp.eq.s32.totalorder %s110, 0
    %s113 = sadd.s32 %s112, 1
    %s114 = scalar_select %p111, %s112, %s113
    %p117 = pneg %p111
    %p118 = scmp.eq.s32.totalorder %s10, 1
    %p119 = por %p117, %p118
    %p120 = scmp.ne.s32.totalorder %s112, %s115
    %p121 = scmp.eq.s32.totalorder %s10, 0
    %p122 = por %p120, %p121
    %p123 = scmp.ne.s32.totalorder %s112, %s115
    %p124 = scmp.eq.s32.totalorder %s15, 1
    %p125 = por %p123, %p124
    %p126 = scmp.ne.s32.totalorder %s115, %s116
    %p127 = scmp.eq.s32.totalorder %s15, 0
    %p128 = por %p126, %p127
    %p129 = scmp.ne.s32.totalorder %s115, %s116
    %p130 = scmp.eq.s32.totalorder %s16, 1
    %p131 = por %p129, %p130
    %p133 = scmp.ne.s32.totalorder %s116, %s132
    %p134 = scmp.eq.s32.totalorder %s16, 0
    %p135 = por %p133, %p134
    %s136 = ssub.s32 %s17, %s29
    %s137 = ssub.s32 %s18, %s25
    %s138 = sor.u32 %s136, %s137
    %p139 = scmp.eq.s32.totalorder %s138, 0
    %s141 = sadd.s32 %s140, 1
    %s142 = scalar_select %p139, %s140, %s141
    %p145 = pneg %p139
    %p146 = scmp.eq.s32.totalorder %s10, 1
    %p147 = por %p145, %p146
    %p148 = scmp.ne.s32.totalorder %s140, %s143
    %p149 = scmp.eq.s32.totalorder %s10, 0
    %p150 = por %p148, %p149
    %p151 = scmp.ne.s32.totalorder %s140, %s143
    %p152 = scmp.eq.s32.totalorder %s15, 1
    %p153 = por %p151, %p152
    %p154 = scmp.ne.s32.totalorder %s143, %s144
    %p155 = scmp.eq.s32.totalorder %s15, 0
    %p156 = por %p154, %p155
    %p157 = scmp.ne.s32.totalorder %s143, %s144
    %p158 = scmp.eq.s32.totalorder %s16, 1
    %p159 = por %p157, %p158
    %p161 = scmp.ne.s32.totalorder %s144, %s160
    %p162 = scmp.eq.s32.totalorder %s16, 0
    %p163 = por %p161, %p162
    %p164 = scmp.le.s32.totalorder 1, %s10
    %p165 = scmp.lt.s32.totalorder %s10, 3
    %p166 = pnand %p164, %p165
    %p167 = pneg %p166
    // Predicated region
    $region9: #{ghostconv_forward.3} parent=5 // pred_check
      _
    $region10: #{ghostconv_forward.3} parent=5 // pred_check_branch
      %169 = sbr.rel (%p166) target = $region12
    $region11: #{ghostconv_forward.3} parent=5 // pred_region
      %s170 = ssub.s32 %s10, 1
      // Predicated region
      $region13: #{ghostconv_forward.3} parent=11 // pred_check
        %p171 = pneg %p76
      $region14: #{ghostconv_forward.3} parent=11 // pred_check_branch
        %173 = sbr.rel (%p171) target = $region16
      $region15: #{ghostconv_forward.3} parent=11 // pred_region
        %p174 = scmp.lt.s32.totalorder %s20, 0
        %s175 = scalar_select %p174, %s20, 0
        %s176 = smul.addr %s175, 8
        %s177 = scalar_lea.vmem %s1, %s176
      $region16: #{ghostconv_forward.3} parent=11 // pred_fallthru
        _
      // Predicated region
      $region17: #{ghostconv_forward.3} parent=11 // pred_check
        %p178 = pneg %p102
      $region18: #{ghostconv_forward.3} parent=11 // pred_check_branch
        %180 = sbr.rel (%p178) target = $region20
      $region19: #{ghostconv_forward.3} parent=11 // pred_region
        %p181 = scmp.lt.s32.totalorder %s20, 0
        %s182 = scalar_select %p181, %s20, 0
        %s183 = scalar_lea.vmem %s2, %s182
      $region20: #{ghostconv_forward.3} parent=11 // pred_fallthru
        _
      // Predicated region
      $region21: #{ghostconv_forward.3} parent=11 // pred_check
        %p184 = pneg %p128
      $region22: #{ghostconv_forward.3} parent=11 // pred_check_branch
        %186 = sbr.rel (%p184) target = $region24
      $region23: #{ghostconv_forward.3} parent=11 // pred_region
        %p187 = scmp.lt.s32.totalorder %s20, 0
        %s188 = scalar_select %p187, %s20, 0
        %s189 = scalar_lea.vmem %s3, %s188
      $region24: #{ghostconv_forward.3} parent=11 // pred_fallthru
        _
    $region12: #{ghostconv_forward.3} parent=5 // pred_fallthru
      _
    %p190 = scmp.lt.s32.totalorder %s10, 2
    // Predicated region
    $region25: #{ghostconv_forward.3} parent=5 // pred_check
      %p191 = pneg %p190
    $region26: #{ghostconv_forward.3} parent=5 // pred_check_branch
      %193 = sbr.rel (%p191) target = $region28
    $region27: #{ghostconv_forward.3} parent=5 // pred_region
      // Predicated region
      $region29: #{ghostconv_forward.3} parent=27 // pred_check
        %p194 = pneg %p44
      $region30: #{ghostconv_forward.3} parent=27 // pred_check_branch
        %196 = sbr.rel (%p194) target = $region32
      $region31: #{ghostconv_forward.3} parent=27 // pred_region
        %p197 = scmp.lt.s32.totalorder %s17, 1
        %s198 = scalar_select %p197, %s17, 1
        %p199 = scmp.lt.s32.totalorder %s18, 0
        %s200 = scalar_select %p199, %s18, 0
        %s201 = smul.addr %s198, 60
        %s202 = sadd.s32 %s200, %s201
        %s203 = smul.addr %s202, 8
        %s204 = scalar_lea.vmem %s0, %s203
      $region32: #{ghostconv_forward.3} parent=27 // pred_fallthru
        _
    $region28: #{ghostconv_forward.3} parent=5 // pred_fallthru
      _
    %p205 = scmp.le.s32.totalorder 1, %s10
    %p206 = scmp.lt.s32.totalorder %s10, 3
    %p207 = pnand %p205, %p206
    %p208 = pneg %p207
    // Predicated region
    $region33: #{ghostconv_forward.3} parent=5 // pred_check
      _
    $region34: #{ghostconv_forward.3} parent=5 // pred_check_branch
      %210 = sbr.rel (%p207) target = $region36
    $region35: #{ghostconv_forward.3} parent=5 // pred_region
      %s211 = ssub.s32 %s10, 1
      %p212 = scmp.lt.s32.totalorder %s19, 1
      %s213 = scalar_select %p212, %s19, 1
      %p214 = scmp.lt.s32.totalorder %s20, 0
      %s215 = scalar_select %p214, %s20, 0
      %s216 = smul.addr %s213, 60
      %s217 = sadd.s32 %s215, %s216
      %s218 = smul.addr %s217, 8
      %s219 = scalar_lea.vmem %s0, %s218
      %p220 = pneg %p50
      %p221 = pneg %p47
      %p222 = scmp.lt.s32.totalorder %s20, 0
      %s223 = scalar_select %p222, %s20, 0
      %s224 = smul.addr %s223, 8
      %s225 = scalar_lea.vmem %s1, %s224
      %p226 = pneg %p76
      %p227 = pneg %p73
      %p228 = scmp.lt.s32.totalorder %s20, 0
      %s229 = scalar_select %p228, %s20, 0
      %s230 = scalar_lea.vmem %s2, %s229
      %p231 = pneg %p102
      %p232 = pneg %p99
      %p233 = scmp.lt.s32.totalorder %s20, 0
      %s234 = scalar_select %p233, %s20, 0
      %s235 = scalar_lea.vmem %s3, %s234
      %p236 = pneg %p128
      %p237 = pneg %p125
      %p238 = pneg %p156
      %p239 = pneg %p153
      %p240 = scmp.lt.s32.totalorder %s19, 1
      %s241 = scalar_select %p240, %s19, 1
      %p242 = scmp.lt.s32.totalorder %s20, 0
      %s243 = scalar_select %p242, %s20, 0
      %s244 = smul.addr %s241, 64
      %s245 = sadd.s32 %s243, %s244
      %s246 = smul.addr %s245, 8
      %s247 = scalar_lea.vmem %s4, %s246
      %p248 = scmp.lt.s32.totalorder %s19, 1
      %s249 = scalar_select %p248, %s19, 1
      %p250 = scmp.lt.s32.totalorder %s20, 0
      %s251 = scalar_select %p250, %s20, 0
      %s252 = smul.addr %s249, 60
      %s253 = sadd.s32 %s251, %s252
      %s254 = smul.addr %s253, 8
      %s255 = scalar_lea.vmem %s0, %s254
      %p256 = scmp.lt.s32.totalorder %s20, 0
      %s257 = scalar_select %p256, %s20, 0
      %s258 = smul.addr %s257, 8
      %s259 = scalar_lea.vmem %s1, %s258
      %p260 = scmp.lt.s32.totalorder %s20, 0
      %s261 = scalar_select %p260, %s20, 0
      %s262 = scalar_lea.vmem %s2, %s261
      %p263 = scmp.lt.s32.totalorder %s20, 0
      %s264 = scalar_select %p263, %s20, 0
      %s265 = scalar_lea.vmem %s3, %s264
      %p266 = scmp.lt.s32.totalorder %s19, 1
      %s267 = scalar_select %p266, %s19, 1
      %p268 = scmp.lt.s32.totalorder %s20, 0
      %s269 = scalar_select %p268, %s20, 0
      %s270 = smul.addr %s267, 64
      %s271 = sadd.s32 %s269, %s270
      %s272 = smul.addr %s271, 8
      %s273 = scalar_lea.vmem %s4, %s272
      %v274 = vld [vmem:[%s262] sm:$0x1]
      %v275 = vld [vmem:[%s265] sm:$0x1]
      %s276 = scalar_lea.vmem %s255, 48
      %v277 = vld [vmem:[%s276 + $0x2] sm:$0xff]
      %v278 = vld [vmem:[%s276 + $0xa] sm:$0xff]
      %v279 = vld [vmem:[%s276 + $0x1a] sm:$0xff]
      %v280 = vld [vmem:[%s276 + $0x22] sm:$0xff]
      %v281 = vld [vmem:[%s276 + $0x32] sm:$0xff]
      %v282 = vld [vmem:[%s276 + $0x3a] sm:$0xff]
      %v283 = vld [vmem:[%s276 + $0x4a] sm:$0xff]
      %v284 = vld [vmem:[%s276 + $0x52] sm:$0xff]
      %v285 = vld [vmem:[%s276 + $0x62] sm:$0xff]
      %v286 = vld [vmem:[%s276 + $0x6a] sm:$0xff]
      %v287 = vld [vmem:[%s276 + $0x7a] sm:$0xff]
      %v288 = vld [vmem:[%s276 + $0x82] sm:$0xff]
      %v289 = vld [vmem:[%s276 + $0x92] sm:$0xff]
      %v290 = vld [vmem:[%s276 + $0x9a] sm:$0xff]
      %v291 = vld [vmem:[%s276 + $0xaa] sm:$0xff]
      %v292 = vld [vmem:[%s276 + $0xb2] sm:$0xff]
      %v293 = vld [vmem:[%s276 + $0xc2] sm:$0xff]
      %v294 = vld [vmem:[%s276 + $0xca] sm:$0xff]
      %v295 = vld [vmem:[%s276 + $0xda] sm:$0xff]
      %v296 = vld [vmem:[%s276 + $0xe2] sm:$0xff]
      %v297 = vld [vmem:[%s276 + $0xf2] sm:$0xff]
      %v298 = vld [vmem:[%s276 + $0xfa] sm:$0xff]
      %v299 = vld [vmem:[%s276 + $0x10a] sm:$0xff]
      %v300 = vld [vmem:[%s276 + $0x112] sm:$0xff]
      %v301 = vld [vmem:[%s276 + $0x122] sm:$0xff]
      %v302 = vld [vmem:[%s276 + $0x12a] sm:$0xff]
      %v303 = vld [vmem:[%s276 + $0x13a] sm:$0xff]
      %v304 = vld [vmem:[%s276 + $0x142] sm:$0xff]
      %v305 = vld [vmem:[%s276 + $0x152] sm:$0xff]
      %v306 = vld [vmem:[%s276 + $0x15a] sm:$0xff]
      %v307 = vld [vmem:[%s276 + $0x16a] sm:$0xff]
      %v308 = vld [vmem:[%s276 + $0x172] sm:$0xff]
      %309 = vst [vmem:[%s273] sm:$0xff] %v277
      %310 = vst [vmem:[%s273 + $0x8] sm:$0xff] %v278
      %311 = vst [vmem:[%s273 + $0x10] sm:$0xff] %v279
      %312 = vst [vmem:[%s273 + $0x18] sm:$0xff] %v280
      %313 = vst [vmem:[%s273 + $0x20] sm:$0xff] %v281
      %314 = vst [vmem:[%s273 + $0x28] sm:$0xff] %v282
      %315 = vst [vmem:[%s273 + $0x30] sm:$0xff] %v283
      %316 = vst [vmem:[%s273 + $0x38] sm:$0xff] %v284
      %317 = vst [vmem:[%s273 + $0x40] sm:$0xff] %v285
      %318 = vst [vmem:[%s273 + $0x48] sm:$0xff] %v286
      %319 = vst [vmem:[%s273 + $0x50] sm:$0xff] %v287
      %320 = vst [vmem:[%s273 + $0x58] sm:$0xff] %v288
      %321 = vst [vmem:[%s273 + $0x60] sm:$0xff] %v289
      %322 = vst [vmem:[%s273 + $0x68] sm:$0xff] %v290
      %323 = vst [vmem:[%s273 + $0x70] sm:$0xff] %v291
      %324 = vst [vmem:[%s273 + $0x78] sm:$0xff] %v292
      %325 = vst [vmem:[%s273 + $0x80] sm:$0xff] %v293
      %326 = vst [vmem:[%s273 + $0x88] sm:$0xff] %v294
      %327 = vst [vmem:[%s273 + $0x90] sm:$0xff] %v295
      %328 = vst [vmem:[%s273 + $0x98] sm:$0xff] %v296
      %329 = vst [vmem:[%s273 + $0xa0] sm:$0xff] %v297
      %330 = vst [vmem:[%s273 + $0xa8] sm:$0xff] %v298
      %331 = vst [vmem:[%s273 + $0xb0] sm:$0xff] %v299
      %332 = vst [vmem:[%s273 + $0xb8] sm:$0xff] %v300
      %333 = vst [vmem:[%s273 + $0xc0] sm:$0xff] %v301
      %334 = vst [vmem:[%s273 + $0xc8] sm:$0xff] %v302
      %335 = vst [vmem:[%s273 + $0xd0] sm:$0xff] %v303
      %336 = vst [vmem:[%s273 + $0xd8] sm:$0xff] %v304
      %337 = vst [vmem:[%s273 + $0xe0] sm:$0xff] %v305
      %338 = vst [vmem:[%s273 + $0xe8] sm:$0xff] %v306
      %339 = vst [vmem:[%s273 + $0xf0] sm:$0xff] %v307
      %340 = vst [vmem:[%s273 + $0xf8] sm:$0xff] %v308
      %v341 = vld [vmem:[%s259] sm:$0x1]
      %v342 = vld [vmem:[%s255] sm:$0xff]
      %v343 = vld [vmem:[%s255 + $0x8] sm:$0xff]
      %v344 = vld [vmem:[%s255 + $0x18] sm:$0xff]
      %v345 = vld [vmem:[%s255 + $0x20] sm:$0xff]
      %v346 = vld [vmem:[%s255 + $0x30] sm:$0xff]
      %v347 = vld [vmem:[%s255 + $0x38] sm:$0xff]
      %v348 = vld [vmem:[%s255 + $0x48] sm:$0xff]
      %v349 = vld [vmem:[%s255 + $0x50] sm:$0xff]
      %v350 = vld [vmem:[%s255 + $0x60] sm:$0xff]
      %v351 = vld [vmem:[%s255 + $0x68] sm:$0xff]
      %v352 = vld [vmem:[%s255 + $0x78] sm:$0xff]
      %v353 = vld [vmem:[%s255 + $0x80] sm:$0xff]
      %v354 = vld [vmem:[%s255 + $0x90] sm:$0xff]
      %v355 = vld [vmem:[%s255 + $0x98] sm:$0xff]
      %v356 = vld [vmem:[%s255 + $0xa8] sm:$0xff]
      %v357 = vld [vmem:[%s255 + $0xb0] sm:$0xff]
      %v358 = vlaneseq
      %v359 = vshrl.u32 %v358, 7
      %v360 = vsub.s32 0, %v359
      %v361 = vrot.slane %v341, %v360
      %v362 = vmul.f32 %v342, %v361
      %v363 = vmul.f32 %v343, %v361
      %v364 = vmul.f32 %v344, %v361
      %v365 = vmul.f32 %v345, %v361
      %v366 = vmul.f32 %v346, %v361
      %v367 = vmul.f32 %v347, %v361
      %v368 = vmul.f32 %v348, %v361
      %v369 = vmul.f32 %v349, %v361
      %v370 = vmul.f32 %v350, %v361
      %v371 = vmul.f32 %v351, %v361
      %v372 = vmul.f32 %v352, %v361
      %v373 = vmul.f32 %v353, %v361
      %v374 = vmul.f32 %v354, %v361
      %v375 = vmul.f32 %v355, %v361
      %v376 = vmul.f32 %v356, %v361
      %v377 = vmul.f32 %v357, %v361
      %v378 = vadd.f32 %v362, 0.0
      %v379 = vadd.f32 %v363, 0.0
      %v380 = vadd.f32 %v364, 0.0
      %v381 = vadd.f32 %v365, 0.0
      %v382 = vadd.f32 %v366, 0.0
      %v383 = vadd.f32 %v367, 0.0
      %v384 = vadd.f32 %v368, 0.0
      %v385 = vadd.f32 %v369, 0.0
      %v386 = vadd.f32 %v370, 0.0
      %v387 = vadd.f32 %v371, 0.0
      %v388 = vadd.f32 %v372, 0.0
      %v389 = vadd.f32 %v373, 0.0
      %v390 = vadd.f32 %v374, 0.0
      %v391 = vadd.f32 %v375, 0.0
      %v392 = vadd.f32 %v376, 0.0
      %v393 = vadd.f32 %v377, 0.0
      %v394 = vld [vmem:[%s259 + $0x1] sm:$0x1]
      %v395 = vld [vmem:[%s255 + $0x1] sm:$0xff]
      %v396 = vld [vmem:[%s255 + $0x9] sm:$0xff]
      %v397 = vld [vmem:[%s255 + $0x19] sm:$0xff]
      %v398 = vld [vmem:[%s255 + $0x21] sm:$0xff]
      %v399 = vld [vmem:[%s255 + $0x31] sm:$0xff]
      %v400 = vld [vmem:[%s255 + $0x39] sm:$0xff]
      %v401 = vld [vmem:[%s255 + $0x49] sm:$0xff]
      %v402 = vld [vmem:[%s255 + $0x51] sm:$0xff]
      %v403 = vld [vmem:[%s255 + $0x61] sm:$0xff]
      %v404 = vld [vmem:[%s255 + $0x69] sm:$0xff]
      %v405 = vld [vmem:[%s255 + $0x79] sm:$0xff]
      %v406 = vld [vmem:[%s255 + $0x81] sm:$0xff]
      %v407 = vld [vmem:[%s255 + $0x91] sm:$0xff]
      %v408 = vld [vmem:[%s255 + $0x99] sm:$0xff]
      %v409 = vld [vmem:[%s255 + $0xa9] sm:$0xff]
      %v410 = vld [vmem:[%s255 + $0xb1] sm:$0xff]
      %v411 = vlaneseq
      %v412 = vshrl.u32 %v411, 7
      %v413 = vsub.s32 0, %v412
      %v414 = vrot.slane %v394, %v413
      %v415 = vmul.f32 %v395, %v414
      %v416 = vmul.f32 %v396, %v414
      %v417 = vmul.f32 %v397, %v414
      %v418 = vmul.f32 %v398, %v414
      %v419 = vmul.f32 %v399, %v414
      %v420 = vmul.f32 %v400, %v414
      %v421 = vmul.f32 %v401, %v414
      %v422 = vmul.f32 %v402, %v414
      %v423 = vmul.f32 %v403, %v414
      %v424 = vmul.f32 %v404, %v414
      %v425 = vmul.f32 %v405, %v414
      %v426 = vmul.f32 %v406, %v414
      %v427 = vmul.f32 %v407, %v414
      %v428 = vmul.f32 %v408, %v414
      %v429 = vmul.f32 %v409, %v414
      %v430 = vmul.f32 %v410, %v414
      %v431 = vadd.f32 %v378, %v415
      %v432 = vadd.f32 %v379, %v416
      %v433 = vadd.f32 %v380, %v417
      %v434 = vadd.f32 %v381, %v418
      %v435 = vadd.f32 %v382, %v419
      %v436 = vadd.f32 %v383, %v420
      %v437 = vadd.f32 %v384, %v421
      %v438 = vadd.f32 %v385, %v422
      %v439 = vadd.f32 %v386, %v423
      %v440 = vadd.f32 %v387, %v424
      %v441 = vadd.f32 %v388, %v425
      %v442 = vadd.f32 %v389, %v426
      %v443 = vadd.f32 %v390, %v427
      %v444 = vadd.f32 %v391, %v428
      %v445 = vadd.f32 %v392, %v429
      %v446 = vadd.f32 %v393, %v430
      %v447 = vld [vmem:[%s259 + $0x2] sm:$0x1]
      %v448 = vld [vmem:[%s255 + $0x2] sm:$0xff]
      %v449 = vld [vmem:[%s255 + $0xa] sm:$0xff]
      %v450 = vld [vmem:[%s255 + $0x1a] sm:$0xff]
      %v451 = vld [vmem:[%s255 + $0x22] sm:$0xff]
      %v452 = vld [vmem:[%s255 + $0x32] sm:$0xff]
      %v453 = vld [vmem:[%s255 + $0x3a] sm:$0xff]
      %v454 = vld [vmem:[%s255 + $0x4a] sm:$0xff]
      %v455 = vld [vmem:[%s255 + $0x52] sm:$0xff]
      %v456 = vld [vmem:[%s255 + $0x62] sm:$0xff]
      %v457 = vld [vmem:[%s255 + $0x6a] sm:$0xff]
      %v458 = vld [vmem:[%s255 + $0x7a] sm:$0xff]
      %v459 = vld [vmem:[%s255 + $0x82] sm:$0xff]
      %v460 = vld [vmem:[%s255 + $0x92] sm:$0xff]
      %v461 = vld [vmem:[%s255 + $0x9a] sm:$0xff]
      %v462 = vld [vmem:[%s255 + $0xaa] sm:$0xff]
      %v463 = vld [vmem:[%s255 + $0xb2] sm:$0xff]
      %v464 = vlaneseq
      %v465 = vshrl.u32 %v464, 7
      %v466 = vsub.s32 0, %v465
      %v467 = vrot.slane %v447, %v466
      %v468 = vmul.f32 %v448, %v467
      %v469 = vmul.f32 %v449, %v467
      %v470 = vmul.f32 %v450, %v467
      %v471 = vmul.f32 %v451, %v467
      %v472 = vmul.f32 %v452, %v467
      %v473 = vmul.f32 %v453, %v467
      %v474 = vmul.f32 %v454, %v467
      %v475 = vmul.f32 %v455, %v467
      %v476 = vmul.f32 %v456, %v467
      %v477 = vmul.f32 %v457, %v467
      %v478 = vmul.f32 %v458, %v467
      %v479 = vmul.f32 %v459, %v467
      %v480 = vmul.f32 %v460, %v467
      %v481 = vmul.f32 %v461, %v467
      %v482 = vmul.f32 %v462, %v467
      %v483 = vmul.f32 %v463, %v467
      %v484 = vadd.f32 %v431, %v468
      %v485 = vadd.f32 %v432, %v469
      %v486 = vadd.f32 %v433, %v470
      %v487 = vadd.f32 %v434, %v471
      %v488 = vadd.f32 %v435, %v472
      %v489 = vadd.f32 %v436, %v473
      %v490 = vadd.f32 %v437, %v474
      %v491 = vadd.f32 %v438, %v475
      %v492 = vadd.f32 %v439, %v476
      %v493 = vadd.f32 %v440, %v477
      %v494 = vadd.f32 %v441, %v478
      %v495 = vadd.f32 %v442, %v479
      %v496 = vadd.f32 %v443, %v480
      %v497 = vadd.f32 %v444, %v481
      %v498 = vadd.f32 %v445, %v482
      %v499 = vadd.f32 %v446, %v483
      %v500 = vld [vmem:[%s259 + $0x3] sm:$0x1]
      %v501 = vld [vmem:[%s255 + $0x3] sm:$0xff]
      %v502 = vld [vmem:[%s255 + $0xb] sm:$0xff]
      %v503 = vld [vmem:[%s255 + $0x1b] sm:$0xff]
      %v504 = vld [vmem:[%s255 + $0x23] sm:$0xff]
      %v505 = vld [vmem:[%s255 + $0x33] sm:$0xff]
      %v506 = vld [vmem:[%s255 + $0x3b] sm:$0xff]
      %v507 = vld [vmem:[%s255 + $0x4b] sm:$0xff]
      %v508 = vld [vmem:[%s255 + $0x53] sm:$0xff]
      %v509 = vld [vmem:[%s255 + $0x63] sm:$0xff]
      %v510 = vld [vmem:[%s255 + $0x6b] sm:$0xff]
      %v511 = vld [vmem:[%s255 + $0x7b] sm:$0xff]
      %v512 = vld [vmem:[%s255 + $0x83] sm:$0xff]
      %v513 = vld [vmem:[%s255 + $0x93] sm:$0xff]
      %v514 = vld [vmem:[%s255 + $0x9b] sm:$0xff]
      %v515 = vld [vmem:[%s255 + $0xab] sm:$0xff]
      %v516 = vld [vmem:[%s255 + $0xb3] sm:$0xff]
      %v517 = vlaneseq
      %v518 = vshrl.u32 %v517, 7
      %v519 = vsub.s32 0, %v518
      %v520 = vrot.slane %v500, %v519
      %v521 = vmul.f32 %v501, %v520
      %v522 = vmul.f32 %v502, %v520
      %v523 = vmul.f32 %v503, %v520
      %v524 = vmul.f32 %v504, %v520
      %v525 = vmul.f32 %v505, %v520
      %v526 = vmul.f32 %v506, %v520
      %v527 = vmul.f32 %v507, %v520
      %v528 = vmul.f32 %v508, %v520
      %v529 = vmul.f32 %v509, %v520
      %v530 = vmul.f32 %v510, %v520
      %v531 = vmul.f32 %v511, %v520
      %v532 = vmul.f32 %v512, %v520
      %v533 = vmul.f32 %v513, %v520
      %v534 = vmul.f32 %v514, %v520
      %v535 = vmul.f32 %v515, %v520
      %v536 = vmul.f32 %v516, %v520
      %v537 = vadd.f32 %v484, %v521
      %v538 = vadd.f32 %v485, %v522
      %v539 = vadd.f32 %v486, %v523
      %v540 = vadd.f32 %v487, %v524
      %v541 = vadd.f32 %v488, %v525
      %v542 = vadd.f32 %v489, %v526
      %v543 = vadd.f32 %v490, %v527
      %v544 = vadd.f32 %v491, %v528
      %v545 = vadd.f32 %v492, %v529
      %v546 = vadd.f32 %v493, %v530
      %v547 = vadd.f32 %v494, %v531
      %v548 = vadd.f32 %v495, %v532
      %v549 = vadd.f32 %v496, %v533
      %v550 = vadd.f32 %v497, %v534
      %v551 = vadd.f32 %v498, %v535
      %v552 = vadd.f32 %v499, %v536
      %v553 = vld [vmem:[%s259 + $0x4] sm:$0x1]
      %v554 = vld [vmem:[%s255 + $0x4] sm:$0xff]
      %v555 = vld [vmem:[%s255 + $0xc] sm:$0xff]
      %v556 = vld [vmem:[%s255 + $0x1c] sm:$0xff]
      %v557 = vld [vmem:[%s255 + $0x24] sm:$0xff]
      %v558 = vld [vmem:[%s255 + $0x34] sm:$0xff]
      %v559 = vld [vmem:[%s255 + $0x3c] sm:$0xff]
      %v560 = vld [vmem:[%s255 + $0x4c] sm:$0xff]
      %v561 = vld [vmem:[%s255 + $0x54] sm:$0xff]
      %v562 = vld [vmem:[%s255 + $0x64] sm:$0xff]
      %v563 = vld [vmem:[%s255 + $0x6c] sm:$0xff]
      %v564 = vld [vmem:[%s255 + $0x7c] sm:$0xff]
      %v565 = vld [vmem:[%s255 + $0x84] sm:$0xff]
      %v566 = vld [vmem:[%s255 + $0x94] sm:$0xff]
      %v567 = vld [vmem:[%s255 + $0x9c] sm:$0xff]
      %v568 = vld [vmem:[%s255 + $0xac] sm:$0xff]
      %v569 = vld [vmem:[%s255 + $0xb4] sm:$0xff]
      %v570 = vlaneseq
      %v571 = vshrl.u32 %v570, 7
      %v572 = vsub.s32 0, %v571
      %v573 = vrot.slane %v553, %v572
      %v574 = vmul.f32 %v554, %v573
      %v575 = vmul.f32 %v555, %v573
      %v576 = vmul.f32 %v556, %v573
      %v577 = vmul.f32 %v557, %v573
      %v578 = vmul.f32 %v558, %v573
      %v579 = vmul.f32 %v559, %v573
      %v580 = vmul.f32 %v560, %v573
      %v581 = vmul.f32 %v561, %v573
      %v582 = vmul.f32 %v562, %v573
      %v583 = vmul.f32 %v563, %v573
      %v584 = vmul.f32 %v564, %v573
      %v585 = vmul.f32 %v565, %v573
      %v586 = vmul.f32 %v566, %v573
      %v587 = vmul.f32 %v567, %v573
      %v588 = vmul.f32 %v568, %v573
      %v589 = vmul.f32 %v569, %v573
      %v590 = vadd.f32 %v537, %v574
      %v591 = vadd.f32 %v538, %v575
      %v592 = vadd.f32 %v539, %v576
      %v593 = vadd.f32 %v540, %v577
      %v594 = vadd.f32 %v541, %v578
      %v595 = vadd.f32 %v542, %v579
      %v596 = vadd.f32 %v543, %v580
      %v597 = vadd.f32 %v544, %v581
      %v598 = vadd.f32 %v545, %v582
      %v599 = vadd.f32 %v546, %v583
      %v600 = vadd.f32 %v547, %v584
      %v601 = vadd.f32 %v548, %v585
      %v602 = vadd.f32 %v549, %v586
      %v603 = vadd.f32 %v550, %v587
      %v604 = vadd.f32 %v551, %v588
      %v605 = vadd.f32 %v552, %v589
      %v606 = vld [vmem:[%s259 + $0x5] sm:$0x1]
      %s607 = scalar_lea.vmem %s255, 24
      %v608 = vld [vmem:[%s607] sm:$0xff]
      %v609 = vld [vmem:[%s607 + $0x8] sm:$0xff]
      %v610 = vld [vmem:[%s607 + $0x18] sm:$0xff]
      %v611 = vld [vmem:[%s607 + $0x20] sm:$0xff]
      %v612 = vld [vmem:[%s607 + $0x30] sm:$0xff]
      %v613 = vld [vmem:[%s607 + $0x38] sm:$0xff]
      %v614 = vld [vmem:[%s607 + $0x48] sm:$0xff]
      %v615 = vld [vmem:[%s607 + $0x50] sm:$0xff]
      %v616 = vld [vmem:[%s607 + $0x60] sm:$0xff]
      %v617 = vld [vmem:[%s607 + $0x68] sm:$0xff]
      %v618 = vld [vmem:[%s607 + $0x78] sm:$0xff]
      %v619 = vld [vmem:[%s607 + $0x80] sm:$0xff]
      %v620 = vld [vmem:[%s607 + $0x90] sm:$0xff]
      %v621 = vld [vmem:[%s607 + $0x98] sm:$0xff]
      %v622 = vld [vmem:[%s607 + $0xa8] sm:$0xff]
      %v623 = vld [vmem:[%s607 + $0xb0] sm:$0xff]
      %v624 = vlaneseq
      %v625 = vshrl.u32 %v624, 7
      %v626 = vsub.s32 0, %v625
      %v627 = vrot.slane %v606, %v626
      %v628 = vmul.f32 %v608, %v627
      %v629 = vmul.f32 %v609, %v627
      %v630 = vmul.f32 %v610, %v627
      %v631 = vmul.f32 %v611, %v627
      %v632 = vmul.f32 %v612, %v627
      %v633 = vmul.f32 %v613, %v627
      %v634 = vmul.f32 %v614, %v627
      %v635 = vmul.f32 %v615, %v627
      %v636 = vmul.f32 %v616, %v627
      %v637 = vmul.f32 %v617, %v627
      %v638 = vmul.f32 %v618, %v627
      %v639 = vmul.f32 %v619, %v627
      %v640 = vmul.f32 %v620, %v627
      %v641 = vmul.f32 %v621, %v627
      %v642 = vmul.f32 %v622, %v627
      %v643 = vmul.f32 %v623, %v627
      %v644 = vadd.f32 %v590, %v628
      %v645 = vadd.f32 %v591, %v629
      %v646 = vadd.f32 %v592, %v630
      %v647 = vadd.f32 %v593, %v631
      %v648 = vadd.f32 %v594, %v632
      %v649 = vadd.f32 %v595, %v633
      %v650 = vadd.f32 %v596, %v634
      %v651 = vadd.f32 %v597, %v635
      %v652 = vadd.f32 %v598, %v636
      %v653 = vadd.f32 %v599, %v637
      %v654 = vadd.f32 %v600, %v638
      %v655 = vadd.f32 %v601, %v639
      %v656 = vadd.f32 %v602, %v640
      %v657 = vadd.f32 %v603, %v641
      %v658 = vadd.f32 %v604, %v642
      %v659 = vadd.f32 %v605, %v643
      %v660 = vld [vmem:[%s259 + $0x6] sm:$0x1]
      %v661 = vld [vmem:[%s607 + $0x1] sm:$0xff]
      %v662 = vld [vmem:[%s607 + $0x9] sm:$0xff]
      %v663 = vld [vmem:[%s607 + $0x19] sm:$0xff]
      %v664 = vld [vmem:[%s607 + $0x21] sm:$0xff]
      %v665 = vld [vmem:[%s607 + $0x31] sm:$0xff]
      %v666 = vld [vmem:[%s607 + $0x39] sm:$0xff]
      %v667 = vld [vmem:[%s607 + $0x49] sm:$0xff]
      %v668 = vld [vmem:[%s607 + $0x51] sm:$0xff]
      %v669 = vld [vmem:[%s607 + $0x61] sm:$0xff]
      %v670 = vld [vmem:[%s607 + $0x69] sm:$0xff]
      %v671 = vld [vmem:[%s607 + $0x79] sm:$0xff]
      %v672 = vld [vmem:[%s607 + $0x81] sm:$0xff]
      %v673 = vld [vmem:[%s607 + $0x91] sm:$0xff]
      %v674 = vld [vmem:[%s607 + $0x99] sm:$0xff]
      %v675 = vld [vmem:[%s607 + $0xa9] sm:$0xff]
      %v676 = vld [vmem:[%s607 + $0xb1] sm:$0xff]
      %v677 = vlaneseq
      %v678 = vshrl.u32 %v677, 7
      %v679 = vsub.s32 0, %v678
      %v680 = vrot.slane %v660, %v679
      %v681 = vmul.f32 %v661, %v680
      %v682 = vmul.f32 %v662, %v680
      %v683 = vmul.f32 %v663, %v680
      %v684 = vmul.f32 %v664, %v680
      %v685 = vmul.f32 %v665, %v680
      %v686 = vmul.f32 %v666, %v680
      %v687 = vmul.f32 %v667, %v680
      %v688 = vmul.f32 %v668, %v680
      %v689 = vmul.f32 %v669, %v680
      %v690 = vmul.f32 %v670, %v680
      %v691 = vmul.f32 %v671, %v680
      %v692 = vmul.f32 %v672, %v680
      %v693 = vmul.f32 %v673, %v680
      %v694 = vmul.f32 %v674, %v680
      %v695 = vmul.f32 %v675, %v680
      %v696 = vmul.f32 %v676, %v680
      %v697 = vadd.f32 %v644, %v681
      %v698 = vadd.f32 %v645, %v682
      %v699 = vadd.f32 %v646, %v683
      %v700 = vadd.f32 %v647, %v684
      %v701 = vadd.f32 %v648, %v685
      %v702 = vadd.f32 %v649, %v686
      %v703 = vadd.f32 %v650, %v687
      %v704 = vadd.f32 %v651, %v688
      %v705 = vadd.f32 %v652, %v689
      %v706 = vadd.f32 %v653, %v690
      %v707 = vadd.f32 %v654, %v691
      %v708 = vadd.f32 %v655, %v692
      %v709 = vadd.f32 %v656, %v693
      %v710 = vadd.f32 %v657, %v694
      %v711 = vadd.f32 %v658, %v695
      %v712 = vadd.f32 %v659, %v696
      %v713 = vld [vmem:[%s259 + $0x7] sm:$0x1]
      %v714 = vld [vmem:[%s607 + $0x2] sm:$0xff]
      %v715 = vld [vmem:[%s607 + $0xa] sm:$0xff]
      %v716 = vld [vmem:[%s607 + $0x1a] sm:$0xff]
      %v717 = vld [vmem:[%s607 + $0x22] sm:$0xff]
      %v718 = vld [vmem:[%s607 + $0x32] sm:$0xff]
      %v719 = vld [vmem:[%s607 + $0x3a] sm:$0xff]
      %v720 = vld [vmem:[%s607 + $0x4a] sm:$0xff]
      %v721 = vld [vmem:[%s607 + $0x52] sm:$0xff]
      %v722 = vld [vmem:[%s607 + $0x62] sm:$0xff]
      %v723 = vld [vmem:[%s607 + $0x6a] sm:$0xff]
      %v724 = vld [vmem:[%s607 + $0x7a] sm:$0xff]
      %v725 = vld [vmem:[%s607 + $0x82] sm:$0xff]
      %v726 = vld [vmem:[%s607 + $0x92] sm:$0xff]
      %v727 = vld [vmem:[%s607 + $0x9a] sm:$0xff]
      %v728 = vld [vmem:[%s607 + $0xaa] sm:$0xff]
      %v729 = vld [vmem:[%s607 + $0xb2] sm:$0xff]
      %v730 = vlaneseq
      %v731 = vshrl.u32 %v730, 7
      %v732 = vsub.s32 0, %v731
      %v733 = vrot.slane %v713, %v732
      %v734 = vmul.f32 %v714, %v733
      %v735 = vmul.f32 %v715, %v733
      %v736 = vmul.f32 %v716, %v733
      %v737 = vmul.f32 %v717, %v733
      %v738 = vmul.f32 %v718, %v733
      %v739 = vmul.f32 %v719, %v733
      %v740 = vmul.f32 %v720, %v733
      %v741 = vmul.f32 %v721, %v733
      %v742 = vmul.f32 %v722, %v733
      %v743 = vmul.f32 %v723, %v733
      %v744 = vmul.f32 %v724, %v733
      %v745 = vmul.f32 %v725, %v733
      %v746 = vmul.f32 %v726, %v733
      %v747 = vmul.f32 %v727, %v733
      %v748 = vmul.f32 %v728, %v733
      %v749 = vmul.f32 %v729, %v733
      %v750 = vadd.f32 %v697, %v734
      %v751 = vadd.f32 %v698, %v735
      %v752 = vadd.f32 %v699, %v736
      %v753 = vadd.f32 %v700, %v737
      %v754 = vadd.f32 %v701, %v738
      %v755 = vadd.f32 %v702, %v739
      %v756 = vadd.f32 %v703, %v740
      %v757 = vadd.f32 %v704, %v741
      %v758 = vadd.f32 %v705, %v742
      %v759 = vadd.f32 %v706, %v743
      %v760 = vadd.f32 %v707, %v744
      %v761 = vadd.f32 %v708, %v745
      %v762 = vadd.f32 %v709, %v746
      %v763 = vadd.f32 %v710, %v747
      %v764 = vadd.f32 %v711, %v748
      %v765 = vadd.f32 %v712, %v749
      %v766 = vld [vmem:[%s259 + $0x8] sm:$0x1]
      %v767 = vld [vmem:[%s607 + $0x3] sm:$0xff]
      %v768 = vld [vmem:[%s607 + $0xb] sm:$0xff]
      %v769 = vld [vmem:[%s607 + $0x1b] sm:$0xff]
      %v770 = vld [vmem:[%s607 + $0x23] sm:$0xff]
      %v771 = vld [vmem:[%s607 + $0x33] sm:$0xff]
      %v772 = vld [vmem:[%s607 + $0x3b] sm:$0xff]
      %v773 = vld [vmem:[%s607 + $0x4b] sm:$0xff]
      %v774 = vld [vmem:[%s607 + $0x53] sm:$0xff]
      %v775 = vld [vmem:[%s607 + $0x63] sm:$0xff]
      %v776 = vld [vmem:[%s607 + $0x6b] sm:$0xff]
      %v777 = vld [vmem:[%s607 + $0x7b] sm:$0xff]
      %v778 = vld [vmem:[%s607 + $0x83] sm:$0xff]
      %v779 = vld [vmem:[%s607 + $0x93] sm:$0xff]
      %v780 = vld [vmem:[%s607 + $0x9b] sm:$0xff]
      %v781 = vld [vmem:[%s607 + $0xab] sm:$0xff]
      %v782 = vld [vmem:[%s607 + $0xb3] sm:$0xff]
      %v783 = vlaneseq
      %v784 = vshrl.u32 %v783, 7
      %v785 = vsub.s32 0, %v784
      %v786 = vrot.slane %v766, %v785
      %v787 = vmul.f32 %v767, %v786
      %v788 = vmul.f32 %v768, %v786
      %v789 = vmul.f32 %v769, %v786
      %v790 = vmul.f32 %v770, %v786
      %v791 = vmul.f32 %v771, %v786
      %v792 = vmul.f32 %v772, %v786
      %v793 = vmul.f32 %v773, %v786
      %v794 = vmul.f32 %v774, %v786
      %v795 = vmul.f32 %v775, %v786
      %v796 = vmul.f32 %v776, %v786
      %v797 = vmul.f32 %v777, %v786
      %v798 = vmul.f32 %v778, %v786
      %v799 = vmul.f32 %v779, %v786
      %v800 = vmul.f32 %v780, %v786
      %v801 = vmul.f32 %v781, %v786
      %v802 = vmul.f32 %v782, %v786
      %v803 = vadd.f32 %v750, %v787
      %v804 = vadd.f32 %v751, %v788
      %v805 = vadd.f32 %v752, %v789
      %v806 = vadd.f32 %v753, %v790
      %v807 = vadd.f32 %v754, %v791
      %v808 = vadd.f32 %v755, %v792
      %v809 = vadd.f32 %v756, %v793
      %v810 = vadd.f32 %v757, %v794
      %v811 = vadd.f32 %v758, %v795
      %v812 = vadd.f32 %v759, %v796
      %v813 = vadd.f32 %v760, %v797
      %v814 = vadd.f32 %v761, %v798
      %v815 = vadd.f32 %v762, %v799
      %v816 = vadd.f32 %v763, %v800
      %v817 = vadd.f32 %v764, %v801
      %v818 = vadd.f32 %v765, %v802
      %v819 = vld [vmem:[%s259 + $0x9] sm:$0x1]
      %v820 = vld [vmem:[%s607 + $0x4] sm:$0xff]
      %v821 = vld [vmem:[%s607 + $0xc] sm:$0xff]
      %v822 = vld [vmem:[%s607 + $0x1c] sm:$0xff]
      %v823 = vld [vmem:[%s607 + $0x24] sm:$0xff]
      %v824 = vld [vmem:[%s607 + $0x34] sm:$0xff]
      %v825 = vld [vmem:[%s607 + $0x3c] sm:$0xff]
      %v826 = vld [vmem:[%s607 + $0x4c] sm:$0xff]
      %v827 = vld [vmem:[%s607 + $0x54] sm:$0xff]
      %v828 = vld [vmem:[%s607 + $0x64] sm:$0xff]
      %v829 = vld [vmem:[%s607 + $0x6c] sm:$0xff]
      %v830 = vld [vmem:[%s607 + $0x7c] sm:$0xff]
      %v831 = vld [vmem:[%s607 + $0x84] sm:$0xff]
      %v832 = vld [vmem:[%s607 + $0x94] sm:$0xff]
      %v833 = vld [vmem:[%s607 + $0x9c] sm:$0xff]
      %v834 = vld [vmem:[%s607 + $0xac] sm:$0xff]
      %v835 = vld [vmem:[%s607 + $0xb4] sm:$0xff]
      %v836 = vlaneseq
      %v837 = vshrl.u32 %v836, 7
      %v838 = vsub.s32 0, %v837
      %v839 = vrot.slane %v819, %v838
      %v840 = vmul.f32 %v820, %v839
      %v841 = vmul.f32 %v821, %v839
      %v842 = vmul.f32 %v822, %v839
      %v843 = vmul.f32 %v823, %v839
      %v844 = vmul.f32 %v824, %v839
      %v845 = vmul.f32 %v825, %v839
      %v846 = vmul.f32 %v826, %v839
      %v847 = vmul.f32 %v827, %v839
      %v848 = vmul.f32 %v828, %v839
      %v849 = vmul.f32 %v829, %v839
      %v850 = vmul.f32 %v830, %v839
      %v851 = vmul.f32 %v831, %v839
      %v852 = vmul.f32 %v832, %v839
      %v853 = vmul.f32 %v833, %v839
      %v854 = vmul.f32 %v834, %v839
      %v855 = vmul.f32 %v835, %v839
      %v856 = vadd.f32 %v803, %v840
      %v857 = vadd.f32 %v804, %v841
      %v858 = vadd.f32 %v805, %v842
      %v859 = vadd.f32 %v806, %v843
      %v860 = vadd.f32 %v807, %v844
      %v861 = vadd.f32 %v808, %v845
      %v862 = vadd.f32 %v809, %v846
      %v863 = vadd.f32 %v810, %v847
      %v864 = vadd.f32 %v811, %v848
      %v865 = vadd.f32 %v812, %v849
      %v866 = vadd.f32 %v813, %v850
      %v867 = vadd.f32 %v814, %v851
      %v868 = vadd.f32 %v815, %v852
      %v869 = vadd.f32 %v816, %v853
      %v870 = vadd.f32 %v817, %v854
      %v871 = vadd.f32 %v818, %v855
      %v872 = vld [vmem:[%s259 + $0xa] sm:$0x1]
      %v873 = vld [vmem:[%s276] sm:$0xff]
      %v874 = vld [vmem:[%s276 + $0x8] sm:$0xff]
      %v875 = vld [vmem:[%s276 + $0x18] sm:$0xff]
      %v876 = vld [vmem:[%s276 + $0x20] sm:$0xff]
      %v877 = vld [vmem:[%s276 + $0x30] sm:$0xff]
      %v878 = vld [vmem:[%s276 + $0x38] sm:$0xff]
      %v879 = vld [vmem:[%s276 + $0x48] sm:$0xff]
      %v880 = vld [vmem:[%s276 + $0x50] sm:$0xff]
      %v881 = vld [vmem:[%s276 + $0x60] sm:$0xff]
      %v882 = vld [vmem:[%s276 + $0x68] sm:$0xff]
      %v883 = vld [vmem:[%s276 + $0x78] sm:$0xff]
      %v884 = vld [vmem:[%s276 + $0x80] sm:$0xff]
      %v885 = vld [vmem:[%s276 + $0x90] sm:$0xff]
      %v886 = vld [vmem:[%s276 + $0x98] sm:$0xff]
      %v887 = vld [vmem:[%s276 + $0xa8] sm:$0xff]
      %v888 = vld [vmem:[%s276 + $0xb0] sm:$0xff]
      %v889 = vlaneseq
      %v890 = vshrl.u32 %v889, 7
      %v891 = vsub.s32 0, %v890
      %v892 = vrot.slane %v872, %v891
      %v893 = vmul.f32 %v873, %v892
      %v894 = vmul.f32 %v874, %v892
      %v895 = vmul.f32 %v875, %v892
      %v896 = vmul.f32 %v876, %v892
      %v897 = vmul.f32 %v877, %v892
      %v898 = vmul.f32 %v878, %v892
      %v899 = vmul.f32 %v879, %v892
      %v900 = vmul.f32 %v880, %v892
      %v901 = vmul.f32 %v881, %v892
      %v902 = vmul.f32 %v882, %v892
      %v903 = vmul.f32 %v883, %v892
      %v904 = vmul.f32 %v884, %v892
      %v905 = vmul.f32 %v885, %v892
      %v906 = vmul.f32 %v886, %v892
      %v907 = vmul.f32 %v887, %v892
      %v908 = vmul.f32 %v888, %v892
      %v909 = vadd.f32 %v856, %v893
      %v910 = vadd.f32 %v857, %v894
      %v911 = vadd.f32 %v858, %v895
      %v912 = vadd.f32 %v859, %v896
      %v913 = vadd.f32 %v860, %v897
      %v914 = vadd.f32 %v861, %v898
      %v915 = vadd.f32 %v862, %v899
      %v916 = vadd.f32 %v863, %v900
      %v917 = vadd.f32 %v864, %v901
      %v918 = vadd.f32 %v865, %v902
      %v919 = vadd.f32 %v866, %v903
      %v920 = vadd.f32 %v867, %v904
      %v921 = vadd.f32 %v868, %v905
      %v922 = vadd.f32 %v869, %v906
      %v923 = vadd.f32 %v870, %v907
      %v924 = vadd.f32 %v871, %v908
      %v925 = vld [vmem:[%s259 + $0xb] sm:$0x1]
      %v926 = vld [vmem:[%s276 + $0x1] sm:$0xff]
      %v927 = vld [vmem:[%s276 + $0x9] sm:$0xff]
      %v928 = vld [vmem:[%s276 + $0x19] sm:$0xff]
      %v929 = vld [vmem:[%s276 + $0x21] sm:$0xff]
      %v930 = vld [vmem:[%s276 + $0x31] sm:$0xff]
      %v931 = vld [vmem:[%s276 + $0x39] sm:$0xff]
      %v932 = vld [vmem:[%s276 + $0x49] sm:$0xff]
      %v933 = vld [vmem:[%s276 + $0x51] sm:$0xff]
      %v934 = vld [vmem:[%s276 + $0x61] sm:$0xff]
      %v935 = vld [vmem:[%s276 + $0x69] sm:$0xff]
      %v936 = vld [vmem:[%s276 + $0x79] sm:$0xff]
      %v937 = vld [vmem:[%s276 + $0x81] sm:$0xff]
      %v938 = vld [vmem:[%s276 + $0x91] sm:$0xff]
      %v939 = vld [vmem:[%s276 + $0x99] sm:$0xff]
      %v940 = vld [vmem:[%s276 + $0xa9] sm:$0xff]
      %v941 = vld [vmem:[%s276 + $0xb1] sm:$0xff]
      %v942 = vlaneseq
      %v943 = vshrl.u32 %v942, 7
      %v944 = vsub.s32 0, %v943
      %v945 = vrot.slane %v925, %v944
      %v946 = vmul.f32 %v926, %v945
      %v947 = vmul.f32 %v927, %v945
      %v948 = vmul.f32 %v928, %v945
      %v949 = vmul.f32 %v929, %v945
      %v950 = vmul.f32 %v930, %v945
      %v951 = vmul.f32 %v931, %v945
      %v952 = vmul.f32 %v932, %v945
      %v953 = vmul.f32 %v933, %v945
      %v954 = vmul.f32 %v934, %v945
      %v955 = vmul.f32 %v935, %v945
      %v956 = vmul.f32 %v936, %v945
      %v957 = vmul.f32 %v937, %v945
      %v958 = vmul.f32 %v938, %v945
      %v959 = vmul.f32 %v939, %v945
      %v960 = vmul.f32 %v940, %v945
      %v961 = vmul.f32 %v941, %v945
      %v962 = vadd.f32 %v909, %v946
      %v963 = vadd.f32 %v910, %v947
      %v964 = vadd.f32 %v911, %v948
      %v965 = vadd.f32 %v912, %v949
      %v966 = vadd.f32 %v913, %v950
      %v967 = vadd.f32 %v914, %v951
      %v968 = vadd.f32 %v915, %v952
      %v969 = vadd.f32 %v916, %v953
      %v970 = vadd.f32 %v917, %v954
      %v971 = vadd.f32 %v918, %v955
      %v972 = vadd.f32 %v919, %v956
      %v973 = vadd.f32 %v920, %v957
      %v974 = vadd.f32 %v921, %v958
      %v975 = vadd.f32 %v922, %v959
      %v976 = vadd.f32 %v923, %v960
      %v977 = vadd.f32 %v924, %v961
      %v978 = vld [vmem:[%s259 + $0xc] sm:$0x1]
      %v979 = vld [vmem:[%s276 + $0x2] sm:$0xff]
      %v980 = vld [vmem:[%s276 + $0xa] sm:$0xff]
      %v981 = vld [vmem:[%s276 + $0x1a] sm:$0xff]
      %v982 = vld [vmem:[%s276 + $0x22] sm:$0xff]
      %v983 = vld [vmem:[%s276 + $0x32] sm:$0xff]
      %v984 = vld [vmem:[%s276 + $0x3a] sm:$0xff]
      %v985 = vld [vmem:[%s276 + $0x4a] sm:$0xff]
      %v986 = vld [vmem:[%s276 + $0x52] sm:$0xff]
      %v987 = vld [vmem:[%s276 + $0x62] sm:$0xff]
      %v988 = vld [vmem:[%s276 + $0x6a] sm:$0xff]
      %v989 = vld [vmem:[%s276 + $0x7a] sm:$0xff]
      %v990 = vld [vmem:[%s276 + $0x82] sm:$0xff]
      %v991 = vld [vmem:[%s276 + $0x92] sm:$0xff]
      %v992 = vld [vmem:[%s276 + $0x9a] sm:$0xff]
      %v993 = vld [vmem:[%s276 + $0xaa] sm:$0xff]
      %v994 = vld [vmem:[%s276 + $0xb2] sm:$0xff]
      %v995 = vlaneseq
      %v996 = vshrl.u32 %v995, 7
      %v997 = vsub.s32 0, %v996
      %v998 = vrot.slane %v978, %v997
      %v999 = vmul.f32 %v979, %v998
      %v1000 = vmul.f32 %v980, %v998
      %v1001 = vmul.f32 %v981, %v998
      %v1002 = vmul.f32 %v982, %v998
      %v1003 = vmul.f32 %v983, %v998
      %v1004 = vmul.f32 %v984, %v998
      %v1005 = vmul.f32 %v985, %v998
      %v1006 = vmul.f32 %v986, %v998
      %v1007 = vmul.f32 %v987, %v998
      %v1008 = vmul.f32 %v988, %v998
      %v1009 = vmul.f32 %v989, %v998
      %v1010 = vmul.f32 %v990, %v998
      %v1011 = vmul.f32 %v991, %v998
      %v1012 = vmul.f32 %v992, %v998
      %v1013 = vmul.f32 %v993, %v998
      %v1014 = vmul.f32 %v994, %v998
      %v1015 = vadd.f32 %v962, %v999
      %v1016 = vadd.f32 %v963, %v1000
      %v1017 = vadd.f32 %v964, %v1001
      %v1018 = vadd.f32 %v965, %v1002
      %v1019 = vadd.f32 %v966, %v1003
      %v1020 = vadd.f32 %v967, %v1004
      %v1021 = vadd.f32 %v968, %v1005
      %v1022 = vadd.f32 %v969, %v1006
      %v1023 = vadd.f32 %v970, %v1007
      %v1024 = vadd.f32 %v971, %v1008
      %v1025 = vadd.f32 %v972, %v1009
      %v1026 = vadd.f32 %v973, %v1010
      %v1027 = vadd.f32 %v974, %v1011
      %v1028 = vadd.f32 %v975, %v1012
      %v1029 = vadd.f32 %v976, %v1013
      %v1030 = vadd.f32 %v977, %v1014
      %v1031 = vld [vmem:[%s259 + $0xd] sm:$0x1]
      %v1032 = vld [vmem:[%s276 + $0x3] sm:$0xff]
      %v1033 = vld [vmem:[%s276 + $0xb] sm:$0xff]
      %v1034 = vld [vmem:[%s276 + $0x1b] sm:$0xff]
      %v1035 = vld [vmem:[%s276 + $0x23] sm:$0xff]
      %v1036 = vld [vmem:[%s276 + $0x33] sm:$0xff]
      %v1037 = vld [vmem:[%s276 + $0x3b] sm:$0xff]
      %v1038 = vld [vmem:[%s276 + $0x4b] sm:$0xff]
      %v1039 = vld [vmem:[%s276 + $0x53] sm:$0xff]
      %v1040 = vld [vmem:[%s276 + $0x63] sm:$0xff]
      %v1041 = vld [vmem:[%s276 + $0x6b] sm:$0xff]
      %v1042 = vld [vmem:[%s276 + $0x7b] sm:$0xff]
      %v1043 = vld [vmem:[%s276 + $0x83] sm:$0xff]
      %v1044 = vld [vmem:[%s276 + $0x93] sm:$0xff]
      %v1045 = vld [vmem:[%s276 + $0x9b] sm:$0xff]
      %v1046 = vld [vmem:[%s276 + $0xab] sm:$0xff]
      %v1047 = vld [vmem:[%s276 + $0xb3] sm:$0xff]
      %v1048 = vlaneseq
      %v1049 = vshrl.u32 %v1048, 7
      %v1050 = vsub.s32 0, %v1049
      %v1051 = vrot.slane %v1031, %v1050
      %v1052 = vmul.f32 %v1032, %v1051
      %v1053 = vmul.f32 %v1033, %v1051
      %v1054 = vmul.f32 %v1034, %v1051
      %v1055 = vmul.f32 %v1035, %v1051
      %v1056 = vmul.f32 %v1036, %v1051
      %v1057 = vmul.f32 %v1037, %v1051
      %v1058 = vmul.f32 %v1038, %v1051
      %v1059 = vmul.f32 %v1039, %v1051
      %v1060 = vmul.f32 %v1040, %v1051
      %v1061 = vmul.f32 %v1041, %v1051
      %v1062 = vmul.f32 %v1042, %v1051
      %v1063 = vmul.f32 %v1043, %v1051
      %v1064 = vmul.f32 %v1044, %v1051
      %v1065 = vmul.f32 %v1045, %v1051
      %v1066 = vmul.f32 %v1046, %v1051
      %v1067 = vmul.f32 %v1047, %v1051
      %v1068 = vadd.f32 %v1015, %v1052
      %v1069 = vadd.f32 %v1016, %v1053
      %v1070 = vadd.f32 %v1017, %v1054
      %v1071 = vadd.f32 %v1018, %v1055
      %v1072 = vadd.f32 %v1019, %v1056
      %v1073 = vadd.f32 %v1020, %v1057
      %v1074 = vadd.f32 %v1021, %v1058
      %v1075 = vadd.f32 %v1022, %v1059
      %v1076 = vadd.f32 %v1023, %v1060
      %v1077 = vadd.f32 %v1024, %v1061
      %v1078 = vadd.f32 %v1025, %v1062
      %v1079 = vadd.f32 %v1026, %v1063
      %v1080 = vadd.f32 %v1027, %v1064
      %v1081 = vadd.f32 %v1028, %v1065
      %v1082 = vadd.f32 %v1029, %v1066
      %v1083 = vadd.f32 %v1030, %v1067
      %v1084 = vld [vmem:[%s259 + $0xe] sm:$0x1]
      %v1085 = vld [vmem:[%s276 + $0x4] sm:$0xff]
      %v1086 = vld [vmem:[%s276 + $0xc] sm:$0xff]
      %v1087 = vld [vmem:[%s276 + $0x1c] sm:$0xff]
      %v1088 = vld [vmem:[%s276 + $0x24] sm:$0xff]
      %v1089 = vld [vmem:[%s276 + $0x34] sm:$0xff]
      %v1090 = vld [vmem:[%s276 + $0x3c] sm:$0xff]
      %v1091 = vld [vmem:[%s276 + $0x4c] sm:$0xff]
      %v1092 = vld [vmem:[%s276 + $0x54] sm:$0xff]
      %v1093 = vld [vmem:[%s276 + $0x64] sm:$0xff]
      %v1094 = vld [vmem:[%s276 + $0x6c] sm:$0xff]
      %v1095 = vld [vmem:[%s276 + $0x7c] sm:$0xff]
      %v1096 = vld [vmem:[%s276 + $0x84] sm:$0xff]
      %v1097 = vld [vmem:[%s276 + $0x94] sm:$0xff]
      %v1098 = vld [vmem:[%s276 + $0x9c] sm:$0xff]
      %v1099 = vld [vmem:[%s276 + $0xac] sm:$0xff]
      %v1100 = vld [vmem:[%s276 + $0xb4] sm:$0xff]
      %v1101 = vlaneseq
      %v1102 = vshrl.u32 %v1101, 7
      %v1103 = vsub.s32 0, %v1102
      %v1104 = vrot.slane %v1084, %v1103
      %v1105 = vmul.f32 %v1085, %v1104
      %v1106 = vmul.f32 %v1086, %v1104
      %v1107 = vmul.f32 %v1087, %v1104
      %v1108 = vmul.f32 %v1088, %v1104
      %v1109 = vmul.f32 %v1089, %v1104
      %v1110 = vmul.f32 %v1090, %v1104
      %v1111 = vmul.f32 %v1091, %v1104
      %v1112 = vmul.f32 %v1092, %v1104
      %v1113 = vmul.f32 %v1093, %v1104
      %v1114 = vmul.f32 %v1094, %v1104
      %v1115 = vmul.f32 %v1095, %v1104
      %v1116 = vmul.f32 %v1096, %v1104
      %v1117 = vmul.f32 %v1097, %v1104
      %v1118 = vmul.f32 %v1098, %v1104
      %v1119 = vmul.f32 %v1099, %v1104
      %v1120 = vmul.f32 %v1100, %v1104
      %v1121 = vadd.f32 %v1068, %v1105
      %v1122 = vadd.f32 %v1069, %v1106
      %v1123 = vadd.f32 %v1070, %v1107
      %v1124 = vadd.f32 %v1071, %v1108
      %v1125 = vadd.f32 %v1072, %v1109
      %v1126 = vadd.f32 %v1073, %v1110
      %v1127 = vadd.f32 %v1074, %v1111
      %v1128 = vadd.f32 %v1075, %v1112
      %v1129 = vadd.f32 %v1076, %v1113
      %v1130 = vadd.f32 %v1077, %v1114
      %v1131 = vadd.f32 %v1078, %v1115
      %v1132 = vadd.f32 %v1079, %v1116
      %v1133 = vadd.f32 %v1080, %v1117
      %v1134 = vadd.f32 %v1081, %v1118
      %v1135 = vadd.f32 %v1082, %v1119
      %v1136 = vadd.f32 %v1083, %v1120
      %v1137 = vld [vmem:[%s259 + $0xf] sm:$0x1]
      %s1138 = scalar_lea.vmem %s255, 72
      %v1139 = vld [vmem:[%s1138] sm:$0xff]
      %v1140 = vld [vmem:[%s1138 + $0x8] sm:$0xff]
      %v1141 = vld [vmem:[%s1138 + $0x18] sm:$0xff]
      %v1142 = vld [vmem:[%s1138 + $0x20] sm:$0xff]
      %v1143 = vld [vmem:[%s1138 + $0x30] sm:$0xff]
      %v1144 = vld [vmem:[%s1138 + $0x38] sm:$0xff]
      %v1145 = vld [vmem:[%s1138 + $0x48] sm:$0xff]
      %v1146 = vld [vmem:[%s1138 + $0x50] sm:$0xff]
      %v1147 = vld [vmem:[%s1138 + $0x60] sm:$0xff]
      %v1148 = vld [vmem:[%s1138 + $0x68] sm:$0xff]
      %v1149 = vld [vmem:[%s1138 + $0x78] sm:$0xff]
      %v1150 = vld [vmem:[%s1138 + $0x80] sm:$0xff]
      %v1151 = vld [vmem:[%s1138 + $0x90] sm:$0xff]
      %v1152 = vld [vmem:[%s1138 + $0x98] sm:$0xff]
      %v1153 = vld [vmem:[%s1138 + $0xa8] sm:$0xff]
      %v1154 = vld [vmem:[%s1138 + $0xb0] sm:$0xff]
      %v1155 = vlaneseq
      %v1156 = vshrl.u32 %v1155, 7
      %v1157 = vsub.s32 0, %v1156
      %v1158 = vrot.slane %v1137, %v1157
      %v1159 = vmul.f32 %v1139, %v1158
      %v1160 = vmul.f32 %v1140, %v1158
      %v1161 = vmul.f32 %v1141, %v1158
      %v1162 = vmul.f32 %v1142, %v1158
      %v1163 = vmul.f32 %v1143, %v1158
      %v1164 = vmul.f32 %v1144, %v1158
      %v1165 = vmul.f32 %v1145, %v1158
      %v1166 = vmul.f32 %v1146, %v1158
      %v1167 = vmul.f32 %v1147, %v1158
      %v1168 = vmul.f32 %v1148, %v1158
      %v1169 = vmul.f32 %v1149, %v1158
      %v1170 = vmul.f32 %v1150, %v1158
      %v1171 = vmul.f32 %v1151, %v1158
      %v1172 = vmul.f32 %v1152, %v1158
      %v1173 = vmul.f32 %v1153, %v1158
      %v1174 = vmul.f32 %v1154, %v1158
      %v1175 = vadd.f32 %v1121, %v1159
      %v1176 = vadd.f32 %v1122, %v1160
      %v1177 = vadd.f32 %v1123, %v1161
      %v1178 = vadd.f32 %v1124, %v1162
      %v1179 = vadd.f32 %v1125, %v1163
      %v1180 = vadd.f32 %v1126, %v1164
      %v1181 = vadd.f32 %v1127, %v1165
      %v1182 = vadd.f32 %v1128, %v1166
      %v1183 = vadd.f32 %v1129, %v1167
      %v1184 = vadd.f32 %v1130, %v1168
      %v1185 = vadd.f32 %v1131, %v1169
      %v1186 = vadd.f32 %v1132, %v1170
      %v1187 = vadd.f32 %v1133, %v1171
      %v1188 = vadd.f32 %v1134, %v1172
      %v1189 = vadd.f32 %v1135, %v1173
      %v1190 = vadd.f32 %v1136, %v1174
      %v1191 = vld [vmem:[%s259 + $0x10] sm:$0x1]
      %v1192 = vld [vmem:[%s1138 + $0x1] sm:$0xff]
      %v1193 = vld [vmem:[%s1138 + $0x9] sm:$0xff]
      %v1194 = vld [vmem:[%s1138 + $0x19] sm:$0xff]
      %v1195 = vld [vmem:[%s1138 + $0x21] sm:$0xff]
      %v1196 = vld [vmem:[%s1138 + $0x31] sm:$0xff]
      %v1197 = vld [vmem:[%s1138 + $0x39] sm:$0xff]
      %v1198 = vld [vmem:[%s1138 + $0x49] sm:$0xff]
      %v1199 = vld [vmem:[%s1138 + $0x51] sm:$0xff]
      %v1200 = vld [vmem:[%s1138 + $0x61] sm:$0xff]
      %v1201 = vld [vmem:[%s1138 + $0x69] sm:$0xff]
      %v1202 = vld [vmem:[%s1138 + $0x79] sm:$0xff]
      %v1203 = vld [vmem:[%s1138 + $0x81] sm:$0xff]
      %v1204 = vld [vmem:[%s1138 + $0x91] sm:$0xff]
      %v1205 = vld [vmem:[%s1138 + $0x99] sm:$0xff]
      %v1206 = vld [vmem:[%s1138 + $0xa9] sm:$0xff]
      %v1207 = vld [vmem:[%s1138 + $0xb1] sm:$0xff]
      %v1208 = vlaneseq
      %v1209 = vshrl.u32 %v1208, 7
      %v1210 = vsub.s32 0, %v1209
      %v1211 = vrot.slane %v1191, %v1210
      %v1212 = vmul.f32 %v1192, %v1211
      %v1213 = vmul.f32 %v1193, %v1211
      %v1214 = vmul.f32 %v1194, %v1211
      %v1215 = vmul.f32 %v1195, %v1211
      %v1216 = vmul.f32 %v1196, %v1211
      %v1217 = vmul.f32 %v1197, %v1211
      %v1218 = vmul.f32 %v1198, %v1211
      %v1219 = vmul.f32 %v1199, %v1211
      %v1220 = vmul.f32 %v1200, %v1211
      %v1221 = vmul.f32 %v1201, %v1211
      %v1222 = vmul.f32 %v1202, %v1211
      %v1223 = vmul.f32 %v1203, %v1211
      %v1224 = vmul.f32 %v1204, %v1211
      %v1225 = vmul.f32 %v1205, %v1211
      %v1226 = vmul.f32 %v1206, %v1211
      %v1227 = vmul.f32 %v1207, %v1211
      %v1228 = vadd.f32 %v1175, %v1212
      %v1229 = vadd.f32 %v1176, %v1213
      %v1230 = vadd.f32 %v1177, %v1214
      %v1231 = vadd.f32 %v1178, %v1215
      %v1232 = vadd.f32 %v1179, %v1216
      %v1233 = vadd.f32 %v1180, %v1217
      %v1234 = vadd.f32 %v1181, %v1218
      %v1235 = vadd.f32 %v1182, %v1219
      %v1236 = vadd.f32 %v1183, %v1220
      %v1237 = vadd.f32 %v1184, %v1221
      %v1238 = vadd.f32 %v1185, %v1222
      %v1239 = vadd.f32 %v1186, %v1223
      %v1240 = vadd.f32 %v1187, %v1224
      %v1241 = vadd.f32 %v1188, %v1225
      %v1242 = vadd.f32 %v1189, %v1226
      %v1243 = vadd.f32 %v1190, %v1227
      %v1244 = vld [vmem:[%s259 + $0x11] sm:$0x1]
      %v1245 = vld [vmem:[%s1138 + $0x2] sm:$0xff]
      %v1246 = vld [vmem:[%s1138 + $0xa] sm:$0xff]
      %v1247 = vld [vmem:[%s1138 + $0x1a] sm:$0xff]
      %v1248 = vld [vmem:[%s1138 + $0x22] sm:$0xff]
      %v1249 = vld [vmem:[%s1138 + $0x32] sm:$0xff]
      %v1250 = vld [vmem:[%s1138 + $0x3a] sm:$0xff]
      %v1251 = vld [vmem:[%s1138 + $0x4a] sm:$0xff]
      %v1252 = vld [vmem:[%s1138 + $0x52] sm:$0xff]
      %v1253 = vld [vmem:[%s1138 + $0x62] sm:$0xff]
      %v1254 = vld [vmem:[%s1138 + $0x6a] sm:$0xff]
      %v1255 = vld [vmem:[%s1138 + $0x7a] sm:$0xff]
      %v1256 = vld [vmem:[%s1138 + $0x82] sm:$0xff]
      %v1257 = vld [vmem:[%s1138 + $0x92] sm:$0xff]
      %v1258 = vld [vmem:[%s1138 + $0x9a] sm:$0xff]
      %v1259 = vld [vmem:[%s1138 + $0xaa] sm:$0xff]
      %v1260 = vld [vmem:[%s1138 + $0xb2] sm:$0xff]
      %v1261 = vlaneseq
      %v1262 = vshrl.u32 %v1261, 7
      %v1263 = vsub.s32 0, %v1262
      %v1264 = vrot.slane %v1244, %v1263
      %v1265 = vmul.f32 %v1245, %v1264
      %v1266 = vmul.f32 %v1246, %v1264
      %v1267 = vmul.f32 %v1247, %v1264
      %v1268 = vmul.f32 %v1248, %v1264
      %v1269 = vmul.f32 %v1249, %v1264
      %v1270 = vmul.f32 %v1250, %v1264
      %v1271 = vmul.f32 %v1251, %v1264
      %v1272 = vmul.f32 %v1252, %v1264
      %v1273 = vmul.f32 %v1253, %v1264
      %v1274 = vmul.f32 %v1254, %v1264
      %v1275 = vmul.f32 %v1255, %v1264
      %v1276 = vmul.f32 %v1256, %v1264
      %v1277 = vmul.f32 %v1257, %v1264
      %v1278 = vmul.f32 %v1258, %v1264
      %v1279 = vmul.f32 %v1259, %v1264
      %v1280 = vmul.f32 %v1260, %v1264
      %v1281 = vadd.f32 %v1228, %v1265
      %v1282 = vadd.f32 %v1229, %v1266
      %v1283 = vadd.f32 %v1230, %v1267
      %v1284 = vadd.f32 %v1231, %v1268
      %v1285 = vadd.f32 %v1232, %v1269
      %v1286 = vadd.f32 %v1233, %v1270
      %v1287 = vadd.f32 %v1234, %v1271
      %v1288 = vadd.f32 %v1235, %v1272
      %v1289 = vadd.f32 %v1236, %v1273
      %v1290 = vadd.f32 %v1237, %v1274
      %v1291 = vadd.f32 %v1238, %v1275
      %v1292 = vadd.f32 %v1239, %v1276
      %v1293 = vadd.f32 %v1240, %v1277
      %v1294 = vadd.f32 %v1241, %v1278
      %v1295 = vadd.f32 %v1242, %v1279
      %v1296 = vadd.f32 %v1243, %v1280
      %v1297 = vld [vmem:[%s259 + $0x12] sm:$0x1]
      %v1298 = vld [vmem:[%s1138 + $0x3] sm:$0xff]
      %v1299 = vld [vmem:[%s1138 + $0xb] sm:$0xff]
      %v1300 = vld [vmem:[%s1138 + $0x1b] sm:$0xff]
      %v1301 = vld [vmem:[%s1138 + $0x23] sm:$0xff]
      %v1302 = vld [vmem:[%s1138 + $0x33] sm:$0xff]
      %v1303 = vld [vmem:[%s1138 + $0x3b] sm:$0xff]
      %v1304 = vld [vmem:[%s1138 + $0x4b] sm:$0xff]
      %v1305 = vld [vmem:[%s1138 + $0x53] sm:$0xff]
      %v1306 = vld [vmem:[%s1138 + $0x63] sm:$0xff]
      %v1307 = vld [vmem:[%s1138 + $0x6b] sm:$0xff]
      %v1308 = vld [vmem:[%s1138 + $0x7b] sm:$0xff]
      %v1309 = vld [vmem:[%s1138 + $0x83] sm:$0xff]
      %v1310 = vld [vmem:[%s1138 + $0x93] sm:$0xff]
      %v1311 = vld [vmem:[%s1138 + $0x9b] sm:$0xff]
      %v1312 = vld [vmem:[%s1138 + $0xab] sm:$0xff]
      %v1313 = vld [vmem:[%s1138 + $0xb3] sm:$0xff]
      %v1314 = vlaneseq
      %v1315 = vshrl.u32 %v1314, 7
      %v1316 = vsub.s32 0, %v1315
      %v1317 = vrot.slane %v1297, %v1316
      %v1318 = vmul.f32 %v1298, %v1317
      %v1319 = vmul.f32 %v1299, %v1317
      %v1320 = vmul.f32 %v1300, %v1317
      %v1321 = vmul.f32 %v1301, %v1317
      %v1322 = vmul.f32 %v1302, %v1317
      %v1323 = vmul.f32 %v1303, %v1317
      %v1324 = vmul.f32 %v1304, %v1317
      %v1325 = vmul.f32 %v1305, %v1317
      %v1326 = vmul.f32 %v1306, %v1317
      %v1327 = vmul.f32 %v1307, %v1317
      %v1328 = vmul.f32 %v1308, %v1317
      %v1329 = vmul.f32 %v1309, %v1317
      %v1330 = vmul.f32 %v1310, %v1317
      %v1331 = vmul.f32 %v1311, %v1317
      %v1332 = vmul.f32 %v1312, %v1317
      %v1333 = vmul.f32 %v1313, %v1317
      %v1334 = vadd.f32 %v1281, %v1318
      %v1335 = vadd.f32 %v1282, %v1319
      %v1336 = vadd.f32 %v1283, %v1320
      %v1337 = vadd.f32 %v1284, %v1321
      %v1338 = vadd.f32 %v1285, %v1322
      %v1339 = vadd.f32 %v1286, %v1323
      %v1340 = vadd.f32 %v1287, %v1324
      %v1341 = vadd.f32 %v1288, %v1325
      %v1342 = vadd.f32 %v1289, %v1326
      %v1343 = vadd.f32 %v1290, %v1327
      %v1344 = vadd.f32 %v1291, %v1328
      %v1345 = vadd.f32 %v1292, %v1329
      %v1346 = vadd.f32 %v1293, %v1330
      %v1347 = vadd.f32 %v1294, %v1331
      %v1348 = vadd.f32 %v1295, %v1332
      %v1349 = vadd.f32 %v1296, %v1333
      %v1350 = vld [vmem:[%s259 + $0x13] sm:$0x1]
      %v1351 = vld [vmem:[%s1138 + $0x4] sm:$0xff]
      %v1352 = vld [vmem:[%s1138 + $0xc] sm:$0xff]
      %v1353 = vld [vmem:[%s1138 + $0x1c] sm:$0xff]
      %v1354 = vld [vmem:[%s1138 + $0x24] sm:$0xff]
      %v1355 = vld [vmem:[%s1138 + $0x34] sm:$0xff]
      %v1356 = vld [vmem:[%s1138 + $0x3c] sm:$0xff]
      %v1357 = vld [vmem:[%s1138 + $0x4c] sm:$0xff]
      %v1358 = vld [vmem:[%s1138 + $0x54] sm:$0xff]
      %v1359 = vld [vmem:[%s1138 + $0x64] sm:$0xff]
      %v1360 = vld [vmem:[%s1138 + $0x6c] sm:$0xff]
      %v1361 = vld [vmem:[%s1138 + $0x7c] sm:$0xff]
      %v1362 = vld [vmem:[%s1138 + $0x84] sm:$0xff]
      %v1363 = vld [vmem:[%s1138 + $0x94] sm:$0xff]
      %v1364 = vld [vmem:[%s1138 + $0x9c] sm:$0xff]
      %v1365 = vld [vmem:[%s1138 + $0xac] sm:$0xff]
      %v1366 = vld [vmem:[%s1138 + $0xb4] sm:$0xff]
      %v1367 = vlaneseq
      %v1368 = vshrl.u32 %v1367, 7
      %v1369 = vsub.s32 0, %v1368
      %v1370 = vrot.slane %v1350, %v1369
      %v1371 = vmul.f32 %v1351, %v1370
      %v1372 = vmul.f32 %v1352, %v1370
      %v1373 = vmul.f32 %v1353, %v1370
      %v1374 = vmul.f32 %v1354, %v1370
      %v1375 = vmul.f32 %v1355, %v1370
      %v1376 = vmul.f32 %v1356, %v1370
      %v1377 = vmul.f32 %v1357, %v1370
      %v1378 = vmul.f32 %v1358, %v1370
      %v1379 = vmul.f32 %v1359, %v1370
      %v1380 = vmul.f32 %v1360, %v1370
      %v1381 = vmul.f32 %v1361, %v1370
      %v1382 = vmul.f32 %v1362, %v1370
      %v1383 = vmul.f32 %v1363, %v1370
      %v1384 = vmul.f32 %v1364, %v1370
      %v1385 = vmul.f32 %v1365, %v1370
      %v1386 = vmul.f32 %v1366, %v1370
      %v1387 = vadd.f32 %v1334, %v1371
      %v1388 = vadd.f32 %v1335, %v1372
      %v1389 = vadd.f32 %v1336, %v1373
      %v1390 = vadd.f32 %v1337, %v1374
      %v1391 = vadd.f32 %v1338, %v1375
      %v1392 = vadd.f32 %v1339, %v1376
      %v1393 = vadd.f32 %v1340, %v1377
      %v1394 = vadd.f32 %v1341, %v1378
      %v1395 = vadd.f32 %v1342, %v1379
      %v1396 = vadd.f32 %v1343, %v1380
      %v1397 = vadd.f32 %v1344, %v1381
      %v1398 = vadd.f32 %v1345, %v1382
      %v1399 = vadd.f32 %v1346, %v1383
      %v1400 = vadd.f32 %v1347, %v1384
      %v1401 = vadd.f32 %v1348, %v1385
      %v1402 = vadd.f32 %v1349, %v1386
      %v1403 = vld [vmem:[%s259 + $0x14] sm:$0x1]
      %s1404 = scalar_lea.vmem %s255, 96
      %v1405 = vld [vmem:[%s1404] sm:$0xff]
      %v1406 = vld [vmem:[%s1404 + $0x8] sm:$0xff]
      %v1407 = vld [vmem:[%s1404 + $0x18] sm:$0xff]
      %v1408 = vld [vmem:[%s1404 + $0x20] sm:$0xff]
      %v1409 = vld [vmem:[%s1404 + $0x30] sm:$0xff]
      %v1410 = vld [vmem:[%s1404 + $0x38] sm:$0xff]
      %v1411 = vld [vmem:[%s1404 + $0x48] sm:$0xff]
      %v1412 = vld [vmem:[%s1404 + $0x50] sm:$0xff]
      %v1413 = vld [vmem:[%s1404 + $0x60] sm:$0xff]
      %v1414 = vld [vmem:[%s1404 + $0x68] sm:$0xff]
      %v1415 = vld [vmem:[%s1404 + $0x78] sm:$0xff]
      %v1416 = vld [vmem:[%s1404 + $0x80] sm:$0xff]
      %v1417 = vld [vmem:[%s1404 + $0x90] sm:$0xff]
      %v1418 = vld [vmem:[%s1404 + $0x98] sm:$0xff]
      %v1419 = vld [vmem:[%s1404 + $0xa8] sm:$0xff]
      %v1420 = vld [vmem:[%s1404 + $0xb0] sm:$0xff]
      %v1421 = vlaneseq
      %v1422 = vshrl.u32 %v1421, 7
      %v1423 = vsub.s32 0, %v1422
      %v1424 = vrot.slane %v1403, %v1423
      %v1425 = vmul.f32 %v1405, %v1424
      %v1426 = vmul.f32 %v1406, %v1424
      %v1427 = vmul.f32 %v1407, %v1424
      %v1428 = vmul.f32 %v1408, %v1424
      %v1429 = vmul.f32 %v1409, %v1424
      %v1430 = vmul.f32 %v1410, %v1424
      %v1431 = vmul.f32 %v1411, %v1424
      %v1432 = vmul.f32 %v1412, %v1424
      %v1433 = vmul.f32 %v1413, %v1424
      %v1434 = vmul.f32 %v1414, %v1424
      %v1435 = vmul.f32 %v1415, %v1424
      %v1436 = vmul.f32 %v1416, %v1424
      %v1437 = vmul.f32 %v1417, %v1424
      %v1438 = vmul.f32 %v1418, %v1424
      %v1439 = vmul.f32 %v1419, %v1424
      %v1440 = vmul.f32 %v1420, %v1424
      %v1441 = vadd.f32 %v1387, %v1425
      %v1442 = vadd.f32 %v1388, %v1426
      %v1443 = vadd.f32 %v1389, %v1427
      %v1444 = vadd.f32 %v1390, %v1428
      %v1445 = vadd.f32 %v1391, %v1429
      %v1446 = vadd.f32 %v1392, %v1430
      %v1447 = vadd.f32 %v1393, %v1431
      %v1448 = vadd.f32 %v1394, %v1432
      %v1449 = vadd.f32 %v1395, %v1433
      %v1450 = vadd.f32 %v1396, %v1434
      %v1451 = vadd.f32 %v1397, %v1435
      %v1452 = vadd.f32 %v1398, %v1436
      %v1453 = vadd.f32 %v1399, %v1437
      %v1454 = vadd.f32 %v1400, %v1438
      %v1455 = vadd.f32 %v1401, %v1439
      %v1456 = vadd.f32 %v1402, %v1440
      %v1457 = vld [vmem:[%s259 + $0x15] sm:$0x1]
      %v1458 = vld [vmem:[%s1404 + $0x1] sm:$0xff]
      %v1459 = vld [vmem:[%s1404 + $0x9] sm:$0xff]
      %v1460 = vld [vmem:[%s1404 + $0x19] sm:$0xff]
      %v1461 = vld [vmem:[%s1404 + $0x21] sm:$0xff]
      %v1462 = vld [vmem:[%s1404 + $0x31] sm:$0xff]
      %v1463 = vld [vmem:[%s1404 + $0x39] sm:$0xff]
      %v1464 = vld [vmem:[%s1404 + $0x49] sm:$0xff]
      %v1465 = vld [vmem:[%s1404 + $0x51] sm:$0xff]
      %v1466 = vld [vmem:[%s1404 + $0x61] sm:$0xff]
      %v1467 = vld [vmem:[%s1404 + $0x69] sm:$0xff]
      %v1468 = vld [vmem:[%s1404 + $0x79] sm:$0xff]
      %v1469 = vld [vmem:[%s1404 + $0x81] sm:$0xff]
      %v1470 = vld [vmem:[%s1404 + $0x91] sm:$0xff]
      %v1471 = vld [vmem:[%s1404 + $0x99] sm:$0xff]
      %v1472 = vld [vmem:[%s1404 + $0xa9] sm:$0xff]
      %v1473 = vld [vmem:[%s1404 + $0xb1] sm:$0xff]
      %v1474 = vlaneseq
      %v1475 = vshrl.u32 %v1474, 7
      %v1476 = vsub.s32 0, %v1475
      %v1477 = vrot.slane %v1457, %v1476
      %v1478 = vmul.f32 %v1458, %v1477
      %v1479 = vmul.f32 %v1459, %v1477
      %v1480 = vmul.f32 %v1460, %v1477
      %v1481 = vmul.f32 %v1461, %v1477
      %v1482 = vmul.f32 %v1462, %v1477
      %v1483 = vmul.f32 %v1463, %v1477
      %v1484 = vmul.f32 %v1464, %v1477
      %v1485 = vmul.f32 %v1465, %v1477
      %v1486 = vmul.f32 %v1466, %v1477
      %v1487 = vmul.f32 %v1467, %v1477
      %v1488 = vmul.f32 %v1468, %v1477
      %v1489 = vmul.f32 %v1469, %v1477
      %v1490 = vmul.f32 %v1470, %v1477
      %v1491 = vmul.f32 %v1471, %v1477
      %v1492 = vmul.f32 %v1472, %v1477
      %v1493 = vmul.f32 %v1473, %v1477
      %v1494 = vadd.f32 %v1441, %v1478
      %v1495 = vadd.f32 %v1442, %v1479
      %v1496 = vadd.f32 %v1443, %v1480
      %v1497 = vadd.f32 %v1444, %v1481
      %v1498 = vadd.f32 %v1445, %v1482
      %v1499 = vadd.f32 %v1446, %v1483
      %v1500 = vadd.f32 %v1447, %v1484
      %v1501 = vadd.f32 %v1448, %v1485
      %v1502 = vadd.f32 %v1449, %v1486
      %v1503 = vadd.f32 %v1450, %v1487
      %v1504 = vadd.f32 %v1451, %v1488
      %v1505 = vadd.f32 %v1452, %v1489
      %v1506 = vadd.f32 %v1453, %v1490
      %v1507 = vadd.f32 %v1454, %v1491
      %v1508 = vadd.f32 %v1455, %v1492
      %v1509 = vadd.f32 %v1456, %v1493
      %v1510 = vld [vmem:[%s259 + $0x16] sm:$0x1]
      %v1511 = vld [vmem:[%s1404 + $0x2] sm:$0xff]
      %v1512 = vld [vmem:[%s1404 + $0xa] sm:$0xff]
      %v1513 = vld [vmem:[%s1404 + $0x1a] sm:$0xff]
      %v1514 = vld [vmem:[%s1404 + $0x22] sm:$0xff]
      %v1515 = vld [vmem:[%s1404 + $0x32] sm:$0xff]
      %v1516 = vld [vmem:[%s1404 + $0x3a] sm:$0xff]
      %v1517 = vld [vmem:[%s1404 + $0x4a] sm:$0xff]
      %v1518 = vld [vmem:[%s1404 + $0x52] sm:$0xff]
      %v1519 = vld [vmem:[%s1404 + $0x62] sm:$0xff]
      %v1520 = vld [vmem:[%s1404 + $0x6a] sm:$0xff]
      %v1521 = vld [vmem:[%s1404 + $0x7a] sm:$0xff]
      %v1522 = vld [vmem:[%s1404 + $0x82] sm:$0xff]
      %v1523 = vld [vmem:[%s1404 + $0x92] sm:$0xff]
      %v1524 = vld [vmem:[%s1404 + $0x9a] sm:$0xff]
      %v1525 = vld [vmem:[%s1404 + $0xaa] sm:$0xff]
      %v1526 = vld [vmem:[%s1404 + $0xb2] sm:$0xff]
      %v1527 = vlaneseq
      %v1528 = vshrl.u32 %v1527, 7
      %v1529 = vsub.s32 0, %v1528
      %v1530 = vrot.slane %v1510, %v1529
      %v1531 = vmul.f32 %v1511, %v1530
      %v1532 = vmul.f32 %v1512, %v1530
      %v1533 = vmul.f32 %v1513, %v1530
      %v1534 = vmul.f32 %v1514, %v1530
      %v1535 = vmul.f32 %v1515, %v1530
      %v1536 = vmul.f32 %v1516, %v1530
      %v1537 = vmul.f32 %v1517, %v1530
      %v1538 = vmul.f32 %v1518, %v1530
      %v1539 = vmul.f32 %v1519, %v1530
      %v1540 = vmul.f32 %v1520, %v1530
      %v1541 = vmul.f32 %v1521, %v1530
      %v1542 = vmul.f32 %v1522, %v1530
      %v1543 = vmul.f32 %v1523, %v1530
      %v1544 = vmul.f32 %v1524, %v1530
      %v1545 = vmul.f32 %v1525, %v1530
      %v1546 = vmul.f32 %v1526, %v1530
      %v1547 = vadd.f32 %v1494, %v1531
      %v1548 = vadd.f32 %v1495, %v1532
      %v1549 = vadd.f32 %v1496, %v1533
      %v1550 = vadd.f32 %v1497, %v1534
      %v1551 = vadd.f32 %v1498, %v1535
      %v1552 = vadd.f32 %v1499, %v1536
      %v1553 = vadd.f32 %v1500, %v1537
      %v1554 = vadd.f32 %v1501, %v1538
      %v1555 = vadd.f32 %v1502, %v1539
      %v1556 = vadd.f32 %v1503, %v1540
      %v1557 = vadd.f32 %v1504, %v1541
      %v1558 = vadd.f32 %v1505, %v1542
      %v1559 = vadd.f32 %v1506, %v1543
      %v1560 = vadd.f32 %v1507, %v1544
      %v1561 = vadd.f32 %v1508, %v1545
      %v1562 = vadd.f32 %v1509, %v1546
      %v1563 = vld [vmem:[%s259 + $0x17] sm:$0x1]
      %v1564 = vld [vmem:[%s1404 + $0x3] sm:$0xff]
      %v1565 = vld [vmem:[%s1404 + $0xb] sm:$0xff]
      %v1566 = vld [vmem:[%s1404 + $0x1b] sm:$0xff]
      %v1567 = vld [vmem:[%s1404 + $0x23] sm:$0xff]
      %v1568 = vld [vmem:[%s1404 + $0x33] sm:$0xff]
      %v1569 = vld [vmem:[%s1404 + $0x3b] sm:$0xff]
      %v1570 = vld [vmem:[%s1404 + $0x4b] sm:$0xff]
      %v1571 = vld [vmem:[%s1404 + $0x53] sm:$0xff]
      %v1572 = vld [vmem:[%s1404 + $0x63] sm:$0xff]
      %v1573 = vld [vmem:[%s1404 + $0x6b] sm:$0xff]
      %v1574 = vld [vmem:[%s1404 + $0x7b] sm:$0xff]
      %v1575 = vld [vmem:[%s1404 + $0x83] sm:$0xff]
      %v1576 = vld [vmem:[%s1404 + $0x93] sm:$0xff]
      %v1577 = vld [vmem:[%s1404 + $0x9b] sm:$0xff]
      %v1578 = vld [vmem:[%s1404 + $0xab] sm:$0xff]
      %v1579 = vld [vmem:[%s1404 + $0xb3] sm:$0xff]
      %v1580 = vlaneseq
      %v1581 = vshrl.u32 %v1580, 7
      %v1582 = vsub.s32 0, %v1581
      %v1583 = vrot.slane %v1563, %v1582
      %v1584 = vmul.f32 %v1564, %v1583
      %v1585 = vmul.f32 %v1565, %v1583
      %v1586 = vmul.f32 %v1566, %v1583
      %v1587 = vmul.f32 %v1567, %v1583
      %v1588 = vmul.f32 %v1568, %v1583
      %v1589 = vmul.f32 %v1569, %v1583
      %v1590 = vmul.f32 %v1570, %v1583
      %v1591 = vmul.f32 %v1571, %v1583
      %v1592 = vmul.f32 %v1572, %v1583
      %v1593 = vmul.f32 %v1573, %v1583
      %v1594 = vmul.f32 %v1574, %v1583
      %v1595 = vmul.f32 %v1575, %v1583
      %v1596 = vmul.f32 %v1576, %v1583
      %v1597 = vmul.f32 %v1577, %v1583
      %v1598 = vmul.f32 %v1578, %v1583
      %v1599 = vmul.f32 %v1579, %v1583
      %v1600 = vadd.f32 %v1547, %v1584
      %v1601 = vadd.f32 %v1548, %v1585
      %v1602 = vadd.f32 %v1549, %v1586
      %v1603 = vadd.f32 %v1550, %v1587
      %v1604 = vadd.f32 %v1551, %v1588
      %v1605 = vadd.f32 %v1552, %v1589
      %v1606 = vadd.f32 %v1553, %v1590
      %v1607 = vadd.f32 %v1554, %v1591
      %v1608 = vadd.f32 %v1555, %v1592
      %v1609 = vadd.f32 %v1556, %v1593
      %v1610 = vadd.f32 %v1557, %v1594
      %v1611 = vadd.f32 %v1558, %v1595
      %v1612 = vadd.f32 %v1559, %v1596
      %v1613 = vadd.f32 %v1560, %v1597
      %v1614 = vadd.f32 %v1561, %v1598
      %v1615 = vadd.f32 %v1562, %v1599
      %v1616 = vld [vmem:[%s259 + $0x18] sm:$0x1]
      %v1617 = vld [vmem:[%s1404 + $0x4] sm:$0xff]
      %v1618 = vld [vmem:[%s1404 + $0xc] sm:$0xff]
      %v1619 = vld [vmem:[%s1404 + $0x1c] sm:$0xff]
      %v1620 = vld [vmem:[%s1404 + $0x24] sm:$0xff]
      %v1621 = vld [vmem:[%s1404 + $0x34] sm:$0xff]
      %v1622 = vld [vmem:[%s1404 + $0x3c] sm:$0xff]
      %v1623 = vld [vmem:[%s1404 + $0x4c] sm:$0xff]
      %v1624 = vld [vmem:[%s1404 + $0x54] sm:$0xff]
      %v1625 = vld [vmem:[%s1404 + $0x64] sm:$0xff]
      %v1626 = vld [vmem:[%s1404 + $0x6c] sm:$0xff]
      %v1627 = vld [vmem:[%s1404 + $0x7c] sm:$0xff]
      %v1628 = vld [vmem:[%s1404 + $0x84] sm:$0xff]
      %v1629 = vld [vmem:[%s1404 + $0x94] sm:$0xff]
      %v1630 = vld [vmem:[%s1404 + $0x9c] sm:$0xff]
      %v1631 = vld [vmem:[%s1404 + $0xac] sm:$0xff]
      %v1632 = vld [vmem:[%s1404 + $0xb4] sm:$0xff]
      %v1633 = vlaneseq
      %v1634 = vshrl.u32 %v1633, 7
      %v1635 = vsub.s32 0, %v1634
      %v1636 = vrot.slane %v1616, %v1635
      %v1637 = vmul.f32 %v1617, %v1636
      %v1638 = vmul.f32 %v1618, %v1636
      %v1639 = vmul.f32 %v1619, %v1636
      %v1640 = vmul.f32 %v1620, %v1636
      %v1641 = vmul.f32 %v1621, %v1636
      %v1642 = vmul.f32 %v1622, %v1636
      %v1643 = vmul.f32 %v1623, %v1636
      %v1644 = vmul.f32 %v1624, %v1636
      %v1645 = vmul.f32 %v1625, %v1636
      %v1646 = vmul.f32 %v1626, %v1636
      %v1647 = vmul.f32 %v1627, %v1636
      %v1648 = vmul.f32 %v1628, %v1636
      %v1649 = vmul.f32 %v1629, %v1636
      %v1650 = vmul.f32 %v1630, %v1636
      %v1651 = vmul.f32 %v1631, %v1636
      %v1652 = vmul.f32 %v1632, %v1636
      %v1653 = vadd.f32 %v1600, %v1637
      %v1654 = vadd.f32 %v1601, %v1638
      %v1655 = vadd.f32 %v1602, %v1639
      %v1656 = vadd.f32 %v1603, %v1640
      %v1657 = vadd.f32 %v1604, %v1641
      %v1658 = vadd.f32 %v1605, %v1642
      %v1659 = vadd.f32 %v1606, %v1643
      %v1660 = vadd.f32 %v1607, %v1644
      %v1661 = vadd.f32 %v1608, %v1645
      %v1662 = vadd.f32 %v1609, %v1646
      %v1663 = vadd.f32 %v1610, %v1647
      %v1664 = vadd.f32 %v1611, %v1648
      %v1665 = vadd.f32 %v1612, %v1649
      %v1666 = vadd.f32 %v1613, %v1650
      %v1667 = vadd.f32 %v1614, %v1651
      %v1668 = vadd.f32 %v1615, %v1652
      %v1670 = vlaneseq
      %v1671 = vshrl.u32 %v1670, 7
      %v1672 = vsub.s32 0, %v1671
      %v1673 = vrot.slane %v274, %v1672
      %v1675 = vmul.f32 %v1653, %v1673
      %v1676 = vmul.f32 %v1654, %v1673
      %v1677 = vmul.f32 %v1655, %v1673
      %v1678 = vmul.f32 %v1656, %v1673
      %v1679 = vmul.f32 %v1657, %v1673
      %v1680 = vmul.f32 %v1658, %v1673
      %v1681 = vmul.f32 %v1659, %v1673
      %v1682 = vmul.f32 %v1660, %v1673
      %v1683 = vmul.f32 %v1661, %v1673
      %v1684 = vmul.f32 %v1662, %v1673
      %v1685 = vmul.f32 %v1663, %v1673
      %v1686 = vmul.f32 %v1664, %v1673
      %v1687 = vmul.f32 %v1665, %v1673
      %v1688 = vmul.f32 %v1666, %v1673
      %v1689 = vmul.f32 %v1667, %v1673
      %v1690 = vmul.f32 %v1668, %v1673
      %v1692 = vlaneseq
      %v1693 = vshrl.u32 %v1692, 7
      %v1694 = vsub.s32 0, %v1693
      %v1695 = vrot.slane %v275, %v1694
      %v1697 = vadd.f32 %v1675, %v1695
      %v1698 = vadd.f32 %v1676, %v1695
      %v1699 = vadd.f32 %v1677, %v1695
      %v1700 = vadd.f32 %v1678, %v1695
      %v1701 = vadd.f32 %v1679, %v1695
      %v1702 = vadd.f32 %v1680, %v1695
      %v1703 = vadd.f32 %v1681, %v1695
      %v1704 = vadd.f32 %v1682, %v1695
      %v1705 = vadd.f32 %v1683, %v1695
      %v1706 = vadd.f32 %v1684, %v1695
      %v1707 = vadd.f32 %v1685, %v1695
      %v1708 = vadd.f32 %v1686, %v1695
      %v1709 = vadd.f32 %v1687, %v1695
      %v1710 = vadd.f32 %v1688, %v1695
      %v1711 = vadd.f32 %v1689, %v1695
      %v1712 = vadd.f32 %v1690, %v1695
      %v1713 = vxor.u32 %v1697, 2147483648
      %v1714 = vxor.u32 %v1698, 2147483648
      %v1715 = vxor.u32 %v1699, 2147483648
      %v1716 = vxor.u32 %v1700, 2147483648
      %v1717 = vxor.u32 %v1701, 2147483648
      %v1718 = vxor.u32 %v1702, 2147483648
      %v1719 = vxor.u32 %v1703, 2147483648
      %v1720 = vxor.u32 %v1704, 2147483648
      %v1721 = vxor.u32 %v1705, 2147483648
      %v1722 = vxor.u32 %v1706, 2147483648
      %v1723 = vxor.u32 %v1707, 2147483648
      %v1724 = vxor.u32 %v1708, 2147483648
      %v1725 = vxor.u32 %v1709, 2147483648
      %v1726 = vxor.u32 %v1710, 2147483648
      %v1727 = vxor.u32 %v1711, 2147483648
      %v1728 = vxor.u32 %v1712, 2147483648
      %v1729 = vmul.f32 %v1713, 1.442695
      %v1730 = vpow.pop %v1729
      %v1731 = vmul.f32 %v1714, 1.442695
      %v1732 = vpow.pop %v1731
      %v1733 = vmul.f32 %v1715, 1.442695
      %v1734 = vpow.pop %v1733
      %v1735 = vmul.f32 %v1716, 1.442695
      %v1736 = vpow.pop %v1735
      %v1737 = vmul.f32 %v1717, 1.442695
      %v1738 = vpow.pop %v1737
      %v1739 = vmul.f32 %v1718, 1.442695
      %v1740 = vpow.pop %v1739
      %v1741 = vmul.f32 %v1719, 1.442695
      %v1742 = vpow.pop %v1741
      %v1743 = vmul.f32 %v1720, 1.442695
      %v1744 = vpow.pop %v1743
      %v1745 = vmul.f32 %v1721, 1.442695
      %v1746 = vpow.pop %v1745
      %v1747 = vmul.f32 %v1722, 1.442695
      %v1748 = vpow.pop %v1747
      %v1749 = vmul.f32 %v1723, 1.442695
      %v1750 = vpow.pop %v1749
      %v1751 = vmul.f32 %v1724, 1.442695
      %v1752 = vpow.pop %v1751
      %v1753 = vmul.f32 %v1725, 1.442695
      %v1754 = vpow.pop %v1753
      %v1755 = vmul.f32 %v1726, 1.442695
      %v1756 = vpow.pop %v1755
      %v1757 = vmul.f32 %v1727, 1.442695
      %v1758 = vpow.pop %v1757
      %v1759 = vmul.f32 %v1728, 1.442695
      %v1760 = vpow.pop %v1759
      %v1761 = vadd.f32 %v1730, 1.0
      %v1762 = vadd.f32 %v1732, 1.0
      %v1763 = vadd.f32 %v1734, 1.0
      %v1764 = vadd.f32 %v1736, 1.0
      %v1765 = vadd.f32 %v1738, 1.0
      %v1766 = vadd.f32 %v1740, 1.0
      %v1767 = vadd.f32 %v1742, 1.0
      %v1768 = vadd.f32 %v1744, 1.0
      %v1769 = vadd.f32 %v1746, 1.0
      %v1770 = vadd.f32 %v1748, 1.0
      %v1771 = vadd.f32 %v1750, 1.0
      %v1772 = vadd.f32 %v1752, 1.0
      %v1773 = vadd.f32 %v1754, 1.0
      %v1774 = vadd.f32 %v1756, 1.0
      %v1775 = vadd.f32 %v1758, 1.0
      %v1776 = vadd.f32 %v1760, 1.0
      %v1777 = vrcp.pop %v1761
      %v1778 = vmul.f32 1.0, %v1777
      %v1779 = vrcp.pop %v1762
      %v1780 = vmul.f32 1.0, %v1779
      %v1781 = vrcp.pop %v1763
      %v1782 = vmul.f32 1.0, %v1781
      %v1783 = vrcp.pop %v1764
      %v1784 = vmul.f32 1.0, %v1783
      %v1785 = vrcp.pop %v1765
      %v1786 = vmul.f32 1.0, %v1785
      %v1787 = vrcp.pop %v1766
      %v1788 = vmul.f32 1.0, %v1787
      %v1789 = vrcp.pop %v1767
      %v1790 = vmul.f32 1.0, %v1789
      %v1791 = vrcp.pop %v1768
      %v1792 = vmul.f32 1.0, %v1791
      %v1793 = vrcp.pop %v1769
      %v1794 = vmul.f32 1.0, %v1793
      %v1795 = vrcp.pop %v1770
      %v1796 = vmul.f32 1.0, %v1795
      %v1797 = vrcp.pop %v1771
      %v1798 = vmul.f32 1.0, %v1797
      %v1799 = vrcp.pop %v1772
      %v1800 = vmul.f32 1.0, %v1799
      %v1801 = vrcp.pop %v1773
      %v1802 = vmul.f32 1.0, %v1801
      %v1803 = vrcp.pop %v1774
      %v1804 = vmul.f32 1.0, %v1803
      %v1805 = vrcp.pop %v1775
      %v1806 = vmul.f32 1.0, %v1805
      %v1807 = vrcp.pop %v1776
      %v1808 = vmul.f32 1.0, %v1807
      %v1809 = vmul.f32 %v1697, %v1778
      %v1810 = vmul.f32 %v1698, %v1780
      %v1811 = vmul.f32 %v1699, %v1782
      %v1812 = vmul.f32 %v1700, %v1784
      %v1813 = vmul.f32 %v1701, %v1786
      %v1814 = vmul.f32 %v1702, %v1788
      %v1815 = vmul.f32 %v1703, %v1790
      %v1816 = vmul.f32 %v1704, %v1792
      %v1817 = vmul.f32 %v1705, %v1794
      %v1818 = vmul.f32 %v1706, %v1796
      %v1819 = vmul.f32 %v1707, %v1798
      %v1820 = vmul.f32 %v1708, %v1800
      %v1821 = vmul.f32 %v1709, %v1802
      %v1822 = vmul.f32 %v1710, %v1804
      %v1823 = vmul.f32 %v1711, %v1806
      %v1824 = vmul.f32 %v1712, %v1808
      %s1825 = scalar_lea.vmem %s273, 256
      %1826 = vst [vmem:[%s1825] sm:$0xff] %v1809
      %1827 = vst [vmem:[%s1825 + $0x8] sm:$0xff] %v1810
      %1828 = vst [vmem:[%s1825 + $0x10] sm:$0xff] %v1811
      %1829 = vst [vmem:[%s1825 + $0x18] sm:$0xff] %v1812
      %1830 = vst [vmem:[%s1825 + $0x20] sm:$0xff] %v1813
      %1831 = vst [vmem:[%s1825 + $0x28] sm:$0xff] %v1814
      %1832 = vst [vmem:[%s1825 + $0x30] sm:$0xff] %v1815
      %1833 = vst [vmem:[%s1825 + $0x38] sm:$0xff] %v1816
      %1834 = vst [vmem:[%s1825 + $0x40] sm:$0xff] %v1817
      %1835 = vst [vmem:[%s1825 + $0x48] sm:$0xff] %v1818
      %1836 = vst [vmem:[%s1825 + $0x50] sm:$0xff] %v1819
      %1837 = vst [vmem:[%s1825 + $0x58] sm:$0xff] %v1820
      %1838 = vst [vmem:[%s1825 + $0x60] sm:$0xff] %v1821
      %1839 = vst [vmem:[%s1825 + $0x68] sm:$0xff] %v1822
      %1840 = vst [vmem:[%s1825 + $0x70] sm:$0xff] %v1823
      %1841 = vst [vmem:[%s1825 + $0x78] sm:$0xff] %v1824
      %v1842 = vld [vmem:[%s259] sm:$0x1]
      %s1843 = scalar_lea.vmem %s255, 192
      %v1844 = vld [vmem:[%s1843] sm:$0xff]
      %v1845 = vld [vmem:[%s1843 + $0x8] sm:$0xff]
      %v1846 = vld [vmem:[%s1843 + $0x18] sm:$0xff]
      %v1847 = vld [vmem:[%s1843 + $0x20] sm:$0xff]
      %v1848 = vld [vmem:[%s1843 + $0x30] sm:$0xff]
      %v1849 = vld [vmem:[%s1843 + $0x38] sm:$0xff]
      %v1850 = vld [vmem:[%s1843 + $0x48] sm:$0xff]
      %v1851 = vld [vmem:[%s1843 + $0x50] sm:$0xff]
      %v1852 = vld [vmem:[%s1843 + $0x60] sm:$0xff]
      %v1853 = vld [vmem:[%s1843 + $0x68] sm:$0xff]
      %v1854 = vld [vmem:[%s1843 + $0x78] sm:$0xff]
      %v1855 = vld [vmem:[%s1843 + $0x80] sm:$0xff]
      %v1856 = vld [vmem:[%s1843 + $0x90] sm:$0xff]
      %v1857 = vld [vmem:[%s1843 + $0x98] sm:$0xff]
      %v1858 = vld [vmem:[%s1843 + $0xa8] sm:$0xff]
      %v1859 = vld [vmem:[%s1843 + $0xb0] sm:$0xff]
      %v1860 = vlaneseq
      %v1861 = vshrl.u32 %v1860, 7
      %v1862 = vsub.s32 0, %v1861
      %v1863 = vrot.slane %v1842, %v1862
      %v1864 = vmul.f32 %v1844, %v1863
      %v1865 = vmul.f32 %v1845, %v1863
      %v1866 = vmul.f32 %v1846, %v1863
      %v1867 = vmul.f32 %v1847, %v1863
      %v1868 = vmul.f32 %v1848, %v1863
      %v1869 = vmul.f32 %v1849, %v1863
      %v1870 = vmul.f32 %v1850, %v1863
      %v1871 = vmul.f32 %v1851, %v1863
      %v1872 = vmul.f32 %v1852, %v1863
      %v1873 = vmul.f32 %v1853, %v1863
      %v1874 = vmul.f32 %v1854, %v1863
      %v1875 = vmul.f32 %v1855, %v1863
      %v1876 = vmul.f32 %v1856, %v1863
      %v1877 = vmul.f32 %v1857, %v1863
      %v1878 = vmul.f32 %v1858, %v1863
      %v1879 = vmul.f32 %v1859, %v1863
      %v1880 = vadd.f32 %v1864, 0.0
      %v1881 = vadd.f32 %v1865, 0.0
      %v1882 = vadd.f32 %v1866, 0.0
      %v1883 = vadd.f32 %v1867, 0.0
      %v1884 = vadd.f32 %v1868, 0.0
      %v1885 = vadd.f32 %v1869, 0.0
      %v1886 = vadd.f32 %v1870, 0.0
      %v1887 = vadd.f32 %v1871, 0.0
      %v1888 = vadd.f32 %v1872, 0.0
      %v1889 = vadd.f32 %v1873, 0.0
      %v1890 = vadd.f32 %v1874, 0.0
      %v1891 = vadd.f32 %v1875, 0.0
      %v1892 = vadd.f32 %v1876, 0.0
      %v1893 = vadd.f32 %v1877, 0.0
      %v1894 = vadd.f32 %v1878, 0.0
      %v1895 = vadd.f32 %v1879, 0.0
      %v1896 = vld [vmem:[%s259 + $0x1] sm:$0x1]
      %v1897 = vld [vmem:[%s1843 + $0x1] sm:$0xff]
      %v1898 = vld [vmem:[%s1843 + $0x9] sm:$0xff]
      %v1899 = vld [vmem:[%s1843 + $0x19] sm:$0xff]
      %v1900 = vld [vmem:[%s1843 + $0x21] sm:$0xff]
      %v1901 = vld [vmem:[%s1843 + $0x31] sm:$0xff]
      %v1902 = vld [vmem:[%s1843 + $0x39] sm:$0xff]
      %v1903 = vld [vmem:[%s1843 + $0x49] sm:$0xff]
      %v1904 = vld [vmem:[%s1843 + $0x51] sm:$0xff]
      %v1905 = vld [vmem:[%s1843 + $0x61] sm:$0xff]
      %v1906 = vld [vmem:[%s1843 + $0x69] sm:$0xff]
      %v1907 = vld [vmem:[%s1843 + $0x79] sm:$0xff]
      %v1908 = vld [vmem:[%s1843 + $0x81] sm:$0xff]
      %v1909 = vld [vmem:[%s1843 + $0x91] sm:$0xff]
      %v1910 = vld [vmem:[%s1843 + $0x99] sm:$0xff]
      %v1911 = vld [vmem:[%s1843 + $0xa9] sm:$0xff]
      %v1912 = vld [vmem:[%s1843 + $0xb1] sm:$0xff]
      %v1913 = vlaneseq
      %v1914 = vshrl.u32 %v1913, 7
      %v1915 = vsub.s32 0, %v1914
      %v1916 = vrot.slane %v1896, %v1915
      %v1917 = vmul.f32 %v1897, %v1916
      %v1918 = vmul.f32 %v1898, %v1916
      %v1919 = vmul.f32 %v1899, %v1916
      %v1920 = vmul.f32 %v1900, %v1916
      %v1921 = vmul.f32 %v1901, %v1916
      %v1922 = vmul.f32 %v1902, %v1916
      %v1923 = vmul.f32 %v1903, %v1916
      %v1924 = vmul.f32 %v1904, %v1916
      %v1925 = vmul.f32 %v1905, %v1916
      %v1926 = vmul.f32 %v1906, %v1916
      %v1927 = vmul.f32 %v1907, %v1916
      %v1928 = vmul.f32 %v1908, %v1916
      %v1929 = vmul.f32 %v1909, %v1916
      %v1930 = vmul.f32 %v1910, %v1916
      %v1931 = vmul.f32 %v1911, %v1916
      %v1932 = vmul.f32 %v1912, %v1916
      %v1933 = vadd.f32 %v1880, %v1917
      %v1934 = vadd.f32 %v1881, %v1918
      %v1935 = vadd.f32 %v1882, %v1919
      %v1936 = vadd.f32 %v1883, %v1920
      %v1937 = vadd.f32 %v1884, %v1921
      %v1938 = vadd.f32 %v1885, %v1922
      %v1939 = vadd.f32 %v1886, %v1923
      %v1940 = vadd.f32 %v1887, %v1924
      %v1941 = vadd.f32 %v1888, %v1925
      %v1942 = vadd.f32 %v1889, %v1926
      %v1943 = vadd.f32 %v1890, %v1927
      %v1944 = vadd.f32 %v1891, %v1928
      %v1945 = vadd.f32 %v1892, %v1929
      %v1946 = vadd.f32 %v1893, %v1930
      %v1947 = vadd.f32 %v1894, %v1931
      %v1948 = vadd.f32 %v1895, %v1932
      %v1949 = vld [vmem:[%s259 + $0x2] sm:$0x1]
      %v1950 = vld [vmem:[%s1843 + $0x2] sm:$0xff]
      %v1951 = vld [vmem:[%s1843 + $0xa] sm:$0xff]
      %v1952 = vld [vmem:[%s1843 + $0x1a] sm:$0xff]
      %v1953 = vld [vmem:[%s1843 + $0x22] sm:$0xff]
      %v1954 = vld [vmem:[%s1843 + $0x32] sm:$0xff]
      %v1955 = vld [vmem:[%s1843 + $0x3a] sm:$0xff]
      %v1956 = vld [vmem:[%s1843 + $0x4a] sm:$0xff]
      %v1957 = vld [vmem:[%s1843 + $0x52] sm:$0xff]
      %v1958 = vld [vmem:[%s1843 + $0x62] sm:$0xff]
      %v1959 = vld [vmem:[%s1843 + $0x6a] sm:$0xff]
      %v1960 = vld [vmem:[%s1843 + $0x7a] sm:$0xff]
      %v1961 = vld [vmem:[%s1843 + $0x82] sm:$0xff]
      %v1962 = vld [vmem:[%s1843 + $0x92] sm:$0xff]
      %v1963 = vld [vmem:[%s1843 + $0x9a] sm:$0xff]
      %v1964 = vld [vmem:[%s1843 + $0xaa] sm:$0xff]
      %v1965 = vld [vmem:[%s1843 + $0xb2] sm:$0xff]
      %v1966 = vlaneseq
      %v1967 = vshrl.u32 %v1966, 7
      %v1968 = vsub.s32 0, %v1967
      %v1969 = vrot.slane %v1949, %v1968
      %v1970 = vmul.f32 %v1950, %v1969
      %v1971 = vmul.f32 %v1951, %v1969
      %v1972 = vmul.f32 %v1952, %v1969
      %v1973 = vmul.f32 %v1953, %v1969
      %v1974 = vmul.f32 %v1954, %v1969
      %v1975 = vmul.f32 %v1955, %v1969
      %v1976 = vmul.f32 %v1956, %v1969
      %v1977 = vmul.f32 %v1957, %v1969
      %v1978 = vmul.f32 %v1958, %v1969
      %v1979 = vmul.f32 %v1959, %v1969
      %v1980 = vmul.f32 %v1960, %v1969
      %v1981 = vmul.f32 %v1961, %v1969
      %v1982 = vmul.f32 %v1962, %v1969
      %v1983 = vmul.f32 %v1963, %v1969
      %v1984 = vmul.f32 %v1964, %v1969
      %v1985 = vmul.f32 %v1965, %v1969
      %v1986 = vadd.f32 %v1933, %v1970
      %v1987 = vadd.f32 %v1934, %v1971
      %v1988 = vadd.f32 %v1935, %v1972
      %v1989 = vadd.f32 %v1936, %v1973
      %v1990 = vadd.f32 %v1937, %v1974
      %v1991 = vadd.f32 %v1938, %v1975
      %v1992 = vadd.f32 %v1939, %v1976
      %v1993 = vadd.f32 %v1940, %v1977
      %v1994 = vadd.f32 %v1941, %v1978
      %v1995 = vadd.f32 %v1942, %v1979
      %v1996 = vadd.f32 %v1943, %v1980
      %v1997 = vadd.f32 %v1944, %v1981
      %v1998 = vadd.f32 %v1945, %v1982
      %v1999 = vadd.f32 %v1946, %v1983
      %v2000 = vadd.f32 %v1947, %v1984
      %v2001 = vadd.f32 %v1948, %v1985
      %v2002 = vld [vmem:[%s259 + $0x3] sm:$0x1]
      %v2003 = vld [vmem:[%s1843 + $0x3] sm:$0xff]
      %v2004 = vld [vmem:[%s1843 + $0xb] sm:$0xff]
      %v2005 = vld [vmem:[%s1843 + $0x1b] sm:$0xff]
      %v2006 = vld [vmem:[%s1843 + $0x23] sm:$0xff]
      %v2007 = vld [vmem:[%s1843 + $0x33] sm:$0xff]
      %v2008 = vld [vmem:[%s1843 + $0x3b] sm:$0xff]
      %v2009 = vld [vmem:[%s1843 + $0x4b] sm:$0xff]
      %v2010 = vld [vmem:[%s1843 + $0x53] sm:$0xff]
      %v2011 = vld [vmem:[%s1843 + $0x63] sm:$0xff]
      %v2012 = vld [vmem:[%s1843 + $0x6b] sm:$0xff]
      %v2013 = vld [vmem:[%s1843 + $0x7b] sm:$0xff]
      %v2014 = vld [vmem:[%s1843 + $0x83] sm:$0xff]
      %v2015 = vld [vmem:[%s1843 + $0x93] sm:$0xff]
      %v2016 = vld [vmem:[%s1843 + $0x9b] sm:$0xff]
      %v2017 = vld [vmem:[%s1843 + $0xab] sm:$0xff]
      %v2018 = vld [vmem:[%s1843 + $0xb3] sm:$0xff]
      %v2019 = vlaneseq
      %v2020 = vshrl.u32 %v2019, 7
      %v2021 = vsub.s32 0, %v2020
      %v2022 = vrot.slane %v2002, %v2021
      %v2023 = vmul.f32 %v2003, %v2022
      %v2024 = vmul.f32 %v2004, %v2022
      %v2025 = vmul.f32 %v2005, %v2022
      %v2026 = vmul.f32 %v2006, %v2022
      %v2027 = vmul.f32 %v2007, %v2022
      %v2028 = vmul.f32 %v2008, %v2022
      %v2029 = vmul.f32 %v2009, %v2022
      %v2030 = vmul.f32 %v2010, %v2022
      %v2031 = vmul.f32 %v2011, %v2022
      %v2032 = vmul.f32 %v2012, %v2022
      %v2033 = vmul.f32 %v2013, %v2022
      %v2034 = vmul.f32 %v2014, %v2022
      %v2035 = vmul.f32 %v2015, %v2022
      %v2036 = vmul.f32 %v2016, %v2022
      %v2037 = vmul.f32 %v2017, %v2022
      %v2038 = vmul.f32 %v2018, %v2022
      %v2039 = vadd.f32 %v1986, %v2023
      %v2040 = vadd.f32 %v1987, %v2024
      %v2041 = vadd.f32 %v1988, %v2025
      %v2042 = vadd.f32 %v1989, %v2026
      %v2043 = vadd.f32 %v1990, %v2027
      %v2044 = vadd.f32 %v1991, %v2028
      %v2045 = vadd.f32 %v1992, %v2029
      %v2046 = vadd.f32 %v1993, %v2030
      %v2047 = vadd.f32 %v1994, %v2031
      %v2048 = vadd.f32 %v1995, %v2032
      %v2049 = vadd.f32 %v1996, %v2033
      %v2050 = vadd.f32 %v1997, %v2034
      %v2051 = vadd.f32 %v1998, %v2035
      %v2052 = vadd.f32 %v1999, %v2036
      %v2053 = vadd.f32 %v2000, %v2037
      %v2054 = vadd.f32 %v2001, %v2038
      %v2055 = vld [vmem:[%s259 + $0x4] sm:$0x1]
      %v2056 = vld [vmem:[%s1843 + $0x4] sm:$0xff]
      %v2057 = vld [vmem:[%s1843 + $0xc] sm:$0xff]
      %v2058 = vld [vmem:[%s1843 + $0x1c] sm:$0xff]
      %v2059 = vld [vmem:[%s1843 + $0x24] sm:$0xff]
      %v2060 = vld [vmem:[%s1843 + $0x34] sm:$0xff]
      %v2061 = vld [vmem:[%s1843 + $0x3c] sm:$0xff]
      %v2062 = vld [vmem:[%s1843 + $0x4c] sm:$0xff]
      %v2063 = vld [vmem:[%s1843 + $0x54] sm:$0xff]
      %v2064 = vld [vmem:[%s1843 + $0x64] sm:$0xff]
      %v2065 = vld [vmem:[%s1843 + $0x6c] sm:$0xff]
      %v2066 = vld [vmem:[%s1843 + $0x7c] sm:$0xff]
      %v2067 = vld [vmem:[%s1843 + $0x84] sm:$0xff]
      %v2068 = vld [vmem:[%s1843 + $0x94] sm:$0xff]
      %v2069 = vld [vmem:[%s1843 + $0x9c] sm:$0xff]
      %v2070 = vld [vmem:[%s1843 + $0xac] sm:$0xff]
      %v2071 = vld [vmem:[%s1843 + $0xb4] sm:$0xff]
      %v2072 = vlaneseq
      %v2073 = vshrl.u32 %v2072, 7
      %v2074 = vsub.s32 0, %v2073
      %v2075 = vrot.slane %v2055, %v2074
      %v2076 = vmul.f32 %v2056, %v2075
      %v2077 = vmul.f32 %v2057, %v2075
      %v2078 = vmul.f32 %v2058, %v2075
      %v2079 = vmul.f32 %v2059, %v2075
      %v2080 = vmul.f32 %v2060, %v2075
      %v2081 = vmul.f32 %v2061, %v2075
      %v2082 = vmul.f32 %v2062, %v2075
      %v2083 = vmul.f32 %v2063, %v2075
      %v2084 = vmul.f32 %v2064, %v2075
      %v2085 = vmul.f32 %v2065, %v2075
      %v2086 = vmul.f32 %v2066, %v2075
      %v2087 = vmul.f32 %v2067, %v2075
      %v2088 = vmul.f32 %v2068, %v2075
      %v2089 = vmul.f32 %v2069, %v2075
      %v2090 = vmul.f32 %v2070, %v2075
      %v2091 = vmul.f32 %v2071, %v2075
      %v2092 = vadd.f32 %v2039, %v2076
      %v2093 = vadd.f32 %v2040, %v2077
      %v2094 = vadd.f32 %v2041, %v2078
      %v2095 = vadd.f32 %v2042, %v2079
      %v2096 = vadd.f32 %v2043, %v2080
      %v2097 = vadd.f32 %v2044, %v2081
      %v2098 = vadd.f32 %v2045, %v2082
      %v2099 = vadd.f32 %v2046, %v2083
      %v2100 = vadd.f32 %v2047, %v2084
      %v2101 = vadd.f32 %v2048, %v2085
      %v2102 = vadd.f32 %v2049, %v2086
      %v2103 = vadd.f32 %v2050, %v2087
      %v2104 = vadd.f32 %v2051, %v2088
      %v2105 = vadd.f32 %v2052, %v2089
      %v2106 = vadd.f32 %v2053, %v2090
      %v2107 = vadd.f32 %v2054, %v2091
      %v2108 = vld [vmem:[%s259 + $0x5] sm:$0x1]
      %s2109 = scalar_lea.vmem %s255, 216
      %v2110 = vld [vmem:[%s2109] sm:$0xff]
      %v2111 = vld [vmem:[%s2109 + $0x8] sm:$0xff]
      %v2112 = vld [vmem:[%s2109 + $0x18] sm:$0xff]
      %v2113 = vld [vmem:[%s2109 + $0x20] sm:$0xff]
      %v2114 = vld [vmem:[%s2109 + $0x30] sm:$0xff]
      %v2115 = vld [vmem:[%s2109 + $0x38] sm:$0xff]
      %v2116 = vld [vmem:[%s2109 + $0x48] sm:$0xff]
      %v2117 = vld [vmem:[%s2109 + $0x50] sm:$0xff]
      %v2118 = vld [vmem:[%s2109 + $0x60] sm:$0xff]
      %v2119 = vld [vmem:[%s2109 + $0x68] sm:$0xff]
      %v2120 = vld [vmem:[%s2109 + $0x78] sm:$0xff]
      %v2121 = vld [vmem:[%s2109 + $0x80] sm:$0xff]
      %v2122 = vld [vmem:[%s2109 + $0x90] sm:$0xff]
      %v2123 = vld [vmem:[%s2109 + $0x98] sm:$0xff]
      %v2124 = vld [vmem:[%s2109 + $0xa8] sm:$0xff]
      %v2125 = vld [vmem:[%s2109 + $0xb0] sm:$0xff]
      %v2126 = vlaneseq
      %v2127 = vshrl.u32 %v2126, 7
      %v2128 = vsub.s32 0, %v2127
      %v2129 = vrot.slane %v2108, %v2128
      %v2130 = vmul.f32 %v2110, %v2129
      %v2131 = vmul.f32 %v2111, %v2129
      %v2132 = vmul.f32 %v2112, %v2129
      %v2133 = vmul.f32 %v2113, %v2129
      %v2134 = vmul.f32 %v2114, %v2129
      %v2135 = vmul.f32 %v2115, %v2129
      %v2136 = vmul.f32 %v2116, %v2129
      %v2137 = vmul.f32 %v2117, %v2129
      %v2138 = vmul.f32 %v2118, %v2129
      %v2139 = vmul.f32 %v2119, %v2129
      %v2140 = vmul.f32 %v2120, %v2129
      %v2141 = vmul.f32 %v2121, %v2129
      %v2142 = vmul.f32 %v2122, %v2129
      %v2143 = vmul.f32 %v2123, %v2129
      %v2144 = vmul.f32 %v2124, %v2129
      %v2145 = vmul.f32 %v2125, %v2129
      %v2146 = vadd.f32 %v2092, %v2130
      %v2147 = vadd.f32 %v2093, %v2131
      %v2148 = vadd.f32 %v2094, %v2132
      %v2149 = vadd.f32 %v2095, %v2133
      %v2150 = vadd.f32 %v2096, %v2134
      %v2151 = vadd.f32 %v2097, %v2135
      %v2152 = vadd.f32 %v2098, %v2136
      %v2153 = vadd.f32 %v2099, %v2137
      %v2154 = vadd.f32 %v2100, %v2138
      %v2155 = vadd.f32 %v2101, %v2139
      %v2156 = vadd.f32 %v2102, %v2140
      %v2157 = vadd.f32 %v2103, %v2141
      %v2158 = vadd.f32 %v2104, %v2142
      %v2159 = vadd.f32 %v2105, %v2143
      %v2160 = vadd.f32 %v2106, %v2144
      %v2161 = vadd.f32 %v2107, %v2145
      %v2162 = vld [vmem:[%s259 + $0x6] sm:$0x1]
      %v2163 = vld [vmem:[%s2109 + $0x1] sm:$0xff]
      %v2164 = vld [vmem:[%s2109 + $0x9] sm:$0xff]
      %v2165 = vld [vmem:[%s2109 + $0x19] sm:$0xff]
      %v2166 = vld [vmem:[%s2109 + $0x21] sm:$0xff]
      %v2167 = vld [vmem:[%s2109 + $0x31] sm:$0xff]
      %v2168 = vld [vmem:[%s2109 + $0x39] sm:$0xff]
      %v2169 = vld [vmem:[%s2109 + $0x49] sm:$0xff]
      %v2170 = vld [vmem:[%s2109 + $0x51] sm:$0xff]
      %v2171 = vld [vmem:[%s2109 + $0x61] sm:$0xff]
      %v2172 = vld [vmem:[%s2109 + $0x69] sm:$0xff]
      %v2173 = vld [vmem:[%s2109 + $0x79] sm:$0xff]
      %v2174 = vld [vmem:[%s2109 + $0x81] sm:$0xff]
      %v2175 = vld [vmem:[%s2109 + $0x91] sm:$0xff]
      %v2176 = vld [vmem:[%s2109 + $0x99] sm:$0xff]
      %v2177 = vld [vmem:[%s2109 + $0xa9] sm:$0xff]
      %v2178 = vld [vmem:[%s2109 + $0xb1] sm:$0xff]
      %v2179 = vlaneseq
      %v2180 = vshrl.u32 %v2179, 7
      %v2181 = vsub.s32 0, %v2180
      %v2182 = vrot.slane %v2162, %v2181
      %v2183 = vmul.f32 %v2163, %v2182
      %v2184 = vmul.f32 %v2164, %v2182
      %v2185 = vmul.f32 %v2165, %v2182
      %v2186 = vmul.f32 %v2166, %v2182
      %v2187 = vmul.f32 %v2167, %v2182
      %v2188 = vmul.f32 %v2168, %v2182
      %v2189 = vmul.f32 %v2169, %v2182
      %v2190 = vmul.f32 %v2170, %v2182
      %v2191 = vmul.f32 %v2171, %v2182
      %v2192 = vmul.f32 %v2172, %v2182
      %v2193 = vmul.f32 %v2173, %v2182
      %v2194 = vmul.f32 %v2174, %v2182
      %v2195 = vmul.f32 %v2175, %v2182
      %v2196 = vmul.f32 %v2176, %v2182
      %v2197 = vmul.f32 %v2177, %v2182
      %v2198 = vmul.f32 %v2178, %v2182
      %v2199 = vadd.f32 %v2146, %v2183
      %v2200 = vadd.f32 %v2147, %v2184
      %v2201 = vadd.f32 %v2148, %v2185
      %v2202 = vadd.f32 %v2149, %v2186
      %v2203 = vadd.f32 %v2150, %v2187
      %v2204 = vadd.f32 %v2151, %v2188
      %v2205 = vadd.f32 %v2152, %v2189
      %v2206 = vadd.f32 %v2153, %v2190
      %v2207 = vadd.f32 %v2154, %v2191
      %v2208 = vadd.f32 %v2155, %v2192
      %v2209 = vadd.f32 %v2156, %v2193
      %v2210 = vadd.f32 %v2157, %v2194
      %v2211 = vadd.f32 %v2158, %v2195
      %v2212 = vadd.f32 %v2159, %v2196
      %v2213 = vadd.f32 %v2160, %v2197
      %v2214 = vadd.f32 %v2161, %v2198
      %v2215 = vld [vmem:[%s259 + $0x7] sm:$0x1]
      %v2216 = vld [vmem:[%s2109 + $0x2] sm:$0xff]
      %v2217 = vld [vmem:[%s2109 + $0xa] sm:$0xff]
      %v2218 = vld [vmem:[%s2109 + $0x1a] sm:$0xff]
      %v2219 = vld [vmem:[%s2109 + $0x22] sm:$0xff]
      %v2220 = vld [vmem:[%s2109 + $0x32] sm:$0xff]
      %v2221 = vld [vmem:[%s2109 + $0x3a] sm:$0xff]
      %v2222 = vld [vmem:[%s2109 + $0x4a] sm:$0xff]
      %v2223 = vld [vmem:[%s2109 + $0x52] sm:$0xff]
      %v2224 = vld [vmem:[%s2109 + $0x62] sm:$0xff]
      %v2225 = vld [vmem:[%s2109 + $0x6a] sm:$0xff]
      %v2226 = vld [vmem:[%s2109 + $0x7a] sm:$0xff]
      %v2227 = vld [vmem:[%s2109 + $0x82] sm:$0xff]
      %v2228 = vld [vmem:[%s2109 + $0x92] sm:$0xff]
      %v2229 = vld [vmem:[%s2109 + $0x9a] sm:$0xff]
      %v2230 = vld [vmem:[%s2109 + $0xaa] sm:$0xff]
      %v2231 = vld [vmem:[%s2109 + $0xb2] sm:$0xff]
      %v2232 = vlaneseq
      %v2233 = vshrl.u32 %v2232, 7
      %v2234 = vsub.s32 0, %v2233
      %v2235 = vrot.slane %v2215, %v2234
      %v2236 = vmul.f32 %v2216, %v2235
      %v2237 = vmul.f32 %v2217, %v2235
      %v2238 = vmul.f32 %v2218, %v2235
      %v2239 = vmul.f32 %v2219, %v2235
      %v2240 = vmul.f32 %v2220, %v2235
      %v2241 = vmul.f32 %v2221, %v2235
      %v2242 = vmul.f32 %v2222, %v2235
      %v2243 = vmul.f32 %v2223, %v2235
      %v2244 = vmul.f32 %v2224, %v2235
      %v2245 = vmul.f32 %v2225, %v2235
      %v2246 = vmul.f32 %v2226, %v2235
      %v2247 = vmul.f32 %v2227, %v2235
      %v2248 = vmul.f32 %v2228, %v2235
      %v2249 = vmul.f32 %v2229, %v2235
      %v2250 = vmul.f32 %v2230, %v2235
      %v2251 = vmul.f32 %v2231, %v2235
      %v2252 = vadd.f32 %v2199, %v2236
      %v2253 = vadd.f32 %v2200, %v2237
      %v2254 = vadd.f32 %v2201, %v2238
      %v2255 = vadd.f32 %v2202, %v2239
      %v2256 = vadd.f32 %v2203, %v2240
      %v2257 = vadd.f32 %v2204, %v2241
      %v2258 = vadd.f32 %v2205, %v2242
      %v2259 = vadd.f32 %v2206, %v2243
      %v2260 = vadd.f32 %v2207, %v2244
      %v2261 = vadd.f32 %v2208, %v2245
      %v2262 = vadd.f32 %v2209, %v2246
      %v2263 = vadd.f32 %v2210, %v2247
      %v2264 = vadd.f32 %v2211, %v2248
      %v2265 = vadd.f32 %v2212, %v2249
      %v2266 = vadd.f32 %v2213, %v2250
      %v2267 = vadd.f32 %v2214, %v2251
      %v2268 = vld [vmem:[%s259 + $0x8] sm:$0x1]
      %v2269 = vld [vmem:[%s2109 + $0x3] sm:$0xff]
      %v2270 = vld [vmem:[%s2109 + $0xb] sm:$0xff]
      %v2271 = vld [vmem:[%s2109 + $0x1b] sm:$0xff]
      %v2272 = vld [vmem:[%s2109 + $0x23] sm:$0xff]
      %v2273 = vld [vmem:[%s2109 + $0x33] sm:$0xff]
      %v2274 = vld [vmem:[%s2109 + $0x3b] sm:$0xff]
      %v2275 = vld [vmem:[%s2109 + $0x4b] sm:$0xff]
      %v2276 = vld [vmem:[%s2109 + $0x53] sm:$0xff]
      %v2277 = vld [vmem:[%s2109 + $0x63] sm:$0xff]
      %v2278 = vld [vmem:[%s2109 + $0x6b] sm:$0xff]
      %v2279 = vld [vmem:[%s2109 + $0x7b] sm:$0xff]
      %v2280 = vld [vmem:[%s2109 + $0x83] sm:$0xff]
      %v2281 = vld [vmem:[%s2109 + $0x93] sm:$0xff]
      %v2282 = vld [vmem:[%s2109 + $0x9b] sm:$0xff]
      %v2283 = vld [vmem:[%s2109 + $0xab] sm:$0xff]
      %v2284 = vld [vmem:[%s2109 + $0xb3] sm:$0xff]
      %v2285 = vlaneseq
      %v2286 = vshrl.u32 %v2285, 7
      %v2287 = vsub.s32 0, %v2286
      %v2288 = vrot.slane %v2268, %v2287
      %v2289 = vmul.f32 %v2269, %v2288
      %v2290 = vmul.f32 %v2270, %v2288
      %v2291 = vmul.f32 %v2271, %v2288
      %v2292 = vmul.f32 %v2272, %v2288
      %v2293 = vmul.f32 %v2273, %v2288
      %v2294 = vmul.f32 %v2274, %v2288
      %v2295 = vmul.f32 %v2275, %v2288
      %v2296 = vmul.f32 %v2276, %v2288
      %v2297 = vmul.f32 %v2277, %v2288
      %v2298 = vmul.f32 %v2278, %v2288
      %v2299 = vmul.f32 %v2279, %v2288
      %v2300 = vmul.f32 %v2280, %v2288
      %v2301 = vmul.f32 %v2281, %v2288
      %v2302 = vmul.f32 %v2282, %v2288
      %v2303 = vmul.f32 %v2283, %v2288
      %v2304 = vmul.f32 %v2284, %v2288
      %v2305 = vadd.f32 %v2252, %v2289
      %v2306 = vadd.f32 %v2253, %v2290
      %v2307 = vadd.f32 %v2254, %v2291
      %v2308 = vadd.f32 %v2255, %v2292
      %v2309 = vadd.f32 %v2256, %v2293
      %v2310 = vadd.f32 %v2257, %v2294
      %v2311 = vadd.f32 %v2258, %v2295
      %v2312 = vadd.f32 %v2259, %v2296
      %v2313 = vadd.f32 %v2260, %v2297
      %v2314 = vadd.f32 %v2261, %v2298
      %v2315 = vadd.f32 %v2262, %v2299
      %v2316 = vadd.f32 %v2263, %v2300
      %v2317 = vadd.f32 %v2264, %v2301
      %v2318 = vadd.f32 %v2265, %v2302
      %v2319 = vadd.f32 %v2266, %v2303
      %v2320 = vadd.f32 %v2267, %v2304
      %v2321 = vld [vmem:[%s259 + $0x9] sm:$0x1]
      %v2322 = vld [vmem:[%s2109 + $0x4] sm:$0xff]
      %v2323 = vld [vmem:[%s2109 + $0xc] sm:$0xff]
      %v2324 = vld [vmem:[%s2109 + $0x1c] sm:$0xff]
      %v2325 = vld [vmem:[%s2109 + $0x24] sm:$0xff]
      %v2326 = vld [vmem:[%s2109 + $0x34] sm:$0xff]
      %v2327 = vld [vmem:[%s2109 + $0x3c] sm:$0xff]
      %v2328 = vld [vmem:[%s2109 + $0x4c] sm:$0xff]
      %v2329 = vld [vmem:[%s2109 + $0x54] sm:$0xff]
      %v2330 = vld [vmem:[%s2109 + $0x64] sm:$0xff]
      %v2331 = vld [vmem:[%s2109 + $0x6c] sm:$0xff]
      %v2332 = vld [vmem:[%s2109 + $0x7c] sm:$0xff]
      %v2333 = vld [vmem:[%s2109 + $0x84] sm:$0xff]
      %v2334 = vld [vmem:[%s2109 + $0x94] sm:$0xff]
      %v2335 = vld [vmem:[%s2109 + $0x9c] sm:$0xff]
      %v2336 = vld [vmem:[%s2109 + $0xac] sm:$0xff]
      %v2337 = vld [vmem:[%s2109 + $0xb4] sm:$0xff]
      %v2338 = vlaneseq
      %v2339 = vshrl.u32 %v2338, 7
      %v2340 = vsub.s32 0, %v2339
      %v2341 = vrot.slane %v2321, %v2340
      %v2342 = vmul.f32 %v2322, %v2341
      %v2343 = vmul.f32 %v2323, %v2341
      %v2344 = vmul.f32 %v2324, %v2341
      %v2345 = vmul.f32 %v2325, %v2341
      %v2346 = vmul.f32 %v2326, %v2341
      %v2347 = vmul.f32 %v2327, %v2341
      %v2348 = vmul.f32 %v2328, %v2341
      %v2349 = vmul.f32 %v2329, %v2341
      %v2350 = vmul.f32 %v2330, %v2341
      %v2351 = vmul.f32 %v2331, %v2341
      %v2352 = vmul.f32 %v2332, %v2341
      %v2353 = vmul.f32 %v2333, %v2341
      %v2354 = vmul.f32 %v2334, %v2341
      %v2355 = vmul.f32 %v2335, %v2341
      %v2356 = vmul.f32 %v2336, %v2341
      %v2357 = vmul.f32 %v2337, %v2341
      %v2358 = vadd.f32 %v2305, %v2342
      %v2359 = vadd.f32 %v2306, %v2343
      %v2360 = vadd.f32 %v2307, %v2344
      %v2361 = vadd.f32 %v2308, %v2345
      %v2362 = vadd.f32 %v2309, %v2346
      %v2363 = vadd.f32 %v2310, %v2347
      %v2364 = vadd.f32 %v2311, %v2348
      %v2365 = vadd.f32 %v2312, %v2349
      %v2366 = vadd.f32 %v2313, %v2350
      %v2367 = vadd.f32 %v2314, %v2351
      %v2368 = vadd.f32 %v2315, %v2352
      %v2369 = vadd.f32 %v2316, %v2353
      %v2370 = vadd.f32 %v2317, %v2354
      %v2371 = vadd.f32 %v2318, %v2355
      %v2372 = vadd.f32 %v2319, %v2356
      %v2373 = vadd.f32 %v2320, %v2357
      %v2374 = vld [vmem:[%s259 + $0xa] sm:$0x1]
      %s2375 = scalar_lea.vmem %s255, 240
      %v2376 = vld [vmem:[%s2375] sm:$0xff]
      %v2377 = vld [vmem:[%s2375 + $0x8] sm:$0xff]
      %v2378 = vld [vmem:[%s2375 + $0x18] sm:$0xff]
      %v2379 = vld [vmem:[%s2375 + $0x20] sm:$0xff]
      %v2380 = vld [vmem:[%s2375 + $0x30] sm:$0xff]
      %v2381 = vld [vmem:[%s2375 + $0x38] sm:$0xff]
      %v2382 = vld [vmem:[%s2375 + $0x48] sm:$0xff]
      %v2383 = vld [vmem:[%s2375 + $0x50] sm:$0xff]
      %v2384 = vld [vmem:[%s2375 + $0x60] sm:$0xff]
      %v2385 = vld [vmem:[%s2375 + $0x68] sm:$0xff]
      %v2386 = vld [vmem:[%s2375 + $0x78] sm:$0xff]
      %v2387 = vld [vmem:[%s2375 + $0x80] sm:$0xff]
      %v2388 = vld [vmem:[%s2375 + $0x90] sm:$0xff]
      %v2389 = vld [vmem:[%s2375 + $0x98] sm:$0xff]
      %v2390 = vld [vmem:[%s2375 + $0xa8] sm:$0xff]
      %v2391 = vld [vmem:[%s2375 + $0xb0] sm:$0xff]
      %v2392 = vlaneseq
      %v2393 = vshrl.u32 %v2392, 7
      %v2394 = vsub.s32 0, %v2393
      %v2395 = vrot.slane %v2374, %v2394
      %v2396 = vmul.f32 %v2376, %v2395
      %v2397 = vmul.f32 %v2377, %v2395
      %v2398 = vmul.f32 %v2378, %v2395
      %v2399 = vmul.f32 %v2379, %v2395
      %v2400 = vmul.f32 %v2380, %v2395
      %v2401 = vmul.f32 %v2381, %v2395
      %v2402 = vmul.f32 %v2382, %v2395
      %v2403 = vmul.f32 %v2383, %v2395
      %v2404 = vmul.f32 %v2384, %v2395
      %v2405 = vmul.f32 %v2385, %v2395
      %v2406 = vmul.f32 %v2386, %v2395
      %v2407 = vmul.f32 %v2387, %v2395
      %v2408 = vmul.f32 %v2388, %v2395
      %v2409 = vmul.f32 %v2389, %v2395
      %v2410 = vmul.f32 %v2390, %v2395
      %v2411 = vmul.f32 %v2391, %v2395
      %v2412 = vadd.f32 %v2358, %v2396
      %v2413 = vadd.f32 %v2359, %v2397
      %v2414 = vadd.f32 %v2360, %v2398
      %v2415 = vadd.f32 %v2361, %v2399
      %v2416 = vadd.f32 %v2362, %v2400
      %v2417 = vadd.f32 %v2363, %v2401
      %v2418 = vadd.f32 %v2364, %v2402
      %v2419 = vadd.f32 %v2365, %v2403
      %v2420 = vadd.f32 %v2366, %v2404
      %v2421 = vadd.f32 %v2367, %v2405
      %v2422 = vadd.f32 %v2368, %v2406
      %v2423 = vadd.f32 %v2369, %v2407
      %v2424 = vadd.f32 %v2370, %v2408
      %v2425 = vadd.f32 %v2371, %v2409
      %v2426 = vadd.f32 %v2372, %v2410
      %v2427 = vadd.f32 %v2373, %v2411
      %v2428 = vld [vmem:[%s259 + $0xb] sm:$0x1]
      %v2429 = vld [vmem:[%s2375 + $0x1] sm:$0xff]
      %v2430 = vld [vmem:[%s2375 + $0x9] sm:$0xff]
      %v2431 = vld [vmem:[%s2375 + $0x19] sm:$0xff]
      %v2432 = vld [vmem:[%s2375 + $0x21] sm:$0xff]
      %v2433 = vld [vmem:[%s2375 + $0x31] sm:$0xff]
      %v2434 = vld [vmem:[%s2375 + $0x39] sm:$0xff]
      %v2435 = vld [vmem:[%s2375 + $0x49] sm:$0xff]
      %v2436 = vld [vmem:[%s2375 + $0x51] sm:$0xff]
      %v2437 = vld [vmem:[%s2375 + $0x61] sm:$0xff]
      %v2438 = vld [vmem:[%s2375 + $0x69] sm:$0xff]
      %v2439 = vld [vmem:[%s2375 + $0x79] sm:$0xff]
      %v2440 = vld [vmem:[%s2375 + $0x81] sm:$0xff]
      %v2441 = vld [vmem:[%s2375 + $0x91] sm:$0xff]
      %v2442 = vld [vmem:[%s2375 + $0x99] sm:$0xff]
      %v2443 = vld [vmem:[%s2375 + $0xa9] sm:$0xff]
      %v2444 = vld [vmem:[%s2375 + $0xb1] sm:$0xff]
      %v2445 = vlaneseq
      %v2446 = vshrl.u32 %v2445, 7
      %v2447 = vsub.s32 0, %v2446
      %v2448 = vrot.slane %v2428, %v2447
      %v2449 = vmul.f32 %v2429, %v2448
      %v2450 = vmul.f32 %v2430, %v2448
      %v2451 = vmul.f32 %v2431, %v2448
      %v2452 = vmul.f32 %v2432, %v2448
      %v2453 = vmul.f32 %v2433, %v2448
      %v2454 = vmul.f32 %v2434, %v2448
      %v2455 = vmul.f32 %v2435, %v2448
      %v2456 = vmul.f32 %v2436, %v2448
      %v2457 = vmul.f32 %v2437, %v2448
      %v2458 = vmul.f32 %v2438, %v2448
      %v2459 = vmul.f32 %v2439, %v2448
      %v2460 = vmul.f32 %v2440, %v2448
      %v2461 = vmul.f32 %v2441, %v2448
      %v2462 = vmul.f32 %v2442, %v2448
      %v2463 = vmul.f32 %v2443, %v2448
      %v2464 = vmul.f32 %v2444, %v2448
      %v2465 = vadd.f32 %v2412, %v2449
      %v2466 = vadd.f32 %v2413, %v2450
      %v2467 = vadd.f32 %v2414, %v2451
      %v2468 = vadd.f32 %v2415, %v2452
      %v2469 = vadd.f32 %v2416, %v2453
      %v2470 = vadd.f32 %v2417, %v2454
      %v2471 = vadd.f32 %v2418, %v2455
      %v2472 = vadd.f32 %v2419, %v2456
      %v2473 = vadd.f32 %v2420, %v2457
      %v2474 = vadd.f32 %v2421, %v2458
      %v2475 = vadd.f32 %v2422, %v2459
      %v2476 = vadd.f32 %v2423, %v2460
      %v2477 = vadd.f32 %v2424, %v2461
      %v2478 = vadd.f32 %v2425, %v2462
      %v2479 = vadd.f32 %v2426, %v2463
      %v2480 = vadd.f32 %v2427, %v2464
      %v2481 = vld [vmem:[%s259 + $0xc] sm:$0x1]
      %v2482 = vld [vmem:[%s2375 + $0x2] sm:$0xff]
      %v2483 = vld [vmem:[%s2375 + $0xa] sm:$0xff]
      %v2484 = vld [vmem:[%s2375 + $0x1a] sm:$0xff]
      %v2485 = vld [vmem:[%s2375 + $0x22] sm:$0xff]
      %v2486 = vld [vmem:[%s2375 + $0x32] sm:$0xff]
      %v2487 = vld [vmem:[%s2375 + $0x3a] sm:$0xff]
      %v2488 = vld [vmem:[%s2375 + $0x4a] sm:$0xff]
      %v2489 = vld [vmem:[%s2375 + $0x52] sm:$0xff]
      %v2490 = vld [vmem:[%s2375 + $0x62] sm:$0xff]
      %v2491 = vld [vmem:[%s2375 + $0x6a] sm:$0xff]
      %v2492 = vld [vmem:[%s2375 + $0x7a] sm:$0xff]
      %v2493 = vld [vmem:[%s2375 + $0x82] sm:$0xff]
      %v2494 = vld [vmem:[%s2375 + $0x92] sm:$0xff]
      %v2495 = vld [vmem:[%s2375 + $0x9a] sm:$0xff]
      %v2496 = vld [vmem:[%s2375 + $0xaa] sm:$0xff]
      %v2497 = vld [vmem:[%s2375 + $0xb2] sm:$0xff]
      %v2498 = vlaneseq
      %v2499 = vshrl.u32 %v2498, 7
      %v2500 = vsub.s32 0, %v2499
      %v2501 = vrot.slane %v2481, %v2500
      %v2502 = vmul.f32 %v2482, %v2501
      %v2503 = vmul.f32 %v2483, %v2501
      %v2504 = vmul.f32 %v2484, %v2501
      %v2505 = vmul.f32 %v2485, %v2501
      %v2506 = vmul.f32 %v2486, %v2501
      %v2507 = vmul.f32 %v2487, %v2501
      %v2508 = vmul.f32 %v2488, %v2501
      %v2509 = vmul.f32 %v2489, %v2501
      %v2510 = vmul.f32 %v2490, %v2501
      %v2511 = vmul.f32 %v2491, %v2501
      %v2512 = vmul.f32 %v2492, %v2501
      %v2513 = vmul.f32 %v2493, %v2501
      %v2514 = vmul.f32 %v2494, %v2501
      %v2515 = vmul.f32 %v2495, %v2501
      %v2516 = vmul.f32 %v2496, %v2501
      %v2517 = vmul.f32 %v2497, %v2501
      %v2518 = vadd.f32 %v2465, %v2502
      %v2519 = vadd.f32 %v2466, %v2503
      %v2520 = vadd.f32 %v2467, %v2504
      %v2521 = vadd.f32 %v2468, %v2505
      %v2522 = vadd.f32 %v2469, %v2506
      %v2523 = vadd.f32 %v2470, %v2507
      %v2524 = vadd.f32 %v2471, %v2508
      %v2525 = vadd.f32 %v2472, %v2509
      %v2526 = vadd.f32 %v2473, %v2510
      %v2527 = vadd.f32 %v2474, %v2511
      %v2528 = vadd.f32 %v2475, %v2512
      %v2529 = vadd.f32 %v2476, %v2513
      %v2530 = vadd.f32 %v2477, %v2514
      %v2531 = vadd.f32 %v2478, %v2515
      %v2532 = vadd.f32 %v2479, %v2516
      %v2533 = vadd.f32 %v2480, %v2517
      %v2534 = vld [vmem:[%s259 + $0xd] sm:$0x1]
      %v2535 = vld [vmem:[%s2375 + $0x3] sm:$0xff]
      %v2536 = vld [vmem:[%s2375 + $0xb] sm:$0xff]
      %v2537 = vld [vmem:[%s2375 + $0x1b] sm:$0xff]
      %v2538 = vld [vmem:[%s2375 + $0x23] sm:$0xff]
      %v2539 = vld [vmem:[%s2375 + $0x33] sm:$0xff]
      %v2540 = vld [vmem:[%s2375 + $0x3b] sm:$0xff]
      %v2541 = vld [vmem:[%s2375 + $0x4b] sm:$0xff]
      %v2542 = vld [vmem:[%s2375 + $0x53] sm:$0xff]
      %v2543 = vld [vmem:[%s2375 + $0x63] sm:$0xff]
      %v2544 = vld [vmem:[%s2375 + $0x6b] sm:$0xff]
      %v2545 = vld [vmem:[%s2375 + $0x7b] sm:$0xff]
      %v2546 = vld [vmem:[%s2375 + $0x83] sm:$0xff]
      %v2547 = vld [vmem:[%s2375 + $0x93] sm:$0xff]
      %v2548 = vld [vmem:[%s2375 + $0x9b] sm:$0xff]
      %v2549 = vld [vmem:[%s2375 + $0xab] sm:$0xff]
      %v2550 = vld [vmem:[%s2375 + $0xb3] sm:$0xff]
      %v2551 = vlaneseq
      %v2552 = vshrl.u32 %v2551, 7
      %v2553 = vsub.s32 0, %v2552
      %v2554 = vrot.slane %v2534, %v2553
      %v2555 = vmul.f32 %v2535, %v2554
      %v2556 = vmul.f32 %v2536, %v2554
      %v2557 = vmul.f32 %v2537, %v2554
      %v2558 = vmul.f32 %v2538, %v2554
      %v2559 = vmul.f32 %v2539, %v2554
      %v2560 = vmul.f32 %v2540, %v2554
      %v2561 = vmul.f32 %v2541, %v2554
      %v2562 = vmul.f32 %v2542, %v2554
      %v2563 = vmul.f32 %v2543, %v2554
      %v2564 = vmul.f32 %v2544, %v2554
      %v2565 = vmul.f32 %v2545, %v2554
      %v2566 = vmul.f32 %v2546, %v2554
      %v2567 = vmul.f32 %v2547, %v2554
      %v2568 = vmul.f32 %v2548, %v2554
      %v2569 = vmul.f32 %v2549, %v2554
      %v2570 = vmul.f32 %v2550, %v2554
      %v2571 = vadd.f32 %v2518, %v2555
      %v2572 = vadd.f32 %v2519, %v2556
      %v2573 = vadd.f32 %v2520, %v2557
      %v2574 = vadd.f32 %v2521, %v2558
      %v2575 = vadd.f32 %v2522, %v2559
      %v2576 = vadd.f32 %v2523, %v2560
      %v2577 = vadd.f32 %v2524, %v2561
      %v2578 = vadd.f32 %v2525, %v2562
      %v2579 = vadd.f32 %v2526, %v2563
      %v2580 = vadd.f32 %v2527, %v2564
      %v2581 = vadd.f32 %v2528, %v2565
      %v2582 = vadd.f32 %v2529, %v2566
      %v2583 = vadd.f32 %v2530, %v2567
      %v2584 = vadd.f32 %v2531, %v2568
      %v2585 = vadd.f32 %v2532, %v2569
      %v2586 = vadd.f32 %v2533, %v2570
      %v2587 = vld [vmem:[%s259 + $0xe] sm:$0x1]
      %v2588 = vld [vmem:[%s2375 + $0x4] sm:$0xff]
      %v2589 = vld [vmem:[%s2375 + $0xc] sm:$0xff]
      %v2590 = vld [vmem:[%s2375 + $0x1c] sm:$0xff]
      %v2591 = vld [vmem:[%s2375 + $0x24] sm:$0xff]
      %v2592 = vld [vmem:[%s2375 + $0x34] sm:$0xff]
      %v2593 = vld [vmem:[%s2375 + $0x3c] sm:$0xff]
      %v2594 = vld [vmem:[%s2375 + $0x4c] sm:$0xff]
      %v2595 = vld [vmem:[%s2375 + $0x54] sm:$0xff]
      %v2596 = vld [vmem:[%s2375 + $0x64] sm:$0xff]
      %v2597 = vld [vmem:[%s2375 + $0x6c] sm:$0xff]
      %v2598 = vld [vmem:[%s2375 + $0x7c] sm:$0xff]
      %v2599 = vld [vmem:[%s2375 + $0x84] sm:$0xff]
      %v2600 = vld [vmem:[%s2375 + $0x94] sm:$0xff]
      %v2601 = vld [vmem:[%s2375 + $0x9c] sm:$0xff]
      %v2602 = vld [vmem:[%s2375 + $0xac] sm:$0xff]
      %v2603 = vld [vmem:[%s2375 + $0xb4] sm:$0xff]
      %v2604 = vlaneseq
      %v2605 = vshrl.u32 %v2604, 7
      %v2606 = vsub.s32 0, %v2605
      %v2607 = vrot.slane %v2587, %v2606
      %v2608 = vmul.f32 %v2588, %v2607
      %v2609 = vmul.f32 %v2589, %v2607
      %v2610 = vmul.f32 %v2590, %v2607
      %v2611 = vmul.f32 %v2591, %v2607
      %v2612 = vmul.f32 %v2592, %v2607
      %v2613 = vmul.f32 %v2593, %v2607
      %v2614 = vmul.f32 %v2594, %v2607
      %v2615 = vmul.f32 %v2595, %v2607
      %v2616 = vmul.f32 %v2596, %v2607
      %v2617 = vmul.f32 %v2597, %v2607
      %v2618 = vmul.f32 %v2598, %v2607
      %v2619 = vmul.f32 %v2599, %v2607
      %v2620 = vmul.f32 %v2600, %v2607
      %v2621 = vmul.f32 %v2601, %v2607
      %v2622 = vmul.f32 %v2602, %v2607
      %v2623 = vmul.f32 %v2603, %v2607
      %v2624 = vadd.f32 %v2571, %v2608
      %v2625 = vadd.f32 %v2572, %v2609
      %v2626 = vadd.f32 %v2573, %v2610
      %v2627 = vadd.f32 %v2574, %v2611
      %v2628 = vadd.f32 %v2575, %v2612
      %v2629 = vadd.f32 %v2576, %v2613
      %v2630 = vadd.f32 %v2577, %v2614
      %v2631 = vadd.f32 %v2578, %v2615
      %v2632 = vadd.f32 %v2579, %v2616
      %v2633 = vadd.f32 %v2580, %v2617
      %v2634 = vadd.f32 %v2581, %v2618
      %v2635 = vadd.f32 %v2582, %v2619
      %v2636 = vadd.f32 %v2583, %v2620
      %v2637 = vadd.f32 %v2584, %v2621
      %v2638 = vadd.f32 %v2585, %v2622
      %v2639 = vadd.f32 %v2586, %v2623
      %v2640 = vld [vmem:[%s259 + $0xf] sm:$0x1]
      %s2641 = scalar_lea.vmem %s255, 264
      %v2642 = vld [vmem:[%s2641] sm:$0xff]
      %v2643 = vld [vmem:[%s2641 + $0x8] sm:$0xff]
      %v2644 = vld [vmem:[%s2641 + $0x18] sm:$0xff]
      %v2645 = vld [vmem:[%s2641 + $0x20] sm:$0xff]
      %v2646 = vld [vmem:[%s2641 + $0x30] sm:$0xff]
      %v2647 = vld [vmem:[%s2641 + $0x38] sm:$0xff]
      %v2648 = vld [vmem:[%s2641 + $0x48] sm:$0xff]
      %v2649 = vld [vmem:[%s2641 + $0x50] sm:$0xff]
      %v2650 = vld [vmem:[%s2641 + $0x60] sm:$0xff]
      %v2651 = vld [vmem:[%s2641 + $0x68] sm:$0xff]
      %v2652 = vld [vmem:[%s2641 + $0x78] sm:$0xff]
      %v2653 = vld [vmem:[%s2641 + $0x80] sm:$0xff]
      %v2654 = vld [vmem:[%s2641 + $0x90] sm:$0xff]
      %v2655 = vld [vmem:[%s2641 + $0x98] sm:$0xff]
      %v2656 = vld [vmem:[%s2641 + $0xa8] sm:$0xff]
      %v2657 = vld [vmem:[%s2641 + $0xb0] sm:$0xff]
      %v2658 = vlaneseq
      %v2659 = vshrl.u32 %v2658, 7
      %v2660 = vsub.s32 0, %v2659
      %v2661 = vrot.slane %v2640, %v2660
      %v2662 = vmul.f32 %v2642, %v2661
      %v2663 = vmul.f32 %v2643, %v2661
      %v2664 = vmul.f32 %v2644, %v2661
      %v2665 = vmul.f32 %v2645, %v2661
      %v2666 = vmul.f32 %v2646, %v2661
      %v2667 = vmul.f32 %v2647, %v2661
      %v2668 = vmul.f32 %v2648, %v2661
      %v2669 = vmul.f32 %v2649, %v2661
      %v2670 = vmul.f32 %v2650, %v2661
      %v2671 = vmul.f32 %v2651, %v2661
      %v2672 = vmul.f32 %v2652, %v2661
      %v2673 = vmul.f32 %v2653, %v2661
      %v2674 = vmul.f32 %v2654, %v2661
      %v2675 = vmul.f32 %v2655, %v2661
      %v2676 = vmul.f32 %v2656, %v2661
      %v2677 = vmul.f32 %v2657, %v2661
      %v2678 = vadd.f32 %v2624, %v2662
      %v2679 = vadd.f32 %v2625, %v2663
      %v2680 = vadd.f32 %v2626, %v2664
      %v2681 = vadd.f32 %v2627, %v2665
      %v2682 = vadd.f32 %v2628, %v2666
      %v2683 = vadd.f32 %v2629, %v2667
      %v2684 = vadd.f32 %v2630, %v2668
      %v2685 = vadd.f32 %v2631, %v2669
      %v2686 = vadd.f32 %v2632, %v2670
      %v2687 = vadd.f32 %v2633, %v2671
      %v2688 = vadd.f32 %v2634, %v2672
      %v2689 = vadd.f32 %v2635, %v2673
      %v2690 = vadd.f32 %v2636, %v2674
      %v2691 = vadd.f32 %v2637, %v2675
      %v2692 = vadd.f32 %v2638, %v2676
      %v2693 = vadd.f32 %v2639, %v2677
      %v2694 = vld [vmem:[%s259 + $0x10] sm:$0x1]
      %v2695 = vld [vmem:[%s2641 + $0x1] sm:$0xff]
      %v2696 = vld [vmem:[%s2641 + $0x9] sm:$0xff]
      %v2697 = vld [vmem:[%s2641 + $0x19] sm:$0xff]
      %v2698 = vld [vmem:[%s2641 + $0x21] sm:$0xff]
      %v2699 = vld [vmem:[%s2641 + $0x31] sm:$0xff]
      %v2700 = vld [vmem:[%s2641 + $0x39] sm:$0xff]
      %v2701 = vld [vmem:[%s2641 + $0x49] sm:$0xff]
      %v2702 = vld [vmem:[%s2641 + $0x51] sm:$0xff]
      %v2703 = vld [vmem:[%s2641 + $0x61] sm:$0xff]
      %v2704 = vld [vmem:[%s2641 + $0x69] sm:$0xff]
      %v2705 = vld [vmem:[%s2641 + $0x79] sm:$0xff]
      %v2706 = vld [vmem:[%s2641 + $0x81] sm:$0xff]
      %v2707 = vld [vmem:[%s2641 + $0x91] sm:$0xff]
      %v2708 = vld [vmem:[%s2641 + $0x99] sm:$0xff]
      %v2709 = vld [vmem:[%s2641 + $0xa9] sm:$0xff]
      %v2710 = vld [vmem:[%s2641 + $0xb1] sm:$0xff]
      %v2711 = vlaneseq
      %v2712 = vshrl.u32 %v2711, 7
      %v2713 = vsub.s32 0, %v2712
      %v2714 = vrot.slane %v2694, %v2713
      %v2715 = vmul.f32 %v2695, %v2714
      %v2716 = vmul.f32 %v2696, %v2714
      %v2717 = vmul.f32 %v2697, %v2714
      %v2718 = vmul.f32 %v2698, %v2714
      %v2719 = vmul.f32 %v2699, %v2714
      %v2720 = vmul.f32 %v2700, %v2714
      %v2721 = vmul.f32 %v2701, %v2714
      %v2722 = vmul.f32 %v2702, %v2714
      %v2723 = vmul.f32 %v2703, %v2714
      %v2724 = vmul.f32 %v2704, %v2714
      %v2725 = vmul.f32 %v2705, %v2714
      %v2726 = vmul.f32 %v2706, %v2714
      %v2727 = vmul.f32 %v2707, %v2714
      %v2728 = vmul.f32 %v2708, %v2714
      %v2729 = vmul.f32 %v2709, %v2714
      %v2730 = vmul.f32 %v2710, %v2714
      %v2731 = vadd.f32 %v2678, %v2715
      %v2732 = vadd.f32 %v2679, %v2716
      %v2733 = vadd.f32 %v2680, %v2717
      %v2734 = vadd.f32 %v2681, %v2718
      %v2735 = vadd.f32 %v2682, %v2719
      %v2736 = vadd.f32 %v2683, %v2720
      %v2737 = vadd.f32 %v2684, %v2721
      %v2738 = vadd.f32 %v2685, %v2722
      %v2739 = vadd.f32 %v2686, %v2723
      %v2740 = vadd.f32 %v2687, %v2724
      %v2741 = vadd.f32 %v2688, %v2725
      %v2742 = vadd.f32 %v2689, %v2726
      %v2743 = vadd.f32 %v2690, %v2727
      %v2744 = vadd.f32 %v2691, %v2728
      %v2745 = vadd.f32 %v2692, %v2729
      %v2746 = vadd.f32 %v2693, %v2730
      %v2747 = vld [vmem:[%s259 + $0x11] sm:$0x1]
      %v2748 = vld [vmem:[%s2641 + $0x2] sm:$0xff]
      %v2749 = vld [vmem:[%s2641 + $0xa] sm:$0xff]
      %v2750 = vld [vmem:[%s2641 + $0x1a] sm:$0xff]
      %v2751 = vld [vmem:[%s2641 + $0x22] sm:$0xff]
      %v2752 = vld [vmem:[%s2641 + $0x32] sm:$0xff]
      %v2753 = vld [vmem:[%s2641 + $0x3a] sm:$0xff]
      %v2754 = vld [vmem:[%s2641 + $0x4a] sm:$0xff]
      %v2755 = vld [vmem:[%s2641 + $0x52] sm:$0xff]
      %v2756 = vld [vmem:[%s2641 + $0x62] sm:$0xff]
      %v2757 = vld [vmem:[%s2641 + $0x6a] sm:$0xff]
      %v2758 = vld [vmem:[%s2641 + $0x7a] sm:$0xff]
      %v2759 = vld [vmem:[%s2641 + $0x82] sm:$0xff]
      %v2760 = vld [vmem:[%s2641 + $0x92] sm:$0xff]
      %v2761 = vld [vmem:[%s2641 + $0x9a] sm:$0xff]
      %v2762 = vld [vmem:[%s2641 + $0xaa] sm:$0xff]
      %v2763 = vld [vmem:[%s2641 + $0xb2] sm:$0xff]
      %v2764 = vlaneseq
      %v2765 = vshrl.u32 %v2764, 7
      %v2766 = vsub.s32 0, %v2765
      %v2767 = vrot.slane %v2747, %v2766
      %v2768 = vmul.f32 %v2748, %v2767
      %v2769 = vmul.f32 %v2749, %v2767
      %v2770 = vmul.f32 %v2750, %v2767
      %v2771 = vmul.f32 %v2751, %v2767
      %v2772 = vmul.f32 %v2752, %v2767
      %v2773 = vmul.f32 %v2753, %v2767
      %v2774 = vmul.f32 %v2754, %v2767
      %v2775 = vmul.f32 %v2755, %v2767
      %v2776 = vmul.f32 %v2756, %v2767
      %v2777 = vmul.f32 %v2757, %v2767
      %v2778 = vmul.f32 %v2758, %v2767
      %v2779 = vmul.f32 %v2759, %v2767
      %v2780 = vmul.f32 %v2760, %v2767
      %v2781 = vmul.f32 %v2761, %v2767
      %v2782 = vmul.f32 %v2762, %v2767
      %v2783 = vmul.f32 %v2763, %v2767
      %v2784 = vadd.f32 %v2731, %v2768
      %v2785 = vadd.f32 %v2732, %v2769
      %v2786 = vadd.f32 %v2733, %v2770
      %v2787 = vadd.f32 %v2734, %v2771
      %v2788 = vadd.f32 %v2735, %v2772
      %v2789 = vadd.f32 %v2736, %v2773
      %v2790 = vadd.f32 %v2737, %v2774
      %v2791 = vadd.f32 %v2738, %v2775
      %v2792 = vadd.f32 %v2739, %v2776
      %v2793 = vadd.f32 %v2740, %v2777
      %v2794 = vadd.f32 %v2741, %v2778
      %v2795 = vadd.f32 %v2742, %v2779
      %v2796 = vadd.f32 %v2743, %v2780
      %v2797 = vadd.f32 %v2744, %v2781
      %v2798 = vadd.f32 %v2745, %v2782
      %v2799 = vadd.f32 %v2746, %v2783
      %v2800 = vld [vmem:[%s259 + $0x12] sm:$0x1]
      %v2801 = vld [vmem:[%s2641 + $0x3] sm:$0xff]
      %v2802 = vld [vmem:[%s2641 + $0xb] sm:$0xff]
      %v2803 = vld [vmem:[%s2641 + $0x1b] sm:$0xff]
      %v2804 = vld [vmem:[%s2641 + $0x23] sm:$0xff]
      %v2805 = vld [vmem:[%s2641 + $0x33] sm:$0xff]
      %v2806 = vld [vmem:[%s2641 + $0x3b] sm:$0xff]
      %v2807 = vld [vmem:[%s2641 + $0x4b] sm:$0xff]
      %v2808 = vld [vmem:[%s2641 + $0x53] sm:$0xff]
      %v2809 = vld [vmem:[%s2641 + $0x63] sm:$0xff]
      %v2810 = vld [vmem:[%s2641 + $0x6b] sm:$0xff]
      %v2811 = vld [vmem:[%s2641 + $0x7b] sm:$0xff]
      %v2812 = vld [vmem:[%s2641 + $0x83] sm:$0xff]
      %v2813 = vld [vmem:[%s2641 + $0x93] sm:$0xff]
      %v2814 = vld [vmem:[%s2641 + $0x9b] sm:$0xff]
      %v2815 = vld [vmem:[%s2641 + $0xab] sm:$0xff]
      %v2816 = vld [vmem:[%s2641 + $0xb3] sm:$0xff]
      %v2817 = vlaneseq
      %v2818 = vshrl.u32 %v2817, 7
      %v2819 = vsub.s32 0, %v2818
      %v2820 = vrot.slane %v2800, %v2819
      %v2821 = vmul.f32 %v2801, %v2820
      %v2822 = vmul.f32 %v2802, %v2820
      %v2823 = vmul.f32 %v2803, %v2820
      %v2824 = vmul.f32 %v2804, %v2820
      %v2825 = vmul.f32 %v2805, %v2820
      %v2826 = vmul.f32 %v2806, %v2820
      %v2827 = vmul.f32 %v2807, %v2820
      %v2828 = vmul.f32 %v2808, %v2820
      %v2829 = vmul.f32 %v2809, %v2820
      %v2830 = vmul.f32 %v2810, %v2820
      %v2831 = vmul.f32 %v2811, %v2820
      %v2832 = vmul.f32 %v2812, %v2820
      %v2833 = vmul.f32 %v2813, %v2820
      %v2834 = vmul.f32 %v2814, %v2820
      %v2835 = vmul.f32 %v2815, %v2820
      %v2836 = vmul.f32 %v2816, %v2820
      %v2837 = vadd.f32 %v2784, %v2821
      %v2838 = vadd.f32 %v2785, %v2822
      %v2839 = vadd.f32 %v2786, %v2823
      %v2840 = vadd.f32 %v2787, %v2824
      %v2841 = vadd.f32 %v2788, %v2825
      %v2842 = vadd.f32 %v2789, %v2826
      %v2843 = vadd.f32 %v2790, %v2827
      %v2844 = vadd.f32 %v2791, %v2828
      %v2845 = vadd.f32 %v2792, %v2829
      %v2846 = vadd.f32 %v2793, %v2830
      %v2847 = vadd.f32 %v2794, %v2831
      %v2848 = vadd.f32 %v2795, %v2832
      %v2849 = vadd.f32 %v2796, %v2833
      %v2850 = vadd.f32 %v2797, %v2834
      %v2851 = vadd.f32 %v2798, %v2835
      %v2852 = vadd.f32 %v2799, %v2836
      %v2853 = vld [vmem:[%s259 + $0x13] sm:$0x1]
      %v2854 = vld [vmem:[%s2641 + $0x4] sm:$0xff]
      %v2855 = vld [vmem:[%s2641 + $0xc] sm:$0xff]
      %v2856 = vld [vmem:[%s2641 + $0x1c] sm:$0xff]
      %v2857 = vld [vmem:[%s2641 + $0x24] sm:$0xff]
      %v2858 = vld [vmem:[%s2641 + $0x34] sm:$0xff]
      %v2859 = vld [vmem:[%s2641 + $0x3c] sm:$0xff]
      %v2860 = vld [vmem:[%s2641 + $0x4c] sm:$0xff]
      %v2861 = vld [vmem:[%s2641 + $0x54] sm:$0xff]
      %v2862 = vld [vmem:[%s2641 + $0x64] sm:$0xff]
      %v2863 = vld [vmem:[%s2641 + $0x6c] sm:$0xff]
      %v2864 = vld [vmem:[%s2641 + $0x7c] sm:$0xff]
      %v2865 = vld [vmem:[%s2641 + $0x84] sm:$0xff]
      %v2866 = vld [vmem:[%s2641 + $0x94] sm:$0xff]
      %v2867 = vld [vmem:[%s2641 + $0x9c] sm:$0xff]
      %v2868 = vld [vmem:[%s2641 + $0xac] sm:$0xff]
      %v2869 = vld [vmem:[%s2641 + $0xb4] sm:$0xff]
      %v2870 = vlaneseq
      %v2871 = vshrl.u32 %v2870, 7
      %v2872 = vsub.s32 0, %v2871
      %v2873 = vrot.slane %v2853, %v2872
      %v2874 = vmul.f32 %v2854, %v2873
      %v2875 = vmul.f32 %v2855, %v2873
      %v2876 = vmul.f32 %v2856, %v2873
      %v2877 = vmul.f32 %v2857, %v2873
      %v2878 = vmul.f32 %v2858, %v2873
      %v2879 = vmul.f32 %v2859, %v2873
      %v2880 = vmul.f32 %v2860, %v2873
      %v2881 = vmul.f32 %v2861, %v2873
      %v2882 = vmul.f32 %v2862, %v2873
      %v2883 = vmul.f32 %v2863, %v2873
      %v2884 = vmul.f32 %v2864, %v2873
      %v2885 = vmul.f32 %v2865, %v2873
      %v2886 = vmul.f32 %v2866, %v2873
      %v2887 = vmul.f32 %v2867, %v2873
      %v2888 = vmul.f32 %v2868, %v2873
      %v2889 = vmul.f32 %v2869, %v2873
      %v2890 = vadd.f32 %v2837, %v2874
      %v2891 = vadd.f32 %v2838, %v2875
      %v2892 = vadd.f32 %v2839, %v2876
      %v2893 = vadd.f32 %v2840, %v2877
      %v2894 = vadd.f32 %v2841, %v2878
      %v2895 = vadd.f32 %v2842, %v2879
      %v2896 = vadd.f32 %v2843, %v2880
      %v2897 = vadd.f32 %v2844, %v2881
      %v2898 = vadd.f32 %v2845, %v2882
      %v2899 = vadd.f32 %v2846, %v2883
      %v2900 = vadd.f32 %v2847, %v2884
      %v2901 = vadd.f32 %v2848, %v2885
      %v2902 = vadd.f32 %v2849, %v2886
      %v2903 = vadd.f32 %v2850, %v2887
      %v2904 = vadd.f32 %v2851, %v2888
      %v2905 = vadd.f32 %v2852, %v2889
      %v2906 = vld [vmem:[%s259 + $0x14] sm:$0x1]
      %s2907 = scalar_lea.vmem %s255, 288
      %v2908 = vld [vmem:[%s2907] sm:$0xff]
      %v2909 = vld [vmem:[%s2907 + $0x8] sm:$0xff]
      %v2910 = vld [vmem:[%s2907 + $0x18] sm:$0xff]
      %v2911 = vld [vmem:[%s2907 + $0x20] sm:$0xff]
      %v2912 = vld [vmem:[%s2907 + $0x30] sm:$0xff]
      %v2913 = vld [vmem:[%s2907 + $0x38] sm:$0xff]
      %v2914 = vld [vmem:[%s2907 + $0x48] sm:$0xff]
      %v2915 = vld [vmem:[%s2907 + $0x50] sm:$0xff]
      %v2916 = vld [vmem:[%s2907 + $0x60] sm:$0xff]
      %v2917 = vld [vmem:[%s2907 + $0x68] sm:$0xff]
      %v2918 = vld [vmem:[%s2907 + $0x78] sm:$0xff]
      %v2919 = vld [vmem:[%s2907 + $0x80] sm:$0xff]
      %v2920 = vld [vmem:[%s2907 + $0x90] sm:$0xff]
      %v2921 = vld [vmem:[%s2907 + $0x98] sm:$0xff]
      %v2922 = vld [vmem:[%s2907 + $0xa8] sm:$0xff]
      %v2923 = vld [vmem:[%s2907 + $0xb0] sm:$0xff]
      %v2924 = vlaneseq
      %v2925 = vshrl.u32 %v2924, 7
      %v2926 = vsub.s32 0, %v2925
      %v2927 = vrot.slane %v2906, %v2926
      %v2928 = vmul.f32 %v2908, %v2927
      %v2929 = vmul.f32 %v2909, %v2927
      %v2930 = vmul.f32 %v2910, %v2927
      %v2931 = vmul.f32 %v2911, %v2927
      %v2932 = vmul.f32 %v2912, %v2927
      %v2933 = vmul.f32 %v2913, %v2927
      %v2934 = vmul.f32 %v2914, %v2927
      %v2935 = vmul.f32 %v2915, %v2927
      %v2936 = vmul.f32 %v2916, %v2927
      %v2937 = vmul.f32 %v2917, %v2927
      %v2938 = vmul.f32 %v2918, %v2927
      %v2939 = vmul.f32 %v2919, %v2927
      %v2940 = vmul.f32 %v2920, %v2927
      %v2941 = vmul.f32 %v2921, %v2927
      %v2942 = vmul.f32 %v2922, %v2927
      %v2943 = vmul.f32 %v2923, %v2927
      %v2944 = vadd.f32 %v2890, %v2928
      %v2945 = vadd.f32 %v2891, %v2929
      %v2946 = vadd.f32 %v2892, %v2930
      %v2947 = vadd.f32 %v2893, %v2931
      %v2948 = vadd.f32 %v2894, %v2932
      %v2949 = vadd.f32 %v2895, %v2933
      %v2950 = vadd.f32 %v2896, %v2934
      %v2951 = vadd.f32 %v2897, %v2935
      %v2952 = vadd.f32 %v2898, %v2936
      %v2953 = vadd.f32 %v2899, %v2937
      %v2954 = vadd.f32 %v2900, %v2938
      %v2955 = vadd.f32 %v2901, %v2939
      %v2956 = vadd.f32 %v2902, %v2940
      %v2957 = vadd.f32 %v2903, %v2941
      %v2958 = vadd.f32 %v2904, %v2942
      %v2959 = vadd.f32 %v2905, %v2943
      %v2960 = vld [vmem:[%s259 + $0x15] sm:$0x1]
      %v2961 = vld [vmem:[%s2907 + $0x1] sm:$0xff]
      %v2962 = vld [vmem:[%s2907 + $0x9] sm:$0xff]
      %v2963 = vld [vmem:[%s2907 + $0x19] sm:$0xff]
      %v2964 = vld [vmem:[%s2907 + $0x21] sm:$0xff]
      %v2965 = vld [vmem:[%s2907 + $0x31] sm:$0xff]
      %v2966 = vld [vmem:[%s2907 + $0x39] sm:$0xff]
      %v2967 = vld [vmem:[%s2907 + $0x49] sm:$0xff]
      %v2968 = vld [vmem:[%s2907 + $0x51] sm:$0xff]
      %v2969 = vld [vmem:[%s2907 + $0x61] sm:$0xff]
      %v2970 = vld [vmem:[%s2907 + $0x69] sm:$0xff]
      %v2971 = vld [vmem:[%s2907 + $0x79] sm:$0xff]
      %v2972 = vld [vmem:[%s2907 + $0x81] sm:$0xff]
      %v2973 = vld [vmem:[%s2907 + $0x91] sm:$0xff]
      %v2974 = vld [vmem:[%s2907 + $0x99] sm:$0xff]
      %v2975 = vld [vmem:[%s2907 + $0xa9] sm:$0xff]
      %v2976 = vld [vmem:[%s2907 + $0xb1] sm:$0xff]
      %v2977 = vlaneseq
      %v2978 = vshrl.u32 %v2977, 7
      %v2979 = vsub.s32 0, %v2978
      %v2980 = vrot.slane %v2960, %v2979
      %v2981 = vmul.f32 %v2961, %v2980
      %v2982 = vmul.f32 %v2962, %v2980
      %v2983 = vmul.f32 %v2963, %v2980
      %v2984 = vmul.f32 %v2964, %v2980
      %v2985 = vmul.f32 %v2965, %v2980
      %v2986 = vmul.f32 %v2966, %v2980
      %v2987 = vmul.f32 %v2967, %v2980
      %v2988 = vmul.f32 %v2968, %v2980
      %v2989 = vmul.f32 %v2969, %v2980
      %v2990 = vmul.f32 %v2970, %v2980
      %v2991 = vmul.f32 %v2971, %v2980
      %v2992 = vmul.f32 %v2972, %v2980
      %v2993 = vmul.f32 %v2973, %v2980
      %v2994 = vmul.f32 %v2974, %v2980
      %v2995 = vmul.f32 %v2975, %v2980
      %v2996 = vmul.f32 %v2976, %v2980
      %v2997 = vadd.f32 %v2944, %v2981
      %v2998 = vadd.f32 %v2945, %v2982
      %v2999 = vadd.f32 %v2946, %v2983
      %v3000 = vadd.f32 %v2947, %v2984
      %v3001 = vadd.f32 %v2948, %v2985
      %v3002 = vadd.f32 %v2949, %v2986
      %v3003 = vadd.f32 %v2950, %v2987
      %v3004 = vadd.f32 %v2951, %v2988
      %v3005 = vadd.f32 %v2952, %v2989
      %v3006 = vadd.f32 %v2953, %v2990
      %v3007 = vadd.f32 %v2954, %v2991
      %v3008 = vadd.f32 %v2955, %v2992
      %v3009 = vadd.f32 %v2956, %v2993
      %v3010 = vadd.f32 %v2957, %v2994
      %v3011 = vadd.f32 %v2958, %v2995
      %v3012 = vadd.f32 %v2959, %v2996
      %v3013 = vld [vmem:[%s259 + $0x16] sm:$0x1]
      %v3014 = vld [vmem:[%s2907 + $0x2] sm:$0xff]
      %v3015 = vld [vmem:[%s2907 + $0xa] sm:$0xff]
      %v3016 = vld [vmem:[%s2907 + $0x1a] sm:$0xff]
      %v3017 = vld [vmem:[%s2907 + $0x22] sm:$0xff]
      %v3018 = vld [vmem:[%s2907 + $0x32] sm:$0xff]
      %v3019 = vld [vmem:[%s2907 + $0x3a] sm:$0xff]
      %v3020 = vld [vmem:[%s2907 + $0x4a] sm:$0xff]
      %v3021 = vld [vmem:[%s2907 + $0x52] sm:$0xff]
      %v3022 = vld [vmem:[%s2907 + $0x62] sm:$0xff]
      %v3023 = vld [vmem:[%s2907 + $0x6a] sm:$0xff]
      %v3024 = vld [vmem:[%s2907 + $0x7a] sm:$0xff]
      %v3025 = vld [vmem:[%s2907 + $0x82] sm:$0xff]
      %v3026 = vld [vmem:[%s2907 + $0x92] sm:$0xff]
      %v3027 = vld [vmem:[%s2907 + $0x9a] sm:$0xff]
      %v3028 = vld [vmem:[%s2907 + $0xaa] sm:$0xff]
      %v3029 = vld [vmem:[%s2907 + $0xb2] sm:$0xff]
      %v3030 = vlaneseq
      %v3031 = vshrl.u32 %v3030, 7
      %v3032 = vsub.s32 0, %v3031
      %v3033 = vrot.slane %v3013, %v3032
      %v3034 = vmul.f32 %v3014, %v3033
      %v3035 = vmul.f32 %v3015, %v3033
      %v3036 = vmul.f32 %v3016, %v3033
      %v3037 = vmul.f32 %v3017, %v3033
      %v3038 = vmul.f32 %v3018, %v3033
      %v3039 = vmul.f32 %v3019, %v3033
      %v3040 = vmul.f32 %v3020, %v3033
      %v3041 = vmul.f32 %v3021, %v3033
      %v3042 = vmul.f32 %v3022, %v3033
      %v3043 = vmul.f32 %v3023, %v3033
      %v3044 = vmul.f32 %v3024, %v3033
      %v3045 = vmul.f32 %v3025, %v3033
      %v3046 = vmul.f32 %v3026, %v3033
      %v3047 = vmul.f32 %v3027, %v3033
      %v3048 = vmul.f32 %v3028, %v3033
      %v3049 = vmul.f32 %v3029, %v3033
      %v3050 = vadd.f32 %v2997, %v3034
      %v3051 = vadd.f32 %v2998, %v3035
      %v3052 = vadd.f32 %v2999, %v3036
      %v3053 = vadd.f32 %v3000, %v3037
      %v3054 = vadd.f32 %v3001, %v3038
      %v3055 = vadd.f32 %v3002, %v3039
      %v3056 = vadd.f32 %v3003, %v3040
      %v3057 = vadd.f32 %v3004, %v3041
      %v3058 = vadd.f32 %v3005, %v3042
      %v3059 = vadd.f32 %v3006, %v3043
      %v3060 = vadd.f32 %v3007, %v3044
      %v3061 = vadd.f32 %v3008, %v3045
      %v3062 = vadd.f32 %v3009, %v3046
      %v3063 = vadd.f32 %v3010, %v3047
      %v3064 = vadd.f32 %v3011, %v3048
      %v3065 = vadd.f32 %v3012, %v3049
      %v3066 = vld [vmem:[%s259 + $0x17] sm:$0x1]
      %v3067 = vld [vmem:[%s2907 + $0x3] sm:$0xff]
      %v3068 = vld [vmem:[%s2907 + $0xb] sm:$0xff]
      %v3069 = vld [vmem:[%s2907 + $0x1b] sm:$0xff]
      %v3070 = vld [vmem:[%s2907 + $0x23] sm:$0xff]
      %v3071 = vld [vmem:[%s2907 + $0x33] sm:$0xff]
      %v3072 = vld [vmem:[%s2907 + $0x3b] sm:$0xff]
      %v3073 = vld [vmem:[%s2907 + $0x4b] sm:$0xff]
      %v3074 = vld [vmem:[%s2907 + $0x53] sm:$0xff]
      %v3075 = vld [vmem:[%s2907 + $0x63] sm:$0xff]
      %v3076 = vld [vmem:[%s2907 + $0x6b] sm:$0xff]
      %v3077 = vld [vmem:[%s2907 + $0x7b] sm:$0xff]
      %v3078 = vld [vmem:[%s2907 + $0x83] sm:$0xff]
      %v3079 = vld [vmem:[%s2907 + $0x93] sm:$0xff]
      %v3080 = vld [vmem:[%s2907 + $0x9b] sm:$0xff]
      %v3081 = vld [vmem:[%s2907 + $0xab] sm:$0xff]
      %v3082 = vld [vmem:[%s2907 + $0xb3] sm:$0xff]
      %v3083 = vlaneseq
      %v3084 = vshrl.u32 %v3083, 7
      %v3085 = vsub.s32 0, %v3084
      %v3086 = vrot.slane %v3066, %v3085
      %v3087 = vmul.f32 %v3067, %v3086
      %v3088 = vmul.f32 %v3068, %v3086
      %v3089 = vmul.f32 %v3069, %v3086
      %v3090 = vmul.f32 %v3070, %v3086
      %v3091 = vmul.f32 %v3071, %v3086
      %v3092 = vmul.f32 %v3072, %v3086
      %v3093 = vmul.f32 %v3073, %v3086
      %v3094 = vmul.f32 %v3074, %v3086
      %v3095 = vmul.f32 %v3075, %v3086
      %v3096 = vmul.f32 %v3076, %v3086
      %v3097 = vmul.f32 %v3077, %v3086
      %v3098 = vmul.f32 %v3078, %v3086
      %v3099 = vmul.f32 %v3079, %v3086
      %v3100 = vmul.f32 %v3080, %v3086
      %v3101 = vmul.f32 %v3081, %v3086
      %v3102 = vmul.f32 %v3082, %v3086
      %v3103 = vadd.f32 %v3050, %v3087
      %v3104 = vadd.f32 %v3051, %v3088
      %v3105 = vadd.f32 %v3052, %v3089
      %v3106 = vadd.f32 %v3053, %v3090
      %v3107 = vadd.f32 %v3054, %v3091
      %v3108 = vadd.f32 %v3055, %v3092
      %v3109 = vadd.f32 %v3056, %v3093
      %v3110 = vadd.f32 %v3057, %v3094
      %v3111 = vadd.f32 %v3058, %v3095
      %v3112 = vadd.f32 %v3059, %v3096
      %v3113 = vadd.f32 %v3060, %v3097
      %v3114 = vadd.f32 %v3061, %v3098
      %v3115 = vadd.f32 %v3062, %v3099
      %v3116 = vadd.f32 %v3063, %v3100
      %v3117 = vadd.f32 %v3064, %v3101
      %v3118 = vadd.f32 %v3065, %v3102
      %v3119 = vld [vmem:[%s259 + $0x18] sm:$0x1]
      %v3120 = vld [vmem:[%s2907 + $0x4] sm:$0xff]
      %v3121 = vld [vmem:[%s2907 + $0xc] sm:$0xff]
      %v3122 = vld [vmem:[%s2907 + $0x1c] sm:$0xff]
      %v3123 = vld [vmem:[%s2907 + $0x24] sm:$0xff]
      %v3124 = vld [vmem:[%s2907 + $0x34] sm:$0xff]
      %v3125 = vld [vmem:[%s2907 + $0x3c] sm:$0xff]
      %v3126 = vld [vmem:[%s2907 + $0x4c] sm:$0xff]
      %v3127 = vld [vmem:[%s2907 + $0x54] sm:$0xff]
      %v3128 = vld [vmem:[%s2907 + $0x64] sm:$0xff]
      %v3129 = vld [vmem:[%s2907 + $0x6c] sm:$0xff]
      %v3130 = vld [vmem:[%s2907 + $0x7c] sm:$0xff]
      %v3131 = vld [vmem:[%s2907 + $0x84] sm:$0xff]
      %v3132 = vld [vmem:[%s2907 + $0x94] sm:$0xff]
      %v3133 = vld [vmem:[%s2907 + $0x9c] sm:$0xff]
      %v3134 = vld [vmem:[%s2907 + $0xac] sm:$0xff]
      %v3135 = vld [vmem:[%s2907 + $0xb4] sm:$0xff]
      %v3136 = vlaneseq
      %v3137 = vshrl.u32 %v3136, 7
      %v3138 = vsub.s32 0, %v3137
      %v3139 = vrot.slane %v3119, %v3138
      %v3140 = vmul.f32 %v3120, %v3139
      %v3141 = vmul.f32 %v3121, %v3139
      %v3142 = vmul.f32 %v3122, %v3139
      %v3143 = vmul.f32 %v3123, %v3139
      %v3144 = vmul.f32 %v3124, %v3139
      %v3145 = vmul.f32 %v3125, %v3139
      %v3146 = vmul.f32 %v3126, %v3139
      %v3147 = vmul.f32 %v3127, %v3139
      %v3148 = vmul.f32 %v3128, %v3139
      %v3149 = vmul.f32 %v3129, %v3139
      %v3150 = vmul.f32 %v3130, %v3139
      %v3151 = vmul.f32 %v3131, %v3139
      %v3152 = vmul.f32 %v3132, %v3139
      %v3153 = vmul.f32 %v3133, %v3139
      %v3154 = vmul.f32 %v3134, %v3139
      %v3155 = vmul.f32 %v3135, %v3139
      %v3156 = vadd.f32 %v3103, %v3140
      %v3157 = vadd.f32 %v3104, %v3141
      %v3158 = vadd.f32 %v3105, %v3142
      %v3159 = vadd.f32 %v3106, %v3143
      %v3160 = vadd.f32 %v3107, %v3144
      %v3161 = vadd.f32 %v3108, %v3145
      %v3162 = vadd.f32 %v3109, %v3146
      %v3163 = vadd.f32 %v3110, %v3147
      %v3164 = vadd.f32 %v3111, %v3148
      %v3165 = vadd.f32 %v3112, %v3149
      %v3166 = vadd.f32 %v3113, %v3150
      %v3167 = vadd.f32 %v3114, %v3151
      %v3168 = vadd.f32 %v3115, %v3152
      %v3169 = vadd.f32 %v3116, %v3153
      %v3170 = vadd.f32 %v3117, %v3154
      %v3171 = vadd.f32 %v3118, %v3155
      %v3172 = vmul.f32 %v3156, %v1673
      %v3173 = vmul.f32 %v3157, %v1673
      %v3174 = vmul.f32 %v3158, %v1673
      %v3175 = vmul.f32 %v3159, %v1673
      %v3176 = vmul.f32 %v3160, %v1673
      %v3177 = vmul.f32 %v3161, %v1673
      %v3178 = vmul.f32 %v3162, %v1673
      %v3179 = vmul.f32 %v3163, %v1673
      %v3180 = vmul.f32 %v3164, %v1673
      %v3181 = vmul.f32 %v3165, %v1673
      %v3182 = vmul.f32 %v3166, %v1673
      %v3183 = vmul.f32 %v3167, %v1673
      %v3184 = vmul.f32 %v3168, %v1673
      %v3185 = vmul.f32 %v3169, %v1673
      %v3186 = vmul.f32 %v3170, %v1673
      %v3187 = vmul.f32 %v3171, %v1673
      %v3188 = vadd.f32 %v3172, %v1695
      %v3189 = vadd.f32 %v3173, %v1695
      %v3190 = vadd.f32 %v3174, %v1695
      %v3191 = vadd.f32 %v3175, %v1695
      %v3192 = vadd.f32 %v3176, %v1695
      %v3193 = vadd.f32 %v3177, %v1695
      %v3194 = vadd.f32 %v3178, %v1695
      %v3195 = vadd.f32 %v3179, %v1695
      %v3196 = vadd.f32 %v3180, %v1695
      %v3197 = vadd.f32 %v3181, %v1695
      %v3198 = vadd.f32 %v3182, %v1695
      %v3199 = vadd.f32 %v3183, %v1695
      %v3200 = vadd.f32 %v3184, %v1695
      %v3201 = vadd.f32 %v3185, %v1695
      %v3202 = vadd.f32 %v3186, %v1695
      %v3203 = vadd.f32 %v3187, %v1695
      %v3204 = vxor.u32 %v3188, 2147483648
      %v3205 = vxor.u32 %v3189, 2147483648
      %v3206 = vxor.u32 %v3190, 2147483648
      %v3207 = vxor.u32 %v3191, 2147483648
      %v3208 = vxor.u32 %v3192, 2147483648
      %v3209 = vxor.u32 %v3193, 2147483648
      %v3210 = vxor.u32 %v3194, 2147483648
      %v3211 = vxor.u32 %v3195, 2147483648
      %v3212 = vxor.u32 %v3196, 2147483648
      %v3213 = vxor.u32 %v3197, 2147483648
      %v3214 = vxor.u32 %v3198, 2147483648
      %v3215 = vxor.u32 %v3199, 2147483648
      %v3216 = vxor.u32 %v3200, 2147483648
      %v3217 = vxor.u32 %v3201, 2147483648
      %v3218 = vxor.u32 %v3202, 2147483648
      %v3219 = vxor.u32 %v3203, 2147483648
      %v3220 = vmul.f32 %v3204, 1.442695
      %v3221 = vpow.pop %v3220
      %v3222 = vmul.f32 %v3205, 1.442695
      %v3223 = vpow.pop %v3222
      %v3224 = vmul.f32 %v3206, 1.442695
      %v3225 = vpow.pop %v3224
      %v3226 = vmul.f32 %v3207, 1.442695
      %v3227 = vpow.pop %v3226
      %v3228 = vmul.f32 %v3208, 1.442695
      %v3229 = vpow.pop %v3228
      %v3230 = vmul.f32 %v3209, 1.442695
      %v3231 = vpow.pop %v3230
      %v3232 = vmul.f32 %v3210, 1.442695
      %v3233 = vpow.pop %v3232
      %v3234 = vmul.f32 %v3211, 1.442695
      %v3235 = vpow.pop %v3234
      %v3236 = vmul.f32 %v3212, 1.442695
      %v3237 = vpow.pop %v3236
      %v3238 = vmul.f32 %v3213, 1.442695
      %v3239 = vpow.pop %v3238
      %v3240 = vmul.f32 %v3214, 1.442695
      %v3241 = vpow.pop %v3240
      %v3242 = vmul.f32 %v3215, 1.442695
      %v3243 = vpow.pop %v3242
      %v3244 = vmul.f32 %v3216, 1.442695
      %v3245 = vpow.pop %v3244
      %v3246 = vmul.f32 %v3217, 1.442695
      %v3247 = vpow.pop %v3246
      %v3248 = vmul.f32 %v3218, 1.442695
      %v3249 = vpow.pop %v3248
      %v3250 = vmul.f32 %v3219, 1.442695
      %v3251 = vpow.pop %v3250
      %v3252 = vadd.f32 %v3221, 1.0
      %v3253 = vadd.f32 %v3223, 1.0
      %v3254 = vadd.f32 %v3225, 1.0
      %v3255 = vadd.f32 %v3227, 1.0
      %v3256 = vadd.f32 %v3229, 1.0
      %v3257 = vadd.f32 %v3231, 1.0
      %v3258 = vadd.f32 %v3233, 1.0
      %v3259 = vadd.f32 %v3235, 1.0
      %v3260 = vadd.f32 %v3237, 1.0
      %v3261 = vadd.f32 %v3239, 1.0
      %v3262 = vadd.f32 %v3241, 1.0
      %v3263 = vadd.f32 %v3243, 1.0
      %v3264 = vadd.f32 %v3245, 1.0
      %v3265 = vadd.f32 %v3247, 1.0
      %v3266 = vadd.f32 %v3249, 1.0
      %v3267 = vadd.f32 %v3251, 1.0
      %v3268 = vrcp.pop %v3252
      %v3269 = vmul.f32 1.0, %v3268
      %v3270 = vrcp.pop %v3253
      %v3271 = vmul.f32 1.0, %v3270
      %v3272 = vrcp.pop %v3254
      %v3273 = vmul.f32 1.0, %v3272
      %v3274 = vrcp.pop %v3255
      %v3275 = vmul.f32 1.0, %v3274
      %v3276 = vrcp.pop %v3256
      %v3277 = vmul.f32 1.0, %v3276
      %v3278 = vrcp.pop %v3257
      %v3279 = vmul.f32 1.0, %v3278
      %v3280 = vrcp.pop %v3258
      %v3281 = vmul.f32 1.0, %v3280
      %v3282 = vrcp.pop %v3259
      %v3283 = vmul.f32 1.0, %v3282
      %v3284 = vrcp.pop %v3260
      %v3285 = vmul.f32 1.0, %v3284
      %v3286 = vrcp.pop %v3261
      %v3287 = vmul.f32 1.0, %v3286
      %v3288 = vrcp.pop %v3262
      %v3289 = vmul.f32 1.0, %v3288
      %v3290 = vrcp.pop %v3263
      %v3291 = vmul.f32 1.0, %v3290
      %v3292 = vrcp.pop %v3264
      %v3293 = vmul.f32 1.0, %v3292
      %v3294 = vrcp.pop %v3265
      %v3295 = vmul.f32 1.0, %v3294
      %v3296 = vrcp.pop %v3266
      %v3297 = vmul.f32 1.0, %v3296
      %v3298 = vrcp.pop %v3267
      %v3299 = vmul.f32 1.0, %v3298
      %v3300 = vmul.f32 %v3188, %v3269
      %v3301 = vmul.f32 %v3189, %v3271
      %v3302 = vmul.f32 %v3190, %v3273
      %v3303 = vmul.f32 %v3191, %v3275
      %v3304 = vmul.f32 %v3192, %v3277
      %v3305 = vmul.f32 %v3193, %v3279
      %v3306 = vmul.f32 %v3194, %v3281
      %v3307 = vmul.f32 %v3195, %v3283
      %v3308 = vmul.f32 %v3196, %v3285
      %v3309 = vmul.f32 %v3197, %v3287
      %v3310 = vmul.f32 %v3198, %v3289
      %v3311 = vmul.f32 %v3199, %v3291
      %v3312 = vmul.f32 %v3200, %v3293
      %v3313 = vmul.f32 %v3201, %v3295
      %v3314 = vmul.f32 %v3202, %v3297
      %v3315 = vmul.f32 %v3203, %v3299
      %s3316 = scalar_lea.vmem %s273, 384
      %3317 = vst [vmem:[%s3316] sm:$0xff] %v3300
      %3318 = vst [vmem:[%s3316 + $0x8] sm:$0xff] %v3301
      %3319 = vst [vmem:[%s3316 + $0x10] sm:$0xff] %v3302
      %3320 = vst [vmem:[%s3316 + $0x18] sm:$0xff] %v3303
      %3321 = vst [vmem:[%s3316 + $0x20] sm:$0xff] %v3304
      %3322 = vst [vmem:[%s3316 + $0x28] sm:$0xff] %v3305
      %3323 = vst [vmem:[%s3316 + $0x30] sm:$0xff] %v3306
      %3324 = vst [vmem:[%s3316 + $0x38] sm:$0xff] %v3307
      %3325 = vst [vmem:[%s3316 + $0x40] sm:$0xff] %v3308
      %3326 = vst [vmem:[%s3316 + $0x48] sm:$0xff] %v3309
      %3327 = vst [vmem:[%s3316 + $0x50] sm:$0xff] %v3310
      %3328 = vst [vmem:[%s3316 + $0x58] sm:$0xff] %v3311
      %3329 = vst [vmem:[%s3316 + $0x60] sm:$0xff] %v3312
      %3330 = vst [vmem:[%s3316 + $0x68] sm:$0xff] %v3313
      %3331 = vst [vmem:[%s3316 + $0x70] sm:$0xff] %v3314
      %3332 = vst [vmem:[%s3316 + $0x78] sm:$0xff] %v3315
      %p3333 = scmp.lt.s32.totalorder %s19, 1
      %s3334 = scalar_select %p3333, %s19, 1
      %p3335 = scmp.lt.s32.totalorder %s20, 0
      %s3336 = scalar_select %p3335, %s20, 0
      %s3337 = smul.addr %s3334, 64
      %s3338 = sadd.s32 %s3336, %s3337
      %s3339 = smul.addr %s3338, 8
      %s3340 = scalar_lea.vmem %s4, %s3339
      // Predicated region
      $region37: #{ghostconv_forward.3} parent=35 // pred_check
        %p3341 = pneg %p153
      $region38: #{ghostconv_forward.3} parent=35 // pred_check_branch
        %3343 = sbr.rel (%p3341) target = $region40
      $region39: #{ghostconv_forward.3} parent=35 // pred_region
        _
      $region40: #{ghostconv_forward.3} parent=35 // pred_fallthru
        _
    $region36: #{ghostconv_forward.3} parent=5 // pred_fallthru
      _
    %p3344 = scmp.le.s32.totalorder 2, %s10
    // Predicated region
    $region41: #{ghostconv_forward.3} parent=5 // pred_check
      %p3345 = pneg %p3344
    $region42: #{ghostconv_forward.3} parent=5 // pred_check_branch
      %3347 = sbr.rel (%p3345) target = $region44
    $region43: #{ghostconv_forward.3} parent=5 // pred_region
      %s3348 = ssub.s32 %s10, 2
      // Predicated region
      $region45: #{ghostconv_forward.3} parent=43 // pred_check
        %p3349 = pneg %p159
      $region46: #{ghostconv_forward.3} parent=43 // pred_check_branch
        %3351 = sbr.rel (%p3349) target = $region48
      $region47: #{ghostconv_forward.3} parent=43 // pred_region
        %p3352 = scmp.lt.s32.totalorder %s21, 1
        %s3353 = scalar_select %p3352, %s21, 1
        %p3354 = scmp.lt.s32.totalorder %s22, 0
        %s3355 = scalar_select %p3354, %s22, 0
        %s3356 = smul.addr %s3353, 64
        %s3357 = sadd.s32 %s3355, %s3356
        %s3358 = smul.addr %s3357, 8
        %s3359 = scalar_lea.vmem %s4, %s3358
      $region48: #{ghostconv_forward.3} parent=43 // pred_fallthru
        _
    $region44: #{ghostconv_forward.3} parent=5 // pred_fallthru
      _
  $region6: #{ghostconv_forward.3} parent=0 // loop_footer
    %s14 = sadd.s32 1, %s10
  $region7: #{ghostconv_forward.3} parent=0 // loop_footer_branch
    %9 = sbr.rel target = $region3
  $region8: #{ghostconv_forward.3} parent=0 // loop_exit
    _

</llo_original>
